<compile_context>
chip_gen: v7x
topology: tpu7x:2x2x1
jax: 0.10.0
libtpu: 0.0.40
codegen_flags: <defaults>
</compile_context>

<pallas_src>
import functools

import jax
import jax.numpy as jnp
from jax.experimental import pallas as pl
from jax.experimental.pallas import tpu as pltpu

# Logical layer sizes of the Net module.
DIMS = (784, 512, 256, 128, 64, 10)

# Lane-aligned padded sizes used inside the kernel.
PAD_IN = 896     # 7 * 128  (784 -> 896, zero-padded K for layer 1)
PAD_H4 = 128     # layer-4 width 64 -> 128
PAD_OUT = 128    # logits 10 -> 128 (lane-dense output block)


def mlp_kernel(x_ref,
               w1_ref, b1_ref,
               w2_ref, b2_ref,
               w3_ref, b3_ref,
               w4_ref, b4_ref,
               w5_ref, b5_ref,
               o_ref):
    """Whole 5-layer MLP forward for one batch tile.

    Matmul inputs are bf16 (native MXU rate), accumulation and all elementwise
    math (bias add, ReLU) are f32.
    """
    # x_ref is already bf16 (cast in the wrapper).
    h = jnp.dot(x_ref[...], w1_ref[...],
                preferred_element_type=jnp.float32) + b1_ref[...]
    h = jnp.maximum(h, 0.0)

    h = jnp.dot(h.astype(jnp.bfloat16), w2_ref[...],
                preferred_element_type=jnp.float32) + b2_ref[...]
    h = jnp.maximum(h, 0.0)

    h = jnp.dot(h.astype(jnp.bfloat16), w3_ref[...],
                preferred_element_type=jnp.float32) + b3_ref[...]
    h = jnp.maximum(h, 0.0)

    h = jnp.dot(h.astype(jnp.bfloat16), w4_ref[...],
                preferred_element_type=jnp.float32) + b4_ref[...]
    h = jnp.maximum(h, 0.0)

    # Final layer: no activation (logits). Padded columns stay exactly 0.
    o = jnp.dot(h.astype(jnp.bfloat16), w5_ref[...],
                preferred_element_type=jnp.float32) + b5_ref[...]
    o_ref[...] = o.astype(o_ref.dtype)


def _full_spec(shape):
    # Whole (small) parameter lives in VMEM for every grid step (constant index map).
    return pl.BlockSpec(shape, lambda i: tuple(0 for _ in shape))


def _pad_to(a, target, axis):
    pad = target - a.shape[axis]
    if pad == 0:
        return a
    cfg = [(0, 0)] * a.ndim
    cfg[axis] = (0, pad)
    return jnp.pad(a, cfg)


def prepare_params(params):
    """Pad to lane-aligned shapes and cast matmul weights to bf16 (done once)."""
    (w1, b1), (w2, b2), (w3, b3), (w4, b4), (w5, b5) = params

    w1p = _pad_to(w1, PAD_IN, 0).astype(jnp.bfloat16)                       # (896, 512)
    w2p = w2.astype(jnp.bfloat16)                                           # (512, 256)
    w3p = w3.astype(jnp.bfloat16)                                           # (256, 128)
    w4p = _pad_to(w4, PAD_H4, 1).astype(jnp.bfloat16)                       # (128, 128)
    w5p = _pad_to(_pad_to(w5, PAD_H4, 0), PAD_OUT, 1).astype(jnp.bfloat16)  # (128, 128)

    b1p = b1.astype(jnp.float32)                                            # (1, 512)
    b2p = b2.astype(jnp.float32)                                            # (1, 256)
    b3p = b3.astype(jnp.float32)                                            # (1, 128)
    b4p = _pad_to(b4, PAD_H4, 1).astype(jnp.float32)                        # (1, 128)
    b5p = _pad_to(b5, PAD_OUT, 1).astype(jnp.float32)                       # (1, 128)

    return ((w1p, b1p), (w2p, b2p), (w3p, b3p), (w4p, b4p), (w5p, b5p))


@functools.partial(jax.jit, static_argnames=("batch_tile",))
def net_forward(x_nchw, prepared_params, batch_tile=256):
    """x_nchw: (B, 1, 28, 28) float32. Returns logits (B, 10) float32."""
    x = x_nchw.reshape(-1, DIMS[0])                       # x.view(-1, 784)
    B = x.shape[0]

    # Lane-pad features 784 -> 896 and cast to bf16 (halves input DMA).
    x = _pad_to(x, PAD_IN, 1).astype(jnp.bfloat16)

    # Pad the batch to a multiple of the (MXU-aligned) tile instead of asserting.
    B_pad = ((B + batch_tile - 1) // batch_tile) * batch_tile
    x = _pad_to(x, B_pad, 0)

    in_specs = [pl.BlockSpec((batch_tile, PAD_IN), lambda i: (i, 0))]  # x, tiled over batch
    args = [x]
    for (w, b) in prepared_params:
        in_specs.append(_full_spec(w.shape))
        in_specs.append(_full_spec(b.shape))
        args.append(w)
        args.append(b)

    out = pl.pallas_call(
        mlp_kernel,
        out_shape=jax.ShapeDtypeStruct((B_pad, PAD_OUT), jnp.float32),
        grid_spec=pltpu.PrefetchScalarGridSpec(
            num_scalar_prefetch=0,
            grid=(B_pad // batch_tile,),
            in_specs=in_specs,
            # Lane-dense (TB, 128) output block -> unmasked vector stores.
            out_specs=pl.BlockSpec((batch_tile, PAD_OUT), lambda i: (i, 0)),
        ),
        compiler_params=pltpu.CompilerParams(
            dimension_semantics=("parallel",),
        ),
    )(*args)

    # Slice away batch padding and the 118 padded logit columns.
    return out[:B, :DIMS[-1]]


def init_params(key):
    """Deterministic PyTorch-Linear-style init (uniform(-1/sqrt(fan_in), 1/sqrt(fan_in)))."""
    params = []
    for li in range(len(DIMS) - 1):
        fan_in, fan_out = DIMS[li], DIMS[li + 1]
        key, kw, kb = jax.random.split(key, 3)
        bound = 1.0 / jnp.sqrt(jnp.float32(fan_in))
        # stored as (in, out) — equivalent to PyTorch's W.T
        w = jax.random.uniform(kw, (fan_in, fan_out), jnp.float32, -bound, bound)
        b = jax.random.uniform(kb, (1, fan_out), jnp.float32, -bound, bound)
        params.append((w, b))
    return params


def reference_forward_f32(x_nchw, params):
    """Plain-JAX f32 reference matching the PyTorch forward."""
    h = x_nchw.reshape(-1, DIMS[0])
    for li, (w, b) in enumerate(params):
        h = h @ w + b
        if li < len(params) - 1:
            h = jnp.maximum(h, 0.0)
    return h


def reference_forward_bf16(x_nchw, params):
    """Reference with the same numerics as the kernel: bf16 matmul inputs, f32 accumulate."""
    h = x_nchw.reshape(-1, DIMS[0]).astype(jnp.bfloat16)
    for li, (w, b) in enumerate(params):
        h = jnp.dot(h, w.astype(jnp.bfloat16),
                    preferred_element_type=jnp.float32) + b
        if li < len(params) - 1:
            h = jnp.maximum(h, 0.0).astype(jnp.bfloat16)
    return h


if __name__ == "__main__":
    key = jax.random.PRNGKey(0)
    key, kx = jax.random.split(key)

    B = 32                                                   # small demo batch (not tile-divisible on purpose at tile=256)
    x = jax.random.normal(kx, (B, 1, 28, 28), jnp.float32)   # MNIST-shaped NCHW input
    params = init_params(key)
    prepared = prepare_params(params)

    out = net_forward(x, prepared, batch_tile=256)
    out = jax.block_until_ready(out)
    assert out.shape == (B, 10)

    # Exact-numerics check vs. a bf16-matmul / f32-accumulate JAX reference.
    ref_bf16 = reference_forward_bf16(x, params)
    assert jnp.allclose(out, ref_bf16, atol=2e-3, rtol=2e-3), "mismatch vs bf16 reference"

    # Sanity check vs. the pure f32 PyTorch-equivalent forward (loose tol for bf16 inputs).
    ref_f32 = reference_forward_f32(x, params)
    assert jnp.allclose(out, ref_f32, atol=5e-2, rtol=5e-2), "mismatch vs f32 reference"

    print("KERNEL_OK")
</pallas_src>

<mosaic_0001>
module attributes {stable_mosaic.version = 11 : i64} {
  func.func @mlp_kernel(%arg0: i32, %arg1: memref<256x896xbf16, #tpu.memory_space<vmem>>, %arg2: memref<896x512xbf16, #tpu.memory_space<vmem>>, %arg3: memref<1x512xf32, #tpu.memory_space<vmem>>, %arg4: memref<512x256xbf16, #tpu.memory_space<vmem>>, %arg5: memref<1x256xf32, #tpu.memory_space<vmem>>, %arg6: memref<256x128xbf16, #tpu.memory_space<vmem>>, %arg7: memref<1x128xf32, #tpu.memory_space<vmem>>, %arg8: memref<128x128xbf16, #tpu.memory_space<vmem>>, %arg9: memref<1x128xf32, #tpu.memory_space<vmem>>, %arg10: memref<128x128xbf16, #tpu.memory_space<vmem>>, %arg11: memref<1x128xf32, #tpu.memory_space<vmem>>, %arg12: memref<256x128xf32, #tpu.memory_space<vmem>>) attributes {dimension_semantics = [#tpu.dimension_semantics<parallel>], iteration_bounds = array<i64: 1>, scalar_prefetch = 0 : i64, scratch_operands = 0 : i64, tpu.core_type = #tpu.core_type<tc>, window_params = [{transform_indices = @transform_0, window_bounds = array<i64: 256, 896>}, {pipeline_mode = #tpu.pipeline_mode<synchronous>, transform_indices = @transform_1, window_bounds = array<i64: 896, 512>}, {pipeline_mode = #tpu.pipeline_mode<synchronous>, transform_indices = @transform_2, window_bounds = array<i64: 1, 512>}, {pipeline_mode = #tpu.pipeline_mode<synchronous>, transform_indices = @transform_3, window_bounds = array<i64: 512, 256>}, {pipeline_mode = #tpu.pipeline_mode<synchronous>, transform_indices = @transform_4, window_bounds = array<i64: 1, 256>}, {pipeline_mode = #tpu.pipeline_mode<synchronous>, transform_indices = @transform_5, window_bounds = array<i64: 256, 128>}, {pipeline_mode = #tpu.pipeline_mode<synchronous>, transform_indices = @transform_6, window_bounds = array<i64: 1, 128>}, {pipeline_mode = #tpu.pipeline_mode<synchronous>, transform_indices = @transform_7, window_bounds = array<i64: 128, 128>}, {pipeline_mode = #tpu.pipeline_mode<synchronous>, transform_indices = @transform_8, window_bounds = array<i64: 1, 128>}, {pipeline_mode = #tpu.pipeline_mode<synchronous>, transform_indices = @transform_9, window_bounds = array<i64: 128, 128>}, {pipeline_mode = #tpu.pipeline_mode<synchronous>, transform_indices = @transform_10, window_bounds = array<i64: 1, 128>}, {transform_indices = @transform_11, window_bounds = array<i64: 256, 128>}]} {
    %c0 = arith.constant 0 : index
    %c0_0 = arith.constant 0 : index
    %0 = vector.load %arg1[%c0, %c0_0] : memref<256x896xbf16, #tpu.memory_space<vmem>>, vector<256x896xbf16>
    %c0_1 = arith.constant 0 : index
    %c0_2 = arith.constant 0 : index
    %1 = vector.load %arg2[%c0_1, %c0_2] : memref<896x512xbf16, #tpu.memory_space<vmem>>, vector<896x512xbf16>
    %cst = arith.constant dense<0.000000e+00> : vector<256x512xf32>
    %2 = tpu.matmul %0, %1, %cst {dimension_numbers = #tpu.dot_dimension_numbers<[1], [0], [0], [1], [0, 0, 1, 1], [], []>} : vector<256x896xbf16>, vector<896x512xbf16>, vector<256x512xf32> -> vector<256x512xf32>
    %c0_3 = arith.constant 0 : index
    %c0_4 = arith.constant 0 : index
    %3 = vector.load %arg3[%c0_3, %c0_4] : memref<1x512xf32, #tpu.memory_space<vmem>>, vector<1x512xf32>
    %4 = vector.broadcast %3 : vector<1x512xf32> to vector<256x512xf32>
    %5 = arith.addf %2, %4 : vector<256x512xf32>
    %cst_5 = arith.constant 0.000000e+00 : f32
    %6 = vector.broadcast %cst_5 : f32 to vector<256x512xf32>
    %7 = arith.maximumf %5, %6 : vector<256x512xf32>
    %8 = arith.truncf %7 : vector<256x512xf32> to vector<256x512xbf16>
    %c0_6 = arith.constant 0 : index
    %c0_7 = arith.constant 0 : index
    %9 = vector.load %arg4[%c0_6, %c0_7] : memref<512x256xbf16, #tpu.memory_space<vmem>>, vector<512x256xbf16>
    %cst_8 = arith.constant dense<0.000000e+00> : vector<256x256xf32>
    %10 = tpu.matmul %8, %9, %cst_8 {dimension_numbers = #tpu.dot_dimension_numbers<[1], [0], [0], [1], [0, 0, 1, 1], [], []>} : vector<256x512xbf16>, vector<512x256xbf16>, vector<256x256xf32> -> vector<256x256xf32>
    %c0_9 = arith.constant 0 : index
    %c0_10 = arith.constant 0 : index
    %11 = vector.load %arg5[%c0_9, %c0_10] : memref<1x256xf32, #tpu.memory_space<vmem>>, vector<1x256xf32>
    %12 = vector.broadcast %11 : vector<1x256xf32> to vector<256x256xf32>
    %13 = arith.addf %10, %12 : vector<256x256xf32>
    %cst_11 = arith.constant 0.000000e+00 : f32
    %14 = vector.broadcast %cst_11 : f32 to vector<256x256xf32>
    %15 = arith.maximumf %13, %14 : vector<256x256xf32>
    %16 = arith.truncf %15 : vector<256x256xf32> to vector<256x256xbf16>
    %c0_12 = arith.constant 0 : index
    %c0_13 = arith.constant 0 : index
    %17 = vector.load %arg6[%c0_12, %c0_13] : memref<256x128xbf16, #tpu.memory_space<vmem>>, vector<256x128xbf16>
    %cst_14 = arith.constant dense<0.000000e+00> : vector<256x128xf32>
    %18 = tpu.matmul %16, %17, %cst_14 {dimension_numbers = #tpu.dot_dimension_numbers<[1], [0], [0], [1], [0, 0, 1, 1], [], []>} : vector<256x256xbf16>, vector<256x128xbf16>, vector<256x128xf32> -> vector<256x128xf32>
    %c0_15 = arith.constant 0 : index
    %c0_16 = arith.constant 0 : index
    %19 = vector.load %arg7[%c0_15, %c0_16] : memref<1x128xf32, #tpu.memory_space<vmem>>, vector<1x128xf32>
    %20 = vector.broadcast %19 : vector<1x128xf32> to vector<256x128xf32>
    %21 = arith.addf %18, %20 : vector<256x128xf32>
    %cst_17 = arith.constant 0.000000e+00 : f32
    %22 = vector.broadcast %cst_17 : f32 to vector<256x128xf32>
    %23 = arith.maximumf %21, %22 : vector<256x128xf32>
    %24 = arith.truncf %23 : vector<256x128xf32> to vector<256x128xbf16>
    %c0_18 = arith.constant 0 : index
    %c0_19 = arith.constant 0 : index
    %25 = vector.load %arg8[%c0_18, %c0_19] : memref<128x128xbf16, #tpu.memory_space<vmem>>, vector<128x128xbf16>
    %cst_20 = arith.constant dense<0.000000e+00> : vector<256x128xf32>
    %26 = tpu.matmul %24, %25, %cst_20 {dimension_numbers = #tpu.dot_dimension_numbers<[1], [0], [0], [1], [0, 0, 1, 1], [], []>} : vector<256x128xbf16>, vector<128x128xbf16>, vector<256x128xf32> -> vector<256x128xf32>
    %c0_21 = arith.constant 0 : index
    %c0_22 = arith.constant 0 : index
    %27 = vector.load %arg9[%c0_21, %c0_22] : memref<1x128xf32, #tpu.memory_space<vmem>>, vector<1x128xf32>
    %28 = vector.broadcast %27 : vector<1x128xf32> to vector<256x128xf32>
    %29 = arith.addf %26, %28 : vector<256x128xf32>
    %cst_23 = arith.constant 0.000000e+00 : f32
    %30 = vector.broadcast %cst_23 : f32 to vector<256x128xf32>
    %31 = arith.maximumf %29, %30 : vector<256x128xf32>
    %32 = arith.truncf %31 : vector<256x128xf32> to vector<256x128xbf16>
    %c0_24 = arith.constant 0 : index
    %c0_25 = arith.constant 0 : index
    %33 = vector.load %arg10[%c0_24, %c0_25] : memref<128x128xbf16, #tpu.memory_space<vmem>>, vector<128x128xbf16>
    %cst_26 = arith.constant dense<0.000000e+00> : vector<256x128xf32>
    %34 = tpu.matmul %32, %33, %cst_26 {dimension_numbers = #tpu.dot_dimension_numbers<[1], [0], [0], [1], [0, 0, 1, 1], [], []>} : vector<256x128xbf16>, vector<128x128xbf16>, vector<256x128xf32> -> vector<256x128xf32>
    %c0_27 = arith.constant 0 : index
    %c0_28 = arith.constant 0 : index
    %35 = vector.load %arg11[%c0_27, %c0_28] : memref<1x128xf32, #tpu.memory_space<vmem>>, vector<1x128xf32>
    %36 = vector.broadcast %35 : vector<1x128xf32> to vector<256x128xf32>
    %37 = arith.addf %34, %36 : vector<256x128xf32>
    %c0_29 = arith.constant 0 : index
    %c0_30 = arith.constant 0 : index
    %38 = vector.load %arg12[%c0_29, %c0_30] : memref<256x128xf32, #tpu.memory_space<vmem>>, vector<256x128xf32>
    tpu.vector_store %arg12[%c0_29, %c0_30], %37 {strides = array<i32>} : memref<256x128xf32, #tpu.memory_space<vmem>>, vector<256x128xf32>,
    return
  }
  func.func @transform_0(%arg0: i32) -> (i32, i32) {
    %c0_i32 = arith.constant 0 : i32
    %c0_i32_0 = arith.constant 0 : i32
    return %arg0, %c0_i32 : i32, i32
  }
  func.func @transform_1(%arg0: i32) -> (i32, i32) {
    %c0_i32 = arith.constant 0 : i32
    %c0_i32_0 = arith.constant 0 : i32
    %c0_i32_1 = arith.constant 0 : i32
    return %c0_i32, %c0_i32_0 : i32, i32
  }
  func.func @transform_2(%arg0: i32) -> (i32, i32) {
    %c0_i32 = arith.constant 0 : i32
    %c0_i32_0 = arith.constant 0 : i32
    %c0_i32_1 = arith.constant 0 : i32
    return %c0_i32, %c0_i32_0 : i32, i32
  }
  func.func @transform_3(%arg0: i32) -> (i32, i32) {
    %c0_i32 = arith.constant 0 : i32
    %c0_i32_0 = arith.constant 0 : i32
    %c0_i32_1 = arith.constant 0 : i32
    return %c0_i32, %c0_i32_0 : i32, i32
  }
  func.func @transform_4(%arg0: i32) -> (i32, i32) {
    %c0_i32 = arith.constant 0 : i32
    %c0_i32_0 = arith.constant 0 : i32
    %c0_i32_1 = arith.constant 0 : i32
    return %c0_i32, %c0_i32_0 : i32, i32
  }
  func.func @transform_5(%arg0: i32) -> (i32, i32) {
    %c0_i32 = arith.constant 0 : i32
    %c0_i32_0 = arith.constant 0 : i32
    %c0_i32_1 = arith.constant 0 : i32
    return %c0_i32, %c0_i32_0 : i32, i32
  }
  func.func @transform_6(%arg0: i32) -> (i32, i32) {
    %c0_i32 = arith.constant 0 : i32
    %c0_i32_0 = arith.constant 0 : i32
    %c0_i32_1 = arith.constant 0 : i32
    return %c0_i32, %c0_i32_0 : i32, i32
  }
  func.func @transform_7(%arg0: i32) -> (i32, i32) {
    %c0_i32 = arith.constant 0 : i32
    %c0_i32_0 = arith.constant 0 : i32
    %c0_i32_1 = arith.constant 0 : i32
    return %c0_i32, %c0_i32_0 : i32, i32
  }
  func.func @transform_8(%arg0: i32) -> (i32, i32) {
    %c0_i32 = arith.constant 0 : i32
    %c0_i32_0 = arith.constant 0 : i32
    %c0_i32_1 = arith.constant 0 : i32
    return %c0_i32, %c0_i32_0 : i32, i32
  }
  func.func @transform_9(%arg0: i32) -> (i32, i32) {
    %c0_i32 = arith.constant 0 : i32
    %c0_i32_0 = arith.constant 0 : i32
    %c0_i32_1 = arith.constant 0 : i32
    return %c0_i32, %c0_i32_0 : i32, i32
  }
  func.func @transform_10(%arg0: i32) -> (i32, i32) {
    %c0_i32 = arith.constant 0 : i32
    %c0_i32_0 = arith.constant 0 : i32
    %c0_i32_1 = arith.constant 0 : i32
    return %c0_i32, %c0_i32_0 : i32, i32
  }
  func.func @transform_11(%arg0: i32) -> (i32, i32) {
    %c0_i32 = arith.constant 0 : i32
    %c0_i32_0 = arith.constant 0 : i32
    return %arg0, %c0_i32 : i32, i32
  }
}

</mosaic_0001>

<llo_original>
// kernel: net_forward.1
$region0: #{net_forward.1}
  #allocation0 [shape = 'u32[]', space=smem, size = 0x4, offset = 0x4, fixed_abs, tag = 'smem constant byte address 0x4 - core index']
  #allocation1 [shape = 'u32[144,128]{1,0:T(1,128)}', space=vmem, size = 0x12000, scoped, tag = 'internal scratch']
  %s0 = inlined_call_operand.vmem [shape: bf16[256,896], index: 0, kind: input, shape index: {}]
  %s1 = inlined_call_operand.vmem [shape: bf16[896,512], index: 1, kind: input, shape index: {}]
  %s2 = inlined_call_operand.vmem [shape: f32[1,512], index: 2, kind: input, shape index: {}]
  %s3 = inlined_call_operand.vmem [shape: bf16[512,256], index: 3, kind: input, shape index: {}]
  %s4 = inlined_call_operand.vmem [shape: f32[1,256], index: 4, kind: input, shape index: {}]
  %s5 = inlined_call_operand.vmem [shape: bf16[256,128], index: 5, kind: input, shape index: {}]
  %s6 = inlined_call_operand.vmem [shape: f32[1,128], index: 6, kind: input, shape index: {}]
  %s7 = inlined_call_operand.vmem [shape: bf16[128,128], index: 7, kind: input, shape index: {}]
  %s8 = inlined_call_operand.vmem [shape: f32[1,128], index: 8, kind: input, shape index: {}]
  %s9 = inlined_call_operand.vmem [shape: bf16[128,128], index: 9, kind: input, shape index: {}]
  %s10 = inlined_call_operand.vmem [shape: f32[1,128], index: 10, kind: input, shape index: {}]
  %s11 = inlined_call_operand.vmem [shape: f32[256,128], index: 11, kind: output, shape index: {}]
  %s12 = sld [smem:[#allocation0]]
  $region54: #{net_forward.1} parent=0
    _
  %s14 = ssub.s32 1, %s12
  %s15 = scalar_select 0, %s14, %s12
  // Predicated region
  $region2: #{net_forward.1} parent=0 // pred_check
    _
  $region3: #{net_forward.1} parent=0 // pred_check_branch
    %17 = sbr.rel (0) target = $region5
  $region4: #{net_forward.1} parent=0 // pred_region
    _
  $region5: #{net_forward.1} parent=0 // pred_fallthru
    _
  // Predicated region
  $region6: #{net_forward.1} parent=0 // pred_check
    _
  $region7: #{net_forward.1} parent=0 // pred_check_branch
    %19 = sbr.rel (0) target = $region9
  $region8: #{net_forward.1} parent=0 // pred_region
    _
  $region9: #{net_forward.1} parent=0 // pred_fallthru
    _
  // Predicated region
  $region10: #{net_forward.1} parent=0 // pred_check
    _
  $region11: #{net_forward.1} parent=0 // pred_check_branch
    %21 = sbr.rel (0) target = $region13
  $region12: #{net_forward.1} parent=0 // pred_region
    _
  $region13: #{net_forward.1} parent=0 // pred_fallthru
    _
  // Predicated region
  $region14: #{net_forward.1} parent=0 // pred_check
    _
  $region15: #{net_forward.1} parent=0 // pred_check_branch
    %23 = sbr.rel (0) target = $region17
  $region16: #{net_forward.1} parent=0 // pred_region
    _
  $region17: #{net_forward.1} parent=0 // pred_fallthru
    _
  // Predicated region
  $region18: #{net_forward.1} parent=0 // pred_check
    _
  $region19: #{net_forward.1} parent=0 // pred_check_branch
    %25 = sbr.rel (0) target = $region21
  $region20: #{net_forward.1} parent=0 // pred_region
    _
  $region21: #{net_forward.1} parent=0 // pred_fallthru
    _
  // Predicated region
  $region22: #{net_forward.1} parent=0 // pred_check
    _
  $region23: #{net_forward.1} parent=0 // pred_check_branch
    %27 = sbr.rel (0) target = $region25
  $region24: #{net_forward.1} parent=0 // pred_region
    _
  $region25: #{net_forward.1} parent=0 // pred_fallthru
    _
  // Predicated region
  $region26: #{net_forward.1} parent=0 // pred_check
    _
  $region27: #{net_forward.1} parent=0 // pred_check_branch
    %29 = sbr.rel (0) target = $region29
  $region28: #{net_forward.1} parent=0 // pred_region
    _
  $region29: #{net_forward.1} parent=0 // pred_fallthru
    _
  // Predicated region
  $region30: #{net_forward.1} parent=0 // pred_check
    _
  $region31: #{net_forward.1} parent=0 // pred_check_branch
    %31 = sbr.rel (0) target = $region33
  $region32: #{net_forward.1} parent=0 // pred_region
    _
  $region33: #{net_forward.1} parent=0 // pred_fallthru
    _
  // Predicated region
  $region34: #{net_forward.1} parent=0 // pred_check
    _
  $region35: #{net_forward.1} parent=0 // pred_check_branch
    %33 = sbr.rel (0) target = $region37
  $region36: #{net_forward.1} parent=0 // pred_region
    _
  $region37: #{net_forward.1} parent=0 // pred_fallthru
    _
  // Predicated region
  $region38: #{net_forward.1} parent=0 // pred_check
    _
  $region39: #{net_forward.1} parent=0 // pred_check_branch
    %35 = sbr.rel (0) target = $region41
  $region40: #{net_forward.1} parent=0 // pred_region
    _
  $region41: #{net_forward.1} parent=0 // pred_fallthru
    _
  // Predicated region
  $region42: #{net_forward.1} parent=0 // pred_check
    _
  $region43: #{net_forward.1} parent=0 // pred_check_branch
    %37 = sbr.rel (0) target = $region45
  $region44: #{net_forward.1} parent=0 // pred_region
    _
  $region45: #{net_forward.1} parent=0 // pred_fallthru
    _
  %v39 = vld [vmem:[%s0] sm:$0xff]
  %v40 = vld [vmem:[%s0 + $0x8] sm:$0xff]
  %v41 = vld [vmem:[%s0 + $0x10] sm:$0xff]
  %v42 = vld [vmem:[%s0 + $0x18] sm:$0xf]
  %v43 = vld [vmem:[%s0 + $0x1c] sm:$0xff]
  %v44 = vld [vmem:[%s0 + $0x24] sm:$0xff]
  %v45 = vld [vmem:[%s0 + $0x2c] sm:$0xff]
  %v46 = vld [vmem:[%s0 + $0x34] sm:$0xf]
  %v47 = vld [vmem:[%s0 + $0x38] sm:$0xff]
  %v48 = vld [vmem:[%s0 + $0x40] sm:$0xff]
  %v49 = vld [vmem:[%s0 + $0x48] sm:$0xff]
  %v50 = vld [vmem:[%s0 + $0x50] sm:$0xf]
  %v51 = vld [vmem:[%s0 + $0x54] sm:$0xff]
  %v52 = vld [vmem:[%s0 + $0x5c] sm:$0xff]
  %v53 = vld [vmem:[%s0 + $0x64] sm:$0xff]
  %v54 = vld [vmem:[%s0 + $0x6c] sm:$0xf]
  %v55 = vld [vmem:[%s0 + $0x70] sm:$0xff]
  %v56 = vld [vmem:[%s0 + $0x78] sm:$0xff]
  %v57 = vld [vmem:[%s0 + $0x80] sm:$0xff]
  %v58 = vld [vmem:[%s0 + $0x88] sm:$0xf]
  %v59 = vld [vmem:[%s0 + $0x8c] sm:$0xff]
  %v60 = vld [vmem:[%s0 + $0x94] sm:$0xff]
  %v61 = vld [vmem:[%s0 + $0x9c] sm:$0xff]
  %v62 = vld [vmem:[%s0 + $0xa4] sm:$0xf]
  %v63 = vld [vmem:[%s0 + $0xa8] sm:$0xff]
  %v64 = vld [vmem:[%s0 + $0xb0] sm:$0xff]
  %v65 = vld [vmem:[%s0 + $0xb8] sm:$0xff]
  %v66 = vld [vmem:[%s0 + $0xc0] sm:$0xf]
  %v67 = vld [vmem:[%s0 + $0xc4] sm:$0xff]
  %v68 = vld [vmem:[%s0 + $0xcc] sm:$0xff]
  %v69 = vld [vmem:[%s0 + $0xd4] sm:$0xff]
  %v70 = vld [vmem:[%s0 + $0xdc] sm:$0xf]
  %v71 = vld [vmem:[%s0 + $0xe0] sm:$0xff]
  %v72 = vld [vmem:[%s0 + $0xe8] sm:$0xff]
  %v73 = vld [vmem:[%s0 + $0xf0] sm:$0xff]
  %v74 = vld [vmem:[%s0 + $0xf8] sm:$0xf]
  %v75 = vld [vmem:[%s0 + $0xfc] sm:$0xff]
  %v76 = vld [vmem:[%s0 + $0x104] sm:$0xff]
  %v77 = vld [vmem:[%s0 + $0x10c] sm:$0xff]
  %v78 = vld [vmem:[%s0 + $0x114] sm:$0xf]
  %v79 = vld [vmem:[%s0 + $0x118] sm:$0xff]
  %v80 = vld [vmem:[%s0 + $0x120] sm:$0xff]
  %v81 = vld [vmem:[%s0 + $0x128] sm:$0xff]
  %v82 = vld [vmem:[%s0 + $0x130] sm:$0xf]
  %v83 = vld [vmem:[%s0 + $0x134] sm:$0xff]
  %v84 = vld [vmem:[%s0 + $0x13c] sm:$0xff]
  %v85 = vld [vmem:[%s0 + $0x144] sm:$0xff]
  %v86 = vld [vmem:[%s0 + $0x14c] sm:$0xf]
  %v87 = vld [vmem:[%s0 + $0x150] sm:$0xff]
  %v88 = vld [vmem:[%s0 + $0x158] sm:$0xff]
  %v89 = vld [vmem:[%s0 + $0x160] sm:$0xff]
  %v90 = vld [vmem:[%s0 + $0x168] sm:$0xf]
  %v91 = vld [vmem:[%s0 + $0x16c] sm:$0xff]
  %v92 = vld [vmem:[%s0 + $0x174] sm:$0xff]
  %v93 = vld [vmem:[%s0 + $0x17c] sm:$0xff]
  %v94 = vld [vmem:[%s0 + $0x184] sm:$0xf]
  %v95 = vld [vmem:[%s0 + $0x188] sm:$0xff]
  %v96 = vld [vmem:[%s0 + $0x190] sm:$0xff]
  %v97 = vld [vmem:[%s0 + $0x198] sm:$0xff]
  %v98 = vld [vmem:[%s0 + $0x1a0] sm:$0xf]
  %v99 = vld [vmem:[%s0 + $0x1a4] sm:$0xff]
  %v100 = vld [vmem:[%s0 + $0x1ac] sm:$0xff]
  %v101 = vld [vmem:[%s0 + $0x1b4] sm:$0xff]
  %v102 = vld [vmem:[%s0 + $0x1bc] sm:$0xf]
  %v103 = vld [vmem:[%s0 + $0x1c0] sm:$0xff]
  %v104 = vld [vmem:[%s0 + $0x1c8] sm:$0xff]
  %v105 = vld [vmem:[%s0 + $0x1d0] sm:$0xff]
  %v106 = vld [vmem:[%s0 + $0x1d8] sm:$0xf]
  %v107 = vld [vmem:[%s0 + $0x1dc] sm:$0xff]
  %v108 = vld [vmem:[%s0 + $0x1e4] sm:$0xff]
  %v109 = vld [vmem:[%s0 + $0x1ec] sm:$0xff]
  %v110 = vld [vmem:[%s0 + $0x1f4] sm:$0xf]
  %v111 = vld [vmem:[%s0 + $0x1f8] sm:$0xff]
  %v112 = vld [vmem:[%s0 + $0x200] sm:$0xff]
  %v113 = vld [vmem:[%s0 + $0x208] sm:$0xff]
  %v114 = vld [vmem:[%s0 + $0x210] sm:$0xf]
  %v115 = vld [vmem:[%s0 + $0x214] sm:$0xff]
  %v116 = vld [vmem:[%s0 + $0x21c] sm:$0xff]
  %v117 = vld [vmem:[%s0 + $0x224] sm:$0xff]
  %v118 = vld [vmem:[%s0 + $0x22c] sm:$0xf]
  %v119 = vld [vmem:[%s0 + $0x230] sm:$0xff]
  %v120 = vld [vmem:[%s0 + $0x238] sm:$0xff]
  %v121 = vld [vmem:[%s0 + $0x240] sm:$0xff]
  %v122 = vld [vmem:[%s0 + $0x248] sm:$0xf]
  %v123 = vld [vmem:[%s0 + $0x24c] sm:$0xff]
  %v124 = vld [vmem:[%s0 + $0x254] sm:$0xff]
  %v125 = vld [vmem:[%s0 + $0x25c] sm:$0xff]
  %v126 = vld [vmem:[%s0 + $0x264] sm:$0xf]
  %v127 = vld [vmem:[%s0 + $0x268] sm:$0xff]
  %v128 = vld [vmem:[%s0 + $0x270] sm:$0xff]
  %v129 = vld [vmem:[%s0 + $0x278] sm:$0xff]
  %v130 = vld [vmem:[%s0 + $0x280] sm:$0xf]
  %v131 = vld [vmem:[%s0 + $0x284] sm:$0xff]
  %v132 = vld [vmem:[%s0 + $0x28c] sm:$0xff]
  %v133 = vld [vmem:[%s0 + $0x294] sm:$0xff]
  %v134 = vld [vmem:[%s0 + $0x29c] sm:$0xf]
  %v135 = vld [vmem:[%s0 + $0x2a0] sm:$0xff]
  %v136 = vld [vmem:[%s0 + $0x2a8] sm:$0xff]
  %v137 = vld [vmem:[%s0 + $0x2b0] sm:$0xff]
  %v138 = vld [vmem:[%s0 + $0x2b8] sm:$0xf]
  %v139 = vld [vmem:[%s0 + $0x2bc] sm:$0xff]
  %v140 = vld [vmem:[%s0 + $0x2c4] sm:$0xff]
  %v141 = vld [vmem:[%s0 + $0x2cc] sm:$0xff]
  %v142 = vld [vmem:[%s0 + $0x2d4] sm:$0xf]
  %v143 = vld [vmem:[%s0 + $0x2d8] sm:$0xff]
  %v144 = vld [vmem:[%s0 + $0x2e0] sm:$0xff]
  %v145 = vld [vmem:[%s0 + $0x2e8] sm:$0xff]
  %v146 = vld [vmem:[%s0 + $0x2f0] sm:$0xf]
  %v147 = vld [vmem:[%s0 + $0x2f4] sm:$0xff]
  %v148 = vld [vmem:[%s0 + $0x2fc] sm:$0xff]
  %v149 = vld [vmem:[%s0 + $0x304] sm:$0xff]
  %v150 = vld [vmem:[%s0 + $0x30c] sm:$0xf]
  %v151 = vld [vmem:[%s0 + $0x310] sm:$0xff]
  %v152 = vld [vmem:[%s0 + $0x318] sm:$0xff]
  %v153 = vld [vmem:[%s0 + $0x320] sm:$0xff]
  %v154 = vld [vmem:[%s0 + $0x328] sm:$0xf]
  %v155 = vld [vmem:[%s0 + $0x32c] sm:$0xff]
  %v156 = vld [vmem:[%s0 + $0x334] sm:$0xff]
  %v157 = vld [vmem:[%s0 + $0x33c] sm:$0xff]
  %v158 = vld [vmem:[%s0 + $0x344] sm:$0xf]
  %v159 = vld [vmem:[%s0 + $0x348] sm:$0xff]
  %v160 = vld [vmem:[%s0 + $0x350] sm:$0xff]
  %v161 = vld [vmem:[%s0 + $0x358] sm:$0xff]
  %v162 = vld [vmem:[%s0 + $0x360] sm:$0xf]
  %v163 = vld [vmem:[%s0 + $0x364] sm:$0xff]
  %v164 = vld [vmem:[%s0 + $0x36c] sm:$0xff]
  %v165 = vld [vmem:[%s0 + $0x374] sm:$0xff]
  %v166 = vld [vmem:[%s0 + $0x37c] sm:$0xf]
  %v167 = vld [vmem:[%s1] sm:$0xff]
  %v168 = vld [vmem:[%s1 + $0x8] sm:$0xff]
  %v169 = vld [vmem:[%s1 + $0x10] sm:$0xff]
  %v170 = vld [vmem:[%s1 + $0x18] sm:$0xff]
  %v171 = vld [vmem:[%s1 + $0x20] sm:$0xff]
  %v172 = vld [vmem:[%s1 + $0x28] sm:$0xff]
  %v173 = vld [vmem:[%s1 + $0x30] sm:$0xff]
  %v174 = vld [vmem:[%s1 + $0x38] sm:$0xff]
  %v175 = vld [vmem:[%s1 + $0x40] sm:$0xff]
  %v176 = vld [vmem:[%s1 + $0x48] sm:$0xff]
  %v177 = vld [vmem:[%s1 + $0x50] sm:$0xff]
  %v178 = vld [vmem:[%s1 + $0x58] sm:$0xff]
  %v179 = vld [vmem:[%s1 + $0x60] sm:$0xff]
  %v180 = vld [vmem:[%s1 + $0x68] sm:$0xff]
  %v181 = vld [vmem:[%s1 + $0x70] sm:$0xff]
  %v182 = vld [vmem:[%s1 + $0x78] sm:$0xff]
  %v183 = vld [vmem:[%s1 + $0x80] sm:$0xff]
  %v184 = vld [vmem:[%s1 + $0x88] sm:$0xff]
  %v185 = vld [vmem:[%s1 + $0x90] sm:$0xff]
  %v186 = vld [vmem:[%s1 + $0x98] sm:$0xff]
  %v187 = vld [vmem:[%s1 + $0xa0] sm:$0xff]
  %v188 = vld [vmem:[%s1 + $0xa8] sm:$0xff]
  %v189 = vld [vmem:[%s1 + $0xb0] sm:$0xff]
  %v190 = vld [vmem:[%s1 + $0xb8] sm:$0xff]
  %v191 = vld [vmem:[%s1 + $0xc0] sm:$0xff]
  %v192 = vld [vmem:[%s1 + $0xc8] sm:$0xff]
  %v193 = vld [vmem:[%s1 + $0xd0] sm:$0xff]
  %v194 = vld [vmem:[%s1 + $0xd8] sm:$0xff]
  %v195 = vld [vmem:[%s1 + $0xe0] sm:$0xff]
  %v196 = vld [vmem:[%s1 + $0xe8] sm:$0xff]
  %v197 = vld [vmem:[%s1 + $0xf0] sm:$0xff]
  %v198 = vld [vmem:[%s1 + $0xf8] sm:$0xff]
  %v199 = vld [vmem:[%s1 + $0x100] sm:$0xff]
  %v200 = vld [vmem:[%s1 + $0x108] sm:$0xff]
  %v201 = vld [vmem:[%s1 + $0x110] sm:$0xff]
  %v202 = vld [vmem:[%s1 + $0x118] sm:$0xff]
  %v203 = vld [vmem:[%s1 + $0x120] sm:$0xff]
  %v204 = vld [vmem:[%s1 + $0x128] sm:$0xff]
  %v205 = vld [vmem:[%s1 + $0x130] sm:$0xff]
  %v206 = vld [vmem:[%s1 + $0x138] sm:$0xff]
  %v207 = vld [vmem:[%s1 + $0x140] sm:$0xff]
  %v208 = vld [vmem:[%s1 + $0x148] sm:$0xff]
  %v209 = vld [vmem:[%s1 + $0x150] sm:$0xff]
  %v210 = vld [vmem:[%s1 + $0x158] sm:$0xff]
  %v211 = vld [vmem:[%s1 + $0x160] sm:$0xff]
  %v212 = vld [vmem:[%s1 + $0x168] sm:$0xff]
  %v213 = vld [vmem:[%s1 + $0x170] sm:$0xff]
  %v214 = vld [vmem:[%s1 + $0x178] sm:$0xff]
  %v215 = vld [vmem:[%s1 + $0x180] sm:$0xff]
  %v216 = vld [vmem:[%s1 + $0x188] sm:$0xff]
  %v217 = vld [vmem:[%s1 + $0x190] sm:$0xff]
  %v218 = vld [vmem:[%s1 + $0x198] sm:$0xff]
  %v219 = vld [vmem:[%s1 + $0x1a0] sm:$0xff]
  %v220 = vld [vmem:[%s1 + $0x1a8] sm:$0xff]
  %v221 = vld [vmem:[%s1 + $0x1b0] sm:$0xff]
  %v222 = vld [vmem:[%s1 + $0x1b8] sm:$0xff]
  %v223 = vld [vmem:[%s1 + $0x1c0] sm:$0xff]
  %v224 = vld [vmem:[%s1 + $0x1c8] sm:$0xff]
  %v225 = vld [vmem:[%s1 + $0x1d0] sm:$0xff]
  %v226 = vld [vmem:[%s1 + $0x1d8] sm:$0xff]
  %v227 = vld [vmem:[%s1 + $0x1e0] sm:$0xff]
  %v228 = vld [vmem:[%s1 + $0x1e8] sm:$0xff]
  %v229 = vld [vmem:[%s1 + $0x1f0] sm:$0xff]
  %v230 = vld [vmem:[%s1 + $0x1f8] sm:$0xff]
  %v231 = vld [vmem:[%s1 + $0x200] sm:$0xff]
  %v232 = vld [vmem:[%s1 + $0x208] sm:$0xff]
  %v233 = vld [vmem:[%s1 + $0x210] sm:$0xff]
  %v234 = vld [vmem:[%s1 + $0x218] sm:$0xff]
  %v235 = vld [vmem:[%s1 + $0x220] sm:$0xff]
  %v236 = vld [vmem:[%s1 + $0x228] sm:$0xff]
  %v237 = vld [vmem:[%s1 + $0x230] sm:$0xff]
  %v238 = vld [vmem:[%s1 + $0x238] sm:$0xff]
  %v239 = vld [vmem:[%s1 + $0x240] sm:$0xff]
  %v240 = vld [vmem:[%s1 + $0x248] sm:$0xff]
  %v241 = vld [vmem:[%s1 + $0x250] sm:$0xff]
  %v242 = vld [vmem:[%s1 + $0x258] sm:$0xff]
  %v243 = vld [vmem:[%s1 + $0x260] sm:$0xff]
  %v244 = vld [vmem:[%s1 + $0x268] sm:$0xff]
  %v245 = vld [vmem:[%s1 + $0x270] sm:$0xff]
  %v246 = vld [vmem:[%s1 + $0x278] sm:$0xff]
  %v247 = vld [vmem:[%s1 + $0x280] sm:$0xff]
  %v248 = vld [vmem:[%s1 + $0x288] sm:$0xff]
  %v249 = vld [vmem:[%s1 + $0x290] sm:$0xff]
  %v250 = vld [vmem:[%s1 + $0x298] sm:$0xff]
  %v251 = vld [vmem:[%s1 + $0x2a0] sm:$0xff]
  %v252 = vld [vmem:[%s1 + $0x2a8] sm:$0xff]
  %v253 = vld [vmem:[%s1 + $0x2b0] sm:$0xff]
  %v254 = vld [vmem:[%s1 + $0x2b8] sm:$0xff]
  %v255 = vld [vmem:[%s1 + $0x2c0] sm:$0xff]
  %v256 = vld [vmem:[%s1 + $0x2c8] sm:$0xff]
  %v257 = vld [vmem:[%s1 + $0x2d0] sm:$0xff]
  %v258 = vld [vmem:[%s1 + $0x2d8] sm:$0xff]
  %v259 = vld [vmem:[%s1 + $0x2e0] sm:$0xff]
  %v260 = vld [vmem:[%s1 + $0x2e8] sm:$0xff]
  %v261 = vld [vmem:[%s1 + $0x2f0] sm:$0xff]
  %v262 = vld [vmem:[%s1 + $0x2f8] sm:$0xff]
  %v263 = vld [vmem:[%s1 + $0x300] sm:$0xff]
  %v264 = vld [vmem:[%s1 + $0x308] sm:$0xff]
  %v265 = vld [vmem:[%s1 + $0x310] sm:$0xff]
  %v266 = vld [vmem:[%s1 + $0x318] sm:$0xff]
  %v267 = vld [vmem:[%s1 + $0x320] sm:$0xff]
  %v268 = vld [vmem:[%s1 + $0x328] sm:$0xff]
  %v269 = vld [vmem:[%s1 + $0x330] sm:$0xff]
  %v270 = vld [vmem:[%s1 + $0x338] sm:$0xff]
  %v271 = vld [vmem:[%s1 + $0x340] sm:$0xff]
  %v272 = vld [vmem:[%s1 + $0x348] sm:$0xff]
  %v273 = vld [vmem:[%s1 + $0x350] sm:$0xff]
  %v274 = vld [vmem:[%s1 + $0x358] sm:$0xff]
  %v275 = vld [vmem:[%s1 + $0x360] sm:$0xff]
  %v276 = vld [vmem:[%s1 + $0x368] sm:$0xff]
  %v277 = vld [vmem:[%s1 + $0x370] sm:$0xff]
  %v278 = vld [vmem:[%s1 + $0x378] sm:$0xff]
  %v279 = vld [vmem:[%s1 + $0x380] sm:$0xff]
  %v280 = vld [vmem:[%s1 + $0x388] sm:$0xff]
  %v281 = vld [vmem:[%s1 + $0x390] sm:$0xff]
  %v282 = vld [vmem:[%s1 + $0x398] sm:$0xff]
  %v283 = vld [vmem:[%s1 + $0x3a0] sm:$0xff]
  %v284 = vld [vmem:[%s1 + $0x3a8] sm:$0xff]
  %v285 = vld [vmem:[%s1 + $0x3b0] sm:$0xff]
  %v286 = vld [vmem:[%s1 + $0x3b8] sm:$0xff]
  %v287 = vld [vmem:[%s1 + $0x3c0] sm:$0xff]
  %v288 = vld [vmem:[%s1 + $0x3c8] sm:$0xff]
  %v289 = vld [vmem:[%s1 + $0x3d0] sm:$0xff]
  %v290 = vld [vmem:[%s1 + $0x3d8] sm:$0xff]
  %v291 = vld [vmem:[%s1 + $0x3e0] sm:$0xff]
  %v292 = vld [vmem:[%s1 + $0x3e8] sm:$0xff]
  %v293 = vld [vmem:[%s1 + $0x3f0] sm:$0xff]
  %v294 = vld [vmem:[%s1 + $0x3f8] sm:$0xff]
  %v295 = vld [vmem:[%s1 + $0x400] sm:$0xff]
  %v296 = vld [vmem:[%s1 + $0x408] sm:$0xff]
  %v297 = vld [vmem:[%s1 + $0x410] sm:$0xff]
  %v298 = vld [vmem:[%s1 + $0x418] sm:$0xff]
  %v299 = vld [vmem:[%s1 + $0x420] sm:$0xff]
  %v300 = vld [vmem:[%s1 + $0x428] sm:$0xff]
  %v301 = vld [vmem:[%s1 + $0x430] sm:$0xff]
  %v302 = vld [vmem:[%s1 + $0x438] sm:$0xff]
  %v303 = vld [vmem:[%s1 + $0x440] sm:$0xff]
  %v304 = vld [vmem:[%s1 + $0x448] sm:$0xff]
  %v305 = vld [vmem:[%s1 + $0x450] sm:$0xff]
  %v306 = vld [vmem:[%s1 + $0x458] sm:$0xff]
  %v307 = vld [vmem:[%s1 + $0x460] sm:$0xff]
  %v308 = vld [vmem:[%s1 + $0x468] sm:$0xff]
  %v309 = vld [vmem:[%s1 + $0x470] sm:$0xff]
  %v310 = vld [vmem:[%s1 + $0x478] sm:$0xff]
  %v311 = vld [vmem:[%s1 + $0x480] sm:$0xff]
  %v312 = vld [vmem:[%s1 + $0x488] sm:$0xff]
  %v313 = vld [vmem:[%s1 + $0x490] sm:$0xff]
  %v314 = vld [vmem:[%s1 + $0x498] sm:$0xff]
  %v315 = vld [vmem:[%s1 + $0x4a0] sm:$0xff]
  %v316 = vld [vmem:[%s1 + $0x4a8] sm:$0xff]
  %v317 = vld [vmem:[%s1 + $0x4b0] sm:$0xff]
  %v318 = vld [vmem:[%s1 + $0x4b8] sm:$0xff]
  %v319 = vld [vmem:[%s1 + $0x4c0] sm:$0xff]
  %v320 = vld [vmem:[%s1 + $0x4c8] sm:$0xff]
  %v321 = vld [vmem:[%s1 + $0x4d0] sm:$0xff]
  %v322 = vld [vmem:[%s1 + $0x4d8] sm:$0xff]
  %v323 = vld [vmem:[%s1 + $0x4e0] sm:$0xff]
  %v324 = vld [vmem:[%s1 + $0x4e8] sm:$0xff]
  %v325 = vld [vmem:[%s1 + $0x4f0] sm:$0xff]
  %v326 = vld [vmem:[%s1 + $0x4f8] sm:$0xff]
  %v327 = vld [vmem:[%s1 + $0x500] sm:$0xff]
  %v328 = vld [vmem:[%s1 + $0x508] sm:$0xff]
  %v329 = vld [vmem:[%s1 + $0x510] sm:$0xff]
  %v330 = vld [vmem:[%s1 + $0x518] sm:$0xff]
  %v331 = vld [vmem:[%s1 + $0x520] sm:$0xff]
  %v332 = vld [vmem:[%s1 + $0x528] sm:$0xff]
  %v333 = vld [vmem:[%s1 + $0x530] sm:$0xff]
  %v334 = vld [vmem:[%s1 + $0x538] sm:$0xff]
  %v335 = vld [vmem:[%s1 + $0x540] sm:$0xff]
  %v336 = vld [vmem:[%s1 + $0x548] sm:$0xff]
  %v337 = vld [vmem:[%s1 + $0x550] sm:$0xff]
  %v338 = vld [vmem:[%s1 + $0x558] sm:$0xff]
  %v339 = vld [vmem:[%s1 + $0x560] sm:$0xff]
  %v340 = vld [vmem:[%s1 + $0x568] sm:$0xff]
  %v341 = vld [vmem:[%s1 + $0x570] sm:$0xff]
  %v342 = vld [vmem:[%s1 + $0x578] sm:$0xff]
  %v343 = vld [vmem:[%s1 + $0x580] sm:$0xff]
  %v344 = vld [vmem:[%s1 + $0x588] sm:$0xff]
  %v345 = vld [vmem:[%s1 + $0x590] sm:$0xff]
  %v346 = vld [vmem:[%s1 + $0x598] sm:$0xff]
  %v347 = vld [vmem:[%s1 + $0x5a0] sm:$0xff]
  %v348 = vld [vmem:[%s1 + $0x5a8] sm:$0xff]
  %v349 = vld [vmem:[%s1 + $0x5b0] sm:$0xff]
  %v350 = vld [vmem:[%s1 + $0x5b8] sm:$0xff]
  %v351 = vld [vmem:[%s1 + $0x5c0] sm:$0xff]
  %v352 = vld [vmem:[%s1 + $0x5c8] sm:$0xff]
  %v353 = vld [vmem:[%s1 + $0x5d0] sm:$0xff]
  %v354 = vld [vmem:[%s1 + $0x5d8] sm:$0xff]
  %v355 = vld [vmem:[%s1 + $0x5e0] sm:$0xff]
  %v356 = vld [vmem:[%s1 + $0x5e8] sm:$0xff]
  %v357 = vld [vmem:[%s1 + $0x5f0] sm:$0xff]
  %v358 = vld [vmem:[%s1 + $0x5f8] sm:$0xff]
  %v359 = vld [vmem:[%s1 + $0x600] sm:$0xff]
  %v360 = vld [vmem:[%s1 + $0x608] sm:$0xff]
  %v361 = vld [vmem:[%s1 + $0x610] sm:$0xff]
  %v362 = vld [vmem:[%s1 + $0x618] sm:$0xff]
  %v363 = vld [vmem:[%s1 + $0x620] sm:$0xff]
  %v364 = vld [vmem:[%s1 + $0x628] sm:$0xff]
  %v365 = vld [vmem:[%s1 + $0x630] sm:$0xff]
  %v366 = vld [vmem:[%s1 + $0x638] sm:$0xff]
  %v367 = vld [vmem:[%s1 + $0x640] sm:$0xff]
  %v368 = vld [vmem:[%s1 + $0x648] sm:$0xff]
  %v369 = vld [vmem:[%s1 + $0x650] sm:$0xff]
  %v370 = vld [vmem:[%s1 + $0x658] sm:$0xff]
  %v371 = vld [vmem:[%s1 + $0x660] sm:$0xff]
  %v372 = vld [vmem:[%s1 + $0x668] sm:$0xff]
  %v373 = vld [vmem:[%s1 + $0x670] sm:$0xff]
  %v374 = vld [vmem:[%s1 + $0x678] sm:$0xff]
  %v375 = vld [vmem:[%s1 + $0x680] sm:$0xff]
  %v376 = vld [vmem:[%s1 + $0x688] sm:$0xff]
  %v377 = vld [vmem:[%s1 + $0x690] sm:$0xff]
  %v378 = vld [vmem:[%s1 + $0x698] sm:$0xff]
  %v379 = vld [vmem:[%s1 + $0x6a0] sm:$0xff]
  %v380 = vld [vmem:[%s1 + $0x6a8] sm:$0xff]
  %v381 = vld [vmem:[%s1 + $0x6b0] sm:$0xff]
  %v382 = vld [vmem:[%s1 + $0x6b8] sm:$0xff]
  %v383 = vld [vmem:[%s1 + $0x6c0] sm:$0xff]
  %v384 = vld [vmem:[%s1 + $0x6c8] sm:$0xff]
  %v385 = vld [vmem:[%s1 + $0x6d0] sm:$0xff]
  %v386 = vld [vmem:[%s1 + $0x6d8] sm:$0xff]
  %v387 = vld [vmem:[%s1 + $0x6e0] sm:$0xff]
  %v388 = vld [vmem:[%s1 + $0x6e8] sm:$0xff]
  %v389 = vld [vmem:[%s1 + $0x6f0] sm:$0xff]
  %v390 = vld [vmem:[%s1 + $0x6f8] sm:$0xff]
  %v391 = vld [vmem:[%s2] sm:$0xf]
  %v393 = vlaneseq
  %v394 = vshrl.u32 %v393, 7
  %v395 = vsub.s32 0, %v394
  %v396 = vrot.slane %v391, %v395
  %v397 = vlaneseq
  %v398 = vshrl.u32 %v397, 7
  %v399 = vsub.s32 1, %v398
  %v400 = vrot.slane %v391, %v399
  %v401 = vlaneseq
  %v402 = vshrl.u32 %v401, 7
  %v403 = vsub.s32 2, %v402
  %v404 = vrot.slane %v391, %v403
  %v405 = vlaneseq
  %v406 = vshrl.u32 %v405, 7
  %v407 = vsub.s32 3, %v406
  %v408 = vrot.slane %v391, %v407
  %v541 = vunpack.c.l.b16 %v39
  %v542 = vunpack.c.h.b16 %v39
  %v543 = vunpack.c.l.b16 %v40
  %v544 = vunpack.c.h.b16 %v40
  %v545 = vunpack.c.l.b16 %v41
  %v546 = vunpack.c.h.b16 %v41
  %v547 = vunpack.c.l.b16 %v42
  %v548 = vunpack.c.l.b16 %v43
  %v549 = vunpack.c.h.b16 %v43
  %v550 = vunpack.c.l.b16 %v44
  %v551 = vunpack.c.h.b16 %v44
  %v552 = vunpack.c.l.b16 %v45
  %v553 = vunpack.c.h.b16 %v45
  %v554 = vunpack.c.l.b16 %v46
  %v555 = vunpack.c.l.b16 %v47
  %v556 = vunpack.c.h.b16 %v47
  %v557 = vunpack.c.l.b16 %v48
  %v558 = vunpack.c.h.b16 %v48
  %v559 = vunpack.c.l.b16 %v49
  %v560 = vunpack.c.h.b16 %v49
  %v561 = vunpack.c.l.b16 %v50
  %v562 = vunpack.c.l.b16 %v51
  %v563 = vunpack.c.h.b16 %v51
  %v564 = vunpack.c.l.b16 %v52
  %v565 = vunpack.c.h.b16 %v52
  %v566 = vunpack.c.l.b16 %v53
  %v567 = vunpack.c.h.b16 %v53
  %v568 = vunpack.c.l.b16 %v54
  %v569 = vunpack.c.l.b16 %v55
  %v570 = vunpack.c.h.b16 %v55
  %v571 = vunpack.c.l.b16 %v56
  %v572 = vunpack.c.h.b16 %v56
  %v573 = vunpack.c.l.b16 %v57
  %v574 = vunpack.c.h.b16 %v57
  %v575 = vunpack.c.l.b16 %v58
  %v576 = vunpack.c.l.b16 %v59
  %v577 = vunpack.c.h.b16 %v59
  %v578 = vunpack.c.l.b16 %v60
  %v579 = vunpack.c.h.b16 %v60
  %v580 = vunpack.c.l.b16 %v61
  %v581 = vunpack.c.h.b16 %v61
  %v582 = vunpack.c.l.b16 %v62
  %v583 = vunpack.c.l.b16 %v63
  %v584 = vunpack.c.h.b16 %v63
  %v585 = vunpack.c.l.b16 %v64
  %v586 = vunpack.c.h.b16 %v64
  %v587 = vunpack.c.l.b16 %v65
  %v588 = vunpack.c.h.b16 %v65
  %v589 = vunpack.c.l.b16 %v66
  %v590 = vunpack.c.l.b16 %v67
  %v591 = vunpack.c.h.b16 %v67
  %v592 = vunpack.c.l.b16 %v68
  %v593 = vunpack.c.h.b16 %v68
  %v594 = vunpack.c.l.b16 %v69
  %v595 = vunpack.c.h.b16 %v69
  %v596 = vunpack.c.l.b16 %v70
  %v597 = vunpack.c.l.b16 %v71
  %v598 = vunpack.c.h.b16 %v71
  %v599 = vunpack.c.l.b16 %v72
  %v600 = vunpack.c.h.b16 %v72
  %v601 = vunpack.c.l.b16 %v73
  %v602 = vunpack.c.h.b16 %v73
  %v603 = vunpack.c.l.b16 %v74
  %v604 = vunpack.c.l.b16 %v75
  %v605 = vunpack.c.h.b16 %v75
  %v606 = vunpack.c.l.b16 %v76
  %v607 = vunpack.c.h.b16 %v76
  %v608 = vunpack.c.l.b16 %v77
  %v609 = vunpack.c.h.b16 %v77
  %v610 = vunpack.c.l.b16 %v78
  %v611 = vunpack.c.l.b16 %v79
  %v612 = vunpack.c.h.b16 %v79
  %v613 = vunpack.c.l.b16 %v80
  %v614 = vunpack.c.h.b16 %v80
  %v615 = vunpack.c.l.b16 %v81
  %v616 = vunpack.c.h.b16 %v81
  %v617 = vunpack.c.l.b16 %v82
  %v618 = vunpack.c.l.b16 %v83
  %v619 = vunpack.c.h.b16 %v83
  %v620 = vunpack.c.l.b16 %v84
  %v621 = vunpack.c.h.b16 %v84
  %v622 = vunpack.c.l.b16 %v85
  %v623 = vunpack.c.h.b16 %v85
  %v624 = vunpack.c.l.b16 %v86
  %v625 = vunpack.c.l.b16 %v87
  %v626 = vunpack.c.h.b16 %v87
  %v627 = vunpack.c.l.b16 %v88
  %v628 = vunpack.c.h.b16 %v88
  %v629 = vunpack.c.l.b16 %v89
  %v630 = vunpack.c.h.b16 %v89
  %v631 = vunpack.c.l.b16 %v90
  %v632 = vunpack.c.l.b16 %v91
  %v633 = vunpack.c.h.b16 %v91
  %v634 = vunpack.c.l.b16 %v92
  %v635 = vunpack.c.h.b16 %v92
  %v636 = vunpack.c.l.b16 %v93
  %v637 = vunpack.c.h.b16 %v93
  %v638 = vunpack.c.l.b16 %v94
  %v639 = vunpack.c.l.b16 %v95
  %v640 = vunpack.c.h.b16 %v95
  %v641 = vunpack.c.l.b16 %v96
  %v642 = vunpack.c.h.b16 %v96
  %v643 = vunpack.c.l.b16 %v97
  %v644 = vunpack.c.h.b16 %v97
  %v645 = vunpack.c.l.b16 %v98
  %v646 = vunpack.c.l.b16 %v99
  %v647 = vunpack.c.h.b16 %v99
  %v648 = vunpack.c.l.b16 %v100
  %v649 = vunpack.c.h.b16 %v100
  %v650 = vunpack.c.l.b16 %v101
  %v651 = vunpack.c.h.b16 %v101
  %v652 = vunpack.c.l.b16 %v102
  %v653 = vunpack.c.l.b16 %v103
  %v654 = vunpack.c.h.b16 %v103
  %v655 = vunpack.c.l.b16 %v104
  %v656 = vunpack.c.h.b16 %v104
  %v657 = vunpack.c.l.b16 %v105
  %v658 = vunpack.c.h.b16 %v105
  %v659 = vunpack.c.l.b16 %v106
  %v660 = vunpack.c.l.b16 %v107
  %v661 = vunpack.c.h.b16 %v107
  %v662 = vunpack.c.l.b16 %v108
  %v663 = vunpack.c.h.b16 %v108
  %v664 = vunpack.c.l.b16 %v109
  %v665 = vunpack.c.h.b16 %v109
  %v666 = vunpack.c.l.b16 %v110
  %v667 = vunpack.c.l.b16 %v111
  %v668 = vunpack.c.h.b16 %v111
  %v669 = vunpack.c.l.b16 %v112
  %v670 = vunpack.c.h.b16 %v112
  %v671 = vunpack.c.l.b16 %v113
  %v672 = vunpack.c.h.b16 %v113
  %v673 = vunpack.c.l.b16 %v114
  %v674 = vunpack.c.l.b16 %v115
  %v675 = vunpack.c.h.b16 %v115
  %v676 = vunpack.c.l.b16 %v116
  %v677 = vunpack.c.h.b16 %v116
  %v678 = vunpack.c.l.b16 %v117
  %v679 = vunpack.c.h.b16 %v117
  %v680 = vunpack.c.l.b16 %v118
  %v681 = vunpack.c.l.b16 %v119
  %v682 = vunpack.c.h.b16 %v119
  %v683 = vunpack.c.l.b16 %v120
  %v684 = vunpack.c.h.b16 %v120
  %v685 = vunpack.c.l.b16 %v121
  %v686 = vunpack.c.h.b16 %v121
  %v687 = vunpack.c.l.b16 %v122
  %v688 = vunpack.c.l.b16 %v123
  %v689 = vunpack.c.h.b16 %v123
  %v690 = vunpack.c.l.b16 %v124
  %v691 = vunpack.c.h.b16 %v124
  %v692 = vunpack.c.l.b16 %v125
  %v693 = vunpack.c.h.b16 %v125
  %v694 = vunpack.c.l.b16 %v126
  %v695 = vunpack.c.l.b16 %v127
  %v696 = vunpack.c.h.b16 %v127
  %v697 = vunpack.c.l.b16 %v128
  %v698 = vunpack.c.h.b16 %v128
  %v699 = vunpack.c.l.b16 %v129
  %v700 = vunpack.c.h.b16 %v129
  %v701 = vunpack.c.l.b16 %v130
  %v702 = vunpack.c.l.b16 %v131
  %v703 = vunpack.c.h.b16 %v131
  %v704 = vunpack.c.l.b16 %v132
  %v705 = vunpack.c.h.b16 %v132
  %v706 = vunpack.c.l.b16 %v133
  %v707 = vunpack.c.h.b16 %v133
  %v708 = vunpack.c.l.b16 %v134
  %v709 = vunpack.c.l.b16 %v135
  %v710 = vunpack.c.h.b16 %v135
  %v711 = vunpack.c.l.b16 %v136
  %v712 = vunpack.c.h.b16 %v136
  %v713 = vunpack.c.l.b16 %v137
  %v714 = vunpack.c.h.b16 %v137
  %v715 = vunpack.c.l.b16 %v138
  %v716 = vunpack.c.l.b16 %v139
  %v717 = vunpack.c.h.b16 %v139
  %v718 = vunpack.c.l.b16 %v140
  %v719 = vunpack.c.h.b16 %v140
  %v720 = vunpack.c.l.b16 %v141
  %v721 = vunpack.c.h.b16 %v141
  %v722 = vunpack.c.l.b16 %v142
  %v723 = vunpack.c.l.b16 %v143
  %v724 = vunpack.c.h.b16 %v143
  %v725 = vunpack.c.l.b16 %v144
  %v726 = vunpack.c.h.b16 %v144
  %v727 = vunpack.c.l.b16 %v145
  %v728 = vunpack.c.h.b16 %v145
  %v729 = vunpack.c.l.b16 %v146
  %v730 = vunpack.c.l.b16 %v147
  %v731 = vunpack.c.h.b16 %v147
  %v732 = vunpack.c.l.b16 %v148
  %v733 = vunpack.c.h.b16 %v148
  %v734 = vunpack.c.l.b16 %v149
  %v735 = vunpack.c.h.b16 %v149
  %v736 = vunpack.c.l.b16 %v150
  %v737 = vunpack.c.l.b16 %v151
  %v738 = vunpack.c.h.b16 %v151
  %v739 = vunpack.c.l.b16 %v152
  %v740 = vunpack.c.h.b16 %v152
  %v741 = vunpack.c.l.b16 %v153
  %v742 = vunpack.c.h.b16 %v153
  %v743 = vunpack.c.l.b16 %v154
  %v744 = vunpack.c.l.b16 %v155
  %v745 = vunpack.c.h.b16 %v155
  %v746 = vunpack.c.l.b16 %v156
  %v747 = vunpack.c.h.b16 %v156
  %v748 = vunpack.c.l.b16 %v157
  %v749 = vunpack.c.h.b16 %v157
  %v750 = vunpack.c.l.b16 %v158
  %v751 = vunpack.c.l.b16 %v159
  %v752 = vunpack.c.h.b16 %v159
  %v753 = vunpack.c.l.b16 %v160
  %v754 = vunpack.c.h.b16 %v160
  %v755 = vunpack.c.l.b16 %v161
  %v756 = vunpack.c.h.b16 %v161
  %v757 = vunpack.c.l.b16 %v162
  %v758 = vunpack.c.l.b16 %v163
  %v759 = vunpack.c.h.b16 %v163
  %v760 = vunpack.c.l.b16 %v164
  %v761 = vunpack.c.h.b16 %v164
  %v762 = vunpack.c.l.b16 %v165
  %v763 = vunpack.c.h.b16 %v165
  %v764 = vunpack.c.l.b16 %v166
  %v765 = vpack.c.b16 %v548, %v541
  %v766 = vpack.c.b16 %v549, %v542
  %v767 = vpack.c.b16 %v550, %v543
  %v768 = vpack.c.b16 %v551, %v544
  %v769 = vpack.c.b16 %v552, %v545
  %v770 = vpack.c.b16 %v553, %v546
  %v771 = vpack.c.b16 %v554, %v547
  %v772 = vpack.c.b16 %v562, %v555
  %v773 = vpack.c.b16 %v563, %v556
  %v774 = vpack.c.b16 %v564, %v557
  %v775 = vpack.c.b16 %v565, %v558
  %v776 = vpack.c.b16 %v566, %v559
  %v777 = vpack.c.b16 %v567, %v560
  %v778 = vpack.c.b16 %v568, %v561
  %v779 = vpack.c.b16 %v576, %v569
  %v780 = vpack.c.b16 %v577, %v570
  %v781 = vpack.c.b16 %v578, %v571
  %v782 = vpack.c.b16 %v579, %v572
  %v783 = vpack.c.b16 %v580, %v573
  %v784 = vpack.c.b16 %v581, %v574
  %v785 = vpack.c.b16 %v582, %v575
  %v786 = vpack.c.b16 %v590, %v583
  %v787 = vpack.c.b16 %v591, %v584
  %v788 = vpack.c.b16 %v592, %v585
  %v789 = vpack.c.b16 %v593, %v586
  %v790 = vpack.c.b16 %v594, %v587
  %v791 = vpack.c.b16 %v595, %v588
  %v792 = vpack.c.b16 %v596, %v589
  %v793 = vpack.c.b16 %v604, %v597
  %v794 = vpack.c.b16 %v605, %v598
  %v795 = vpack.c.b16 %v606, %v599
  %v796 = vpack.c.b16 %v607, %v600
  %v797 = vpack.c.b16 %v608, %v601
  %v798 = vpack.c.b16 %v609, %v602
  %v799 = vpack.c.b16 %v610, %v603
  %v800 = vpack.c.b16 %v618, %v611
  %v801 = vpack.c.b16 %v619, %v612
  %v802 = vpack.c.b16 %v620, %v613
  %v803 = vpack.c.b16 %v621, %v614
  %v804 = vpack.c.b16 %v622, %v615
  %v805 = vpack.c.b16 %v623, %v616
  %v806 = vpack.c.b16 %v624, %v617
  %v807 = vpack.c.b16 %v632, %v625
  %v808 = vpack.c.b16 %v633, %v626
  %v809 = vpack.c.b16 %v634, %v627
  %v810 = vpack.c.b16 %v635, %v628
  %v811 = vpack.c.b16 %v636, %v629
  %v812 = vpack.c.b16 %v637, %v630
  %v813 = vpack.c.b16 %v638, %v631
  %v814 = vpack.c.b16 %v646, %v639
  %v815 = vpack.c.b16 %v647, %v640
  %v816 = vpack.c.b16 %v648, %v641
  %v817 = vpack.c.b16 %v649, %v642
  %v818 = vpack.c.b16 %v650, %v643
  %v819 = vpack.c.b16 %v651, %v644
  %v820 = vpack.c.b16 %v652, %v645
  %v821 = vpack.c.b16 %v660, %v653
  %v822 = vpack.c.b16 %v661, %v654
  %v823 = vpack.c.b16 %v662, %v655
  %v824 = vpack.c.b16 %v663, %v656
  %v825 = vpack.c.b16 %v664, %v657
  %v826 = vpack.c.b16 %v665, %v658
  %v827 = vpack.c.b16 %v666, %v659
  %v828 = vpack.c.b16 %v674, %v667
  %v829 = vpack.c.b16 %v675, %v668
  %v830 = vpack.c.b16 %v676, %v669
  %v831 = vpack.c.b16 %v677, %v670
  %v832 = vpack.c.b16 %v678, %v671
  %v833 = vpack.c.b16 %v679, %v672
  %v834 = vpack.c.b16 %v680, %v673
  %v835 = vpack.c.b16 %v688, %v681
  %v836 = vpack.c.b16 %v689, %v682
  %v837 = vpack.c.b16 %v690, %v683
  %v838 = vpack.c.b16 %v691, %v684
  %v839 = vpack.c.b16 %v692, %v685
  %v840 = vpack.c.b16 %v693, %v686
  %v841 = vpack.c.b16 %v694, %v687
  %v842 = vpack.c.b16 %v702, %v695
  %v843 = vpack.c.b16 %v703, %v696
  %v844 = vpack.c.b16 %v704, %v697
  %v845 = vpack.c.b16 %v705, %v698
  %v846 = vpack.c.b16 %v706, %v699
  %v847 = vpack.c.b16 %v707, %v700
  %v848 = vpack.c.b16 %v708, %v701
  %v849 = vpack.c.b16 %v716, %v709
  %v850 = vpack.c.b16 %v717, %v710
  %v851 = vpack.c.b16 %v718, %v711
  %v852 = vpack.c.b16 %v719, %v712
  %v853 = vpack.c.b16 %v720, %v713
  %v854 = vpack.c.b16 %v721, %v714
  %v855 = vpack.c.b16 %v722, %v715
  %v856 = vpack.c.b16 %v730, %v723
  %v857 = vpack.c.b16 %v731, %v724
  %v858 = vpack.c.b16 %v732, %v725
  %v859 = vpack.c.b16 %v733, %v726
  %v860 = vpack.c.b16 %v734, %v727
  %v861 = vpack.c.b16 %v735, %v728
  %v862 = vpack.c.b16 %v736, %v729
  %v863 = vpack.c.b16 %v744, %v737
  %v864 = vpack.c.b16 %v745, %v738
  %v865 = vpack.c.b16 %v746, %v739
  %v866 = vpack.c.b16 %v747, %v740
  %v867 = vpack.c.b16 %v748, %v741
  %v868 = vpack.c.b16 %v749, %v742
  %v869 = vpack.c.b16 %v750, %v743
  %v870 = vpack.c.b16 %v758, %v751
  %v871 = vpack.c.b16 %v759, %v752
  %v872 = vpack.c.b16 %v760, %v753
  %v873 = vpack.c.b16 %v761, %v754
  %v874 = vpack.c.b16 %v762, %v755
  %v875 = vpack.c.b16 %v763, %v756
  %v876 = vpack.c.b16 %v764, %v757
  %v1213 = vunpack.c.l.b16 %v167
  %v1214 = vunpack.c.h.b16 %v167
  %v1215 = vunpack.c.l.b16 %v168
  %v1216 = vunpack.c.h.b16 %v168
  %v1217 = vunpack.c.l.b16 %v169
  %v1218 = vunpack.c.h.b16 %v169
  %v1219 = vunpack.c.l.b16 %v170
  %v1220 = vunpack.c.h.b16 %v170
  %v1221 = vunpack.c.l.b16 %v171
  %v1222 = vunpack.c.h.b16 %v171
  %v1223 = vunpack.c.l.b16 %v172
  %v1224 = vunpack.c.h.b16 %v172
  %v1225 = vunpack.c.l.b16 %v173
  %v1226 = vunpack.c.h.b16 %v173
  %v1227 = vunpack.c.l.b16 %v174
  %v1228 = vunpack.c.h.b16 %v174
  %v1229 = vunpack.c.l.b16 %v175
  %v1230 = vunpack.c.h.b16 %v175
  %v1231 = vunpack.c.l.b16 %v176
  %v1232 = vunpack.c.h.b16 %v176
  %v1233 = vunpack.c.l.b16 %v177
  %v1234 = vunpack.c.h.b16 %v177
  %v1235 = vunpack.c.l.b16 %v178
  %v1236 = vunpack.c.h.b16 %v178
  %v1237 = vunpack.c.l.b16 %v179
  %v1238 = vunpack.c.h.b16 %v179
  %v1239 = vunpack.c.l.b16 %v180
  %v1240 = vunpack.c.h.b16 %v180
  %v1241 = vunpack.c.l.b16 %v181
  %v1242 = vunpack.c.h.b16 %v181
  %v1243 = vunpack.c.l.b16 %v182
  %v1244 = vunpack.c.h.b16 %v182
  %v1245 = vunpack.c.l.b16 %v183
  %v1246 = vunpack.c.h.b16 %v183
  %v1247 = vunpack.c.l.b16 %v184
  %v1248 = vunpack.c.h.b16 %v184
  %v1249 = vunpack.c.l.b16 %v185
  %v1250 = vunpack.c.h.b16 %v185
  %v1251 = vunpack.c.l.b16 %v186
  %v1252 = vunpack.c.h.b16 %v186
  %v1253 = vunpack.c.l.b16 %v187
  %v1254 = vunpack.c.h.b16 %v187
  %v1255 = vunpack.c.l.b16 %v188
  %v1256 = vunpack.c.h.b16 %v188
  %v1257 = vunpack.c.l.b16 %v189
  %v1258 = vunpack.c.h.b16 %v189
  %v1259 = vunpack.c.l.b16 %v190
  %v1260 = vunpack.c.h.b16 %v190
  %v1261 = vunpack.c.l.b16 %v191
  %v1262 = vunpack.c.h.b16 %v191
  %v1263 = vunpack.c.l.b16 %v192
  %v1264 = vunpack.c.h.b16 %v192
  %v1265 = vunpack.c.l.b16 %v193
  %v1266 = vunpack.c.h.b16 %v193
  %v1267 = vunpack.c.l.b16 %v194
  %v1268 = vunpack.c.h.b16 %v194
  %v1269 = vunpack.c.l.b16 %v195
  %v1270 = vunpack.c.h.b16 %v195
  %v1271 = vunpack.c.l.b16 %v196
  %v1272 = vunpack.c.h.b16 %v196
  %v1273 = vunpack.c.l.b16 %v197
  %v1274 = vunpack.c.h.b16 %v197
  %v1275 = vunpack.c.l.b16 %v198
  %v1276 = vunpack.c.h.b16 %v198
  %v1277 = vunpack.c.l.b16 %v199
  %v1278 = vunpack.c.h.b16 %v199
  %v1279 = vunpack.c.l.b16 %v200
  %v1280 = vunpack.c.h.b16 %v200
  %v1281 = vunpack.c.l.b16 %v201
  %v1282 = vunpack.c.h.b16 %v201
  %v1283 = vunpack.c.l.b16 %v202
  %v1284 = vunpack.c.h.b16 %v202
  %v1285 = vunpack.c.l.b16 %v203
  %v1286 = vunpack.c.h.b16 %v203
  %v1287 = vunpack.c.l.b16 %v204
  %v1288 = vunpack.c.h.b16 %v204
  %v1289 = vunpack.c.l.b16 %v205
  %v1290 = vunpack.c.h.b16 %v205
  %v1291 = vunpack.c.l.b16 %v206
  %v1292 = vunpack.c.h.b16 %v206
  %v1293 = vunpack.c.l.b16 %v207
  %v1294 = vunpack.c.h.b16 %v207
  %v1295 = vunpack.c.l.b16 %v208
  %v1296 = vunpack.c.h.b16 %v208
  %v1297 = vunpack.c.l.b16 %v209
  %v1298 = vunpack.c.h.b16 %v209
  %v1299 = vunpack.c.l.b16 %v210
  %v1300 = vunpack.c.h.b16 %v210
  %v1301 = vunpack.c.l.b16 %v211
  %v1302 = vunpack.c.h.b16 %v211
  %v1303 = vunpack.c.l.b16 %v212
  %v1304 = vunpack.c.h.b16 %v212
  %v1305 = vunpack.c.l.b16 %v213
  %v1306 = vunpack.c.h.b16 %v213
  %v1307 = vunpack.c.l.b16 %v214
  %v1308 = vunpack.c.h.b16 %v214
  %v1309 = vunpack.c.l.b16 %v215
  %v1310 = vunpack.c.h.b16 %v215
  %v1311 = vunpack.c.l.b16 %v216
  %v1312 = vunpack.c.h.b16 %v216
  %v1313 = vunpack.c.l.b16 %v217
  %v1314 = vunpack.c.h.b16 %v217
  %v1315 = vunpack.c.l.b16 %v218
  %v1316 = vunpack.c.h.b16 %v218
  %v1317 = vunpack.c.l.b16 %v219
  %v1318 = vunpack.c.h.b16 %v219
  %v1319 = vunpack.c.l.b16 %v220
  %v1320 = vunpack.c.h.b16 %v220
  %v1321 = vunpack.c.l.b16 %v221
  %v1322 = vunpack.c.h.b16 %v221
  %v1323 = vunpack.c.l.b16 %v222
  %v1324 = vunpack.c.h.b16 %v222
  %v1325 = vunpack.c.l.b16 %v223
  %v1326 = vunpack.c.h.b16 %v223
  %v1327 = vunpack.c.l.b16 %v224
  %v1328 = vunpack.c.h.b16 %v224
  %v1329 = vunpack.c.l.b16 %v225
  %v1330 = vunpack.c.h.b16 %v225
  %v1331 = vunpack.c.l.b16 %v226
  %v1332 = vunpack.c.h.b16 %v226
  %v1333 = vunpack.c.l.b16 %v227
  %v1334 = vunpack.c.h.b16 %v227
  %v1335 = vunpack.c.l.b16 %v228
  %v1336 = vunpack.c.h.b16 %v228
  %v1337 = vunpack.c.l.b16 %v229
  %v1338 = vunpack.c.h.b16 %v229
  %v1339 = vunpack.c.l.b16 %v230
  %v1340 = vunpack.c.h.b16 %v230
  %v1341 = vunpack.c.l.b16 %v231
  %v1342 = vunpack.c.h.b16 %v231
  %v1343 = vunpack.c.l.b16 %v232
  %v1344 = vunpack.c.h.b16 %v232
  %v1345 = vunpack.c.l.b16 %v233
  %v1346 = vunpack.c.h.b16 %v233
  %v1347 = vunpack.c.l.b16 %v234
  %v1348 = vunpack.c.h.b16 %v234
  %v1349 = vunpack.c.l.b16 %v235
  %v1350 = vunpack.c.h.b16 %v235
  %v1351 = vunpack.c.l.b16 %v236
  %v1352 = vunpack.c.h.b16 %v236
  %v1353 = vunpack.c.l.b16 %v237
  %v1354 = vunpack.c.h.b16 %v237
  %v1355 = vunpack.c.l.b16 %v238
  %v1356 = vunpack.c.h.b16 %v238
  %v1357 = vunpack.c.l.b16 %v239
  %v1358 = vunpack.c.h.b16 %v239
  %v1359 = vunpack.c.l.b16 %v240
  %v1360 = vunpack.c.h.b16 %v240
  %v1361 = vunpack.c.l.b16 %v241
  %v1362 = vunpack.c.h.b16 %v241
  %v1363 = vunpack.c.l.b16 %v242
  %v1364 = vunpack.c.h.b16 %v242
  %v1365 = vunpack.c.l.b16 %v243
  %v1366 = vunpack.c.h.b16 %v243
  %v1367 = vunpack.c.l.b16 %v244
  %v1368 = vunpack.c.h.b16 %v244
  %v1369 = vunpack.c.l.b16 %v245
  %v1370 = vunpack.c.h.b16 %v245
  %v1371 = vunpack.c.l.b16 %v246
  %v1372 = vunpack.c.h.b16 %v246
  %v1373 = vunpack.c.l.b16 %v247
  %v1374 = vunpack.c.h.b16 %v247
  %v1375 = vunpack.c.l.b16 %v248
  %v1376 = vunpack.c.h.b16 %v248
  %v1377 = vunpack.c.l.b16 %v249
  %v1378 = vunpack.c.h.b16 %v249
  %v1379 = vunpack.c.l.b16 %v250
  %v1380 = vunpack.c.h.b16 %v250
  %v1381 = vunpack.c.l.b16 %v251
  %v1382 = vunpack.c.h.b16 %v251
  %v1383 = vunpack.c.l.b16 %v252
  %v1384 = vunpack.c.h.b16 %v252
  %v1385 = vunpack.c.l.b16 %v253
  %v1386 = vunpack.c.h.b16 %v253
  %v1387 = vunpack.c.l.b16 %v254
  %v1388 = vunpack.c.h.b16 %v254
  %v1389 = vunpack.c.l.b16 %v255
  %v1390 = vunpack.c.h.b16 %v255
  %v1391 = vunpack.c.l.b16 %v256
  %v1392 = vunpack.c.h.b16 %v256
  %v1393 = vunpack.c.l.b16 %v257
  %v1394 = vunpack.c.h.b16 %v257
  %v1395 = vunpack.c.l.b16 %v258
  %v1396 = vunpack.c.h.b16 %v258
  %v1397 = vunpack.c.l.b16 %v259
  %v1398 = vunpack.c.h.b16 %v259
  %v1399 = vunpack.c.l.b16 %v260
  %v1400 = vunpack.c.h.b16 %v260
  %v1401 = vunpack.c.l.b16 %v261
  %v1402 = vunpack.c.h.b16 %v261
  %v1403 = vunpack.c.l.b16 %v262
  %v1404 = vunpack.c.h.b16 %v262
  %v1405 = vunpack.c.l.b16 %v263
  %v1406 = vunpack.c.h.b16 %v263
  %v1407 = vunpack.c.l.b16 %v264
  %v1408 = vunpack.c.h.b16 %v264
  %v1409 = vunpack.c.l.b16 %v265
  %v1410 = vunpack.c.h.b16 %v265
  %v1411 = vunpack.c.l.b16 %v266
  %v1412 = vunpack.c.h.b16 %v266
  %v1413 = vunpack.c.l.b16 %v267
  %v1414 = vunpack.c.h.b16 %v267
  %v1415 = vunpack.c.l.b16 %v268
  %v1416 = vunpack.c.h.b16 %v268
  %v1417 = vunpack.c.l.b16 %v269
  %v1418 = vunpack.c.h.b16 %v269
  %v1419 = vunpack.c.l.b16 %v270
  %v1420 = vunpack.c.h.b16 %v270
  %v1421 = vunpack.c.l.b16 %v271
  %v1422 = vunpack.c.h.b16 %v271
  %v1423 = vunpack.c.l.b16 %v272
  %v1424 = vunpack.c.h.b16 %v272
  %v1425 = vunpack.c.l.b16 %v273
  %v1426 = vunpack.c.h.b16 %v273
  %v1427 = vunpack.c.l.b16 %v274
  %v1428 = vunpack.c.h.b16 %v274
  %v1429 = vunpack.c.l.b16 %v275
  %v1430 = vunpack.c.h.b16 %v275
  %v1431 = vunpack.c.l.b16 %v276
  %v1432 = vunpack.c.h.b16 %v276
  %v1433 = vunpack.c.l.b16 %v277
  %v1434 = vunpack.c.h.b16 %v277
  %v1435 = vunpack.c.l.b16 %v278
  %v1436 = vunpack.c.h.b16 %v278
  %v1437 = vunpack.c.l.b16 %v279
  %v1438 = vunpack.c.h.b16 %v279
  %v1439 = vunpack.c.l.b16 %v280
  %v1440 = vunpack.c.h.b16 %v280
  %v1441 = vunpack.c.l.b16 %v281
  %v1442 = vunpack.c.h.b16 %v281
  %v1443 = vunpack.c.l.b16 %v282
  %v1444 = vunpack.c.h.b16 %v282
  %v1445 = vunpack.c.l.b16 %v283
  %v1446 = vunpack.c.h.b16 %v283
  %v1447 = vunpack.c.l.b16 %v284
  %v1448 = vunpack.c.h.b16 %v284
  %v1449 = vunpack.c.l.b16 %v285
  %v1450 = vunpack.c.h.b16 %v285
  %v1451 = vunpack.c.l.b16 %v286
  %v1452 = vunpack.c.h.b16 %v286
  %v1453 = vunpack.c.l.b16 %v287
  %v1454 = vunpack.c.h.b16 %v287
  %v1455 = vunpack.c.l.b16 %v288
  %v1456 = vunpack.c.h.b16 %v288
  %v1457 = vunpack.c.l.b16 %v289
  %v1458 = vunpack.c.h.b16 %v289
  %v1459 = vunpack.c.l.b16 %v290
  %v1460 = vunpack.c.h.b16 %v290
  %v1461 = vunpack.c.l.b16 %v291
  %v1462 = vunpack.c.h.b16 %v291
  %v1463 = vunpack.c.l.b16 %v292
  %v1464 = vunpack.c.h.b16 %v292
  %v1465 = vunpack.c.l.b16 %v293
  %v1466 = vunpack.c.h.b16 %v293
  %v1467 = vunpack.c.l.b16 %v294
  %v1468 = vunpack.c.h.b16 %v294
  %v1469 = vunpack.c.l.b16 %v295
  %v1470 = vunpack.c.h.b16 %v295
  %v1471 = vunpack.c.l.b16 %v296
  %v1472 = vunpack.c.h.b16 %v296
  %v1473 = vunpack.c.l.b16 %v297
  %v1474 = vunpack.c.h.b16 %v297
  %v1475 = vunpack.c.l.b16 %v298
  %v1476 = vunpack.c.h.b16 %v298
  %v1477 = vunpack.c.l.b16 %v299
  %v1478 = vunpack.c.h.b16 %v299
  %v1479 = vunpack.c.l.b16 %v300
  %v1480 = vunpack.c.h.b16 %v300
  %v1481 = vunpack.c.l.b16 %v301
  %v1482 = vunpack.c.h.b16 %v301
  %v1483 = vunpack.c.l.b16 %v302
  %v1484 = vunpack.c.h.b16 %v302
  %v1485 = vunpack.c.l.b16 %v303
  %v1486 = vunpack.c.h.b16 %v303
  %v1487 = vunpack.c.l.b16 %v304
  %v1488 = vunpack.c.h.b16 %v304
  %v1489 = vunpack.c.l.b16 %v305
  %v1490 = vunpack.c.h.b16 %v305
  %v1491 = vunpack.c.l.b16 %v306
  %v1492 = vunpack.c.h.b16 %v306
  %v1493 = vunpack.c.l.b16 %v307
  %v1494 = vunpack.c.h.b16 %v307
  %v1495 = vunpack.c.l.b16 %v308
  %v1496 = vunpack.c.h.b16 %v308
  %v1497 = vunpack.c.l.b16 %v309
  %v1498 = vunpack.c.h.b16 %v309
  %v1499 = vunpack.c.l.b16 %v310
  %v1500 = vunpack.c.h.b16 %v310
  %v1501 = vunpack.c.l.b16 %v311
  %v1502 = vunpack.c.h.b16 %v311
  %v1503 = vunpack.c.l.b16 %v312
  %v1504 = vunpack.c.h.b16 %v312
  %v1505 = vunpack.c.l.b16 %v313
  %v1506 = vunpack.c.h.b16 %v313
  %v1507 = vunpack.c.l.b16 %v314
  %v1508 = vunpack.c.h.b16 %v314
  %v1509 = vunpack.c.l.b16 %v315
  %v1510 = vunpack.c.h.b16 %v315
  %v1511 = vunpack.c.l.b16 %v316
  %v1512 = vunpack.c.h.b16 %v316
  %v1513 = vunpack.c.l.b16 %v317
  %v1514 = vunpack.c.h.b16 %v317
  %v1515 = vunpack.c.l.b16 %v318
  %v1516 = vunpack.c.h.b16 %v318
  %v1517 = vunpack.c.l.b16 %v319
  %v1518 = vunpack.c.h.b16 %v319
  %v1519 = vunpack.c.l.b16 %v320
  %v1520 = vunpack.c.h.b16 %v320
  %v1521 = vunpack.c.l.b16 %v321
  %v1522 = vunpack.c.h.b16 %v321
  %v1523 = vunpack.c.l.b16 %v322
  %v1524 = vunpack.c.h.b16 %v322
  %v1525 = vunpack.c.l.b16 %v323
  %v1526 = vunpack.c.h.b16 %v323
  %v1527 = vunpack.c.l.b16 %v324
  %v1528 = vunpack.c.h.b16 %v324
  %v1529 = vunpack.c.l.b16 %v325
  %v1530 = vunpack.c.h.b16 %v325
  %v1531 = vunpack.c.l.b16 %v326
  %v1532 = vunpack.c.h.b16 %v326
  %v1533 = vunpack.c.l.b16 %v327
  %v1534 = vunpack.c.h.b16 %v327
  %v1535 = vunpack.c.l.b16 %v328
  %v1536 = vunpack.c.h.b16 %v328
  %v1537 = vunpack.c.l.b16 %v329
  %v1538 = vunpack.c.h.b16 %v329
  %v1539 = vunpack.c.l.b16 %v330
  %v1540 = vunpack.c.h.b16 %v330
  %v1541 = vunpack.c.l.b16 %v331
  %v1542 = vunpack.c.h.b16 %v331
  %v1543 = vunpack.c.l.b16 %v332
  %v1544 = vunpack.c.h.b16 %v332
  %v1545 = vunpack.c.l.b16 %v333
  %v1546 = vunpack.c.h.b16 %v333
  %v1547 = vunpack.c.l.b16 %v334
  %v1548 = vunpack.c.h.b16 %v334
  %v1549 = vunpack.c.l.b16 %v335
  %v1550 = vunpack.c.h.b16 %v335
  %v1551 = vunpack.c.l.b16 %v336
  %v1552 = vunpack.c.h.b16 %v336
  %v1553 = vunpack.c.l.b16 %v337
  %v1554 = vunpack.c.h.b16 %v337
  %v1555 = vunpack.c.l.b16 %v338
  %v1556 = vunpack.c.h.b16 %v338
  %v1557 = vunpack.c.l.b16 %v339
  %v1558 = vunpack.c.h.b16 %v339
  %v1559 = vunpack.c.l.b16 %v340
  %v1560 = vunpack.c.h.b16 %v340
  %v1561 = vunpack.c.l.b16 %v341
  %v1562 = vunpack.c.h.b16 %v341
  %v1563 = vunpack.c.l.b16 %v342
  %v1564 = vunpack.c.h.b16 %v342
  %v1565 = vunpack.c.l.b16 %v343
  %v1566 = vunpack.c.h.b16 %v343
  %v1567 = vunpack.c.l.b16 %v344
  %v1568 = vunpack.c.h.b16 %v344
  %v1569 = vunpack.c.l.b16 %v345
  %v1570 = vunpack.c.h.b16 %v345
  %v1571 = vunpack.c.l.b16 %v346
  %v1572 = vunpack.c.h.b16 %v346
  %v1573 = vunpack.c.l.b16 %v347
  %v1574 = vunpack.c.h.b16 %v347
  %v1575 = vunpack.c.l.b16 %v348
  %v1576 = vunpack.c.h.b16 %v348
  %v1577 = vunpack.c.l.b16 %v349
  %v1578 = vunpack.c.h.b16 %v349
  %v1579 = vunpack.c.l.b16 %v350
  %v1580 = vunpack.c.h.b16 %v350
  %v1581 = vunpack.c.l.b16 %v351
  %v1582 = vunpack.c.h.b16 %v351
  %v1583 = vunpack.c.l.b16 %v352
  %v1584 = vunpack.c.h.b16 %v352
  %v1585 = vunpack.c.l.b16 %v353
  %v1586 = vunpack.c.h.b16 %v353
  %v1587 = vunpack.c.l.b16 %v354
  %v1588 = vunpack.c.h.b16 %v354
  %v1589 = vunpack.c.l.b16 %v355
  %v1590 = vunpack.c.h.b16 %v355
  %v1591 = vunpack.c.l.b16 %v356
  %v1592 = vunpack.c.h.b16 %v356
  %v1593 = vunpack.c.l.b16 %v357
  %v1594 = vunpack.c.h.b16 %v357
  %v1595 = vunpack.c.l.b16 %v358
  %v1596 = vunpack.c.h.b16 %v358
  %v1597 = vunpack.c.l.b16 %v359
  %v1598 = vunpack.c.h.b16 %v359
  %v1599 = vunpack.c.l.b16 %v360
  %v1600 = vunpack.c.h.b16 %v360
  %v1601 = vunpack.c.l.b16 %v361
  %v1602 = vunpack.c.h.b16 %v361
  %v1603 = vunpack.c.l.b16 %v362
  %v1604 = vunpack.c.h.b16 %v362
  %v1605 = vunpack.c.l.b16 %v363
  %v1606 = vunpack.c.h.b16 %v363
  %v1607 = vunpack.c.l.b16 %v364
  %v1608 = vunpack.c.h.b16 %v364
  %v1609 = vunpack.c.l.b16 %v365
  %v1610 = vunpack.c.h.b16 %v365
  %v1611 = vunpack.c.l.b16 %v366
  %v1612 = vunpack.c.h.b16 %v366
  %v1613 = vunpack.c.l.b16 %v367
  %v1614 = vunpack.c.h.b16 %v367
  %v1615 = vunpack.c.l.b16 %v368
  %v1616 = vunpack.c.h.b16 %v368
  %v1617 = vunpack.c.l.b16 %v369
  %v1618 = vunpack.c.h.b16 %v369
  %v1619 = vunpack.c.l.b16 %v370
  %v1620 = vunpack.c.h.b16 %v370
  %v1621 = vunpack.c.l.b16 %v371
  %v1622 = vunpack.c.h.b16 %v371
  %v1623 = vunpack.c.l.b16 %v372
  %v1624 = vunpack.c.h.b16 %v372
  %v1625 = vunpack.c.l.b16 %v373
  %v1626 = vunpack.c.h.b16 %v373
  %v1627 = vunpack.c.l.b16 %v374
  %v1628 = vunpack.c.h.b16 %v374
  %v1629 = vunpack.c.l.b16 %v375
  %v1630 = vunpack.c.h.b16 %v375
  %v1631 = vunpack.c.l.b16 %v376
  %v1632 = vunpack.c.h.b16 %v376
  %v1633 = vunpack.c.l.b16 %v377
  %v1634 = vunpack.c.h.b16 %v377
  %v1635 = vunpack.c.l.b16 %v378
  %v1636 = vunpack.c.h.b16 %v378
  %v1637 = vunpack.c.l.b16 %v379
  %v1638 = vunpack.c.h.b16 %v379
  %v1639 = vunpack.c.l.b16 %v380
  %v1640 = vunpack.c.h.b16 %v380
  %v1641 = vunpack.c.l.b16 %v381
  %v1642 = vunpack.c.h.b16 %v381
  %v1643 = vunpack.c.l.b16 %v382
  %v1644 = vunpack.c.h.b16 %v382
  %v1645 = vunpack.c.l.b16 %v383
  %v1646 = vunpack.c.h.b16 %v383
  %v1647 = vunpack.c.l.b16 %v384
  %v1648 = vunpack.c.h.b16 %v384
  %v1649 = vunpack.c.l.b16 %v385
  %v1650 = vunpack.c.h.b16 %v385
  %v1651 = vunpack.c.l.b16 %v386
  %v1652 = vunpack.c.h.b16 %v386
  %v1653 = vunpack.c.l.b16 %v387
  %v1654 = vunpack.c.h.b16 %v387
  %v1655 = vunpack.c.l.b16 %v388
  %v1656 = vunpack.c.h.b16 %v388
  %v1657 = vunpack.c.l.b16 %v389
  %v1658 = vunpack.c.h.b16 %v389
  %v1659 = vunpack.c.l.b16 %v390
  %v1660 = vunpack.c.h.b16 %v390
  %v1661 = vpack.c.b16 %v1217, %v1213
  %v1662 = vpack.c.b16 %v1218, %v1214
  %v1663 = vpack.c.b16 %v1219, %v1215
  %v1664 = vpack.c.b16 %v1220, %v1216
  %v1665 = vpack.c.b16 %v1225, %v1221
  %v1666 = vpack.c.b16 %v1226, %v1222
  %v1667 = vpack.c.b16 %v1227, %v1223
  %v1668 = vpack.c.b16 %v1228, %v1224
  %v1669 = vpack.c.b16 %v1233, %v1229
  %v1670 = vpack.c.b16 %v1234, %v1230
  %v1671 = vpack.c.b16 %v1235, %v1231
  %v1672 = vpack.c.b16 %v1236, %v1232
  %v1673 = vpack.c.b16 %v1241, %v1237
  %v1674 = vpack.c.b16 %v1242, %v1238
  %v1675 = vpack.c.b16 %v1243, %v1239
  %v1676 = vpack.c.b16 %v1244, %v1240
  %v1677 = vpack.c.b16 %v1249, %v1245
  %v1678 = vpack.c.b16 %v1250, %v1246
  %v1679 = vpack.c.b16 %v1251, %v1247
  %v1680 = vpack.c.b16 %v1252, %v1248
  %v1681 = vpack.c.b16 %v1257, %v1253
  %v1682 = vpack.c.b16 %v1258, %v1254
  %v1683 = vpack.c.b16 %v1259, %v1255
  %v1684 = vpack.c.b16 %v1260, %v1256
  %v1685 = vpack.c.b16 %v1265, %v1261
  %v1686 = vpack.c.b16 %v1266, %v1262
  %v1687 = vpack.c.b16 %v1267, %v1263
  %v1688 = vpack.c.b16 %v1268, %v1264
  %v1689 = vpack.c.b16 %v1273, %v1269
  %v1690 = vpack.c.b16 %v1274, %v1270
  %v1691 = vpack.c.b16 %v1275, %v1271
  %v1692 = vpack.c.b16 %v1276, %v1272
  %v1693 = vpack.c.b16 %v1281, %v1277
  %v1694 = vpack.c.b16 %v1282, %v1278
  %v1695 = vpack.c.b16 %v1283, %v1279
  %v1696 = vpack.c.b16 %v1284, %v1280
  %v1697 = vpack.c.b16 %v1289, %v1285
  %v1698 = vpack.c.b16 %v1290, %v1286
  %v1699 = vpack.c.b16 %v1291, %v1287
  %v1700 = vpack.c.b16 %v1292, %v1288
  %v1701 = vpack.c.b16 %v1297, %v1293
  %v1702 = vpack.c.b16 %v1298, %v1294
  %v1703 = vpack.c.b16 %v1299, %v1295
  %v1704 = vpack.c.b16 %v1300, %v1296
  %v1705 = vpack.c.b16 %v1305, %v1301
  %v1706 = vpack.c.b16 %v1306, %v1302
  %v1707 = vpack.c.b16 %v1307, %v1303
  %v1708 = vpack.c.b16 %v1308, %v1304
  %v1709 = vpack.c.b16 %v1313, %v1309
  %v1710 = vpack.c.b16 %v1314, %v1310
  %v1711 = vpack.c.b16 %v1315, %v1311
  %v1712 = vpack.c.b16 %v1316, %v1312
  %v1713 = vpack.c.b16 %v1321, %v1317
  %v1714 = vpack.c.b16 %v1322, %v1318
  %v1715 = vpack.c.b16 %v1323, %v1319
  %v1716 = vpack.c.b16 %v1324, %v1320
  %v1717 = vpack.c.b16 %v1329, %v1325
  %v1718 = vpack.c.b16 %v1330, %v1326
  %v1719 = vpack.c.b16 %v1331, %v1327
  %v1720 = vpack.c.b16 %v1332, %v1328
  %v1721 = vpack.c.b16 %v1337, %v1333
  %v1722 = vpack.c.b16 %v1338, %v1334
  %v1723 = vpack.c.b16 %v1339, %v1335
  %v1724 = vpack.c.b16 %v1340, %v1336
  %v1725 = vpack.c.b16 %v1345, %v1341
  %v1726 = vpack.c.b16 %v1346, %v1342
  %v1727 = vpack.c.b16 %v1347, %v1343
  %v1728 = vpack.c.b16 %v1348, %v1344
  %v1729 = vpack.c.b16 %v1353, %v1349
  %v1730 = vpack.c.b16 %v1354, %v1350
  %v1731 = vpack.c.b16 %v1355, %v1351
  %v1732 = vpack.c.b16 %v1356, %v1352
  %v1733 = vpack.c.b16 %v1361, %v1357
  %v1734 = vpack.c.b16 %v1362, %v1358
  %v1735 = vpack.c.b16 %v1363, %v1359
  %v1736 = vpack.c.b16 %v1364, %v1360
  %v1737 = vpack.c.b16 %v1369, %v1365
  %v1738 = vpack.c.b16 %v1370, %v1366
  %v1739 = vpack.c.b16 %v1371, %v1367
  %v1740 = vpack.c.b16 %v1372, %v1368
  %v1741 = vpack.c.b16 %v1377, %v1373
  %v1742 = vpack.c.b16 %v1378, %v1374
  %v1743 = vpack.c.b16 %v1379, %v1375
  %v1744 = vpack.c.b16 %v1380, %v1376
  %v1745 = vpack.c.b16 %v1385, %v1381
  %v1746 = vpack.c.b16 %v1386, %v1382
  %v1747 = vpack.c.b16 %v1387, %v1383
  %v1748 = vpack.c.b16 %v1388, %v1384
  %v1749 = vpack.c.b16 %v1393, %v1389
  %v1750 = vpack.c.b16 %v1394, %v1390
  %v1751 = vpack.c.b16 %v1395, %v1391
  %v1752 = vpack.c.b16 %v1396, %v1392
  %v1753 = vpack.c.b16 %v1401, %v1397
  %v1754 = vpack.c.b16 %v1402, %v1398
  %v1755 = vpack.c.b16 %v1403, %v1399
  %v1756 = vpack.c.b16 %v1404, %v1400
  %v1757 = vpack.c.b16 %v1409, %v1405
  %v1758 = vpack.c.b16 %v1410, %v1406
  %v1759 = vpack.c.b16 %v1411, %v1407
  %v1760 = vpack.c.b16 %v1412, %v1408
  %v1761 = vpack.c.b16 %v1417, %v1413
  %v1762 = vpack.c.b16 %v1418, %v1414
  %v1763 = vpack.c.b16 %v1419, %v1415
  %v1764 = vpack.c.b16 %v1420, %v1416
  %v1765 = vpack.c.b16 %v1425, %v1421
  %v1766 = vpack.c.b16 %v1426, %v1422
  %v1767 = vpack.c.b16 %v1427, %v1423
  %v1768 = vpack.c.b16 %v1428, %v1424
  %v1769 = vpack.c.b16 %v1433, %v1429
  %v1770 = vpack.c.b16 %v1434, %v1430
  %v1771 = vpack.c.b16 %v1435, %v1431
  %v1772 = vpack.c.b16 %v1436, %v1432
  %v1773 = vpack.c.b16 %v1441, %v1437
  %v1774 = vpack.c.b16 %v1442, %v1438
  %v1775 = vpack.c.b16 %v1443, %v1439
  %v1776 = vpack.c.b16 %v1444, %v1440
  %v1777 = vpack.c.b16 %v1449, %v1445
  %v1778 = vpack.c.b16 %v1450, %v1446
  %v1779 = vpack.c.b16 %v1451, %v1447
  %v1780 = vpack.c.b16 %v1452, %v1448
  %v1781 = vpack.c.b16 %v1457, %v1453
  %v1782 = vpack.c.b16 %v1458, %v1454
  %v1783 = vpack.c.b16 %v1459, %v1455
  %v1784 = vpack.c.b16 %v1460, %v1456
  %v1785 = vpack.c.b16 %v1465, %v1461
  %v1786 = vpack.c.b16 %v1466, %v1462
  %v1787 = vpack.c.b16 %v1467, %v1463
  %v1788 = vpack.c.b16 %v1468, %v1464
  %v1789 = vpack.c.b16 %v1473, %v1469
  %v1790 = vpack.c.b16 %v1474, %v1470
  %v1791 = vpack.c.b16 %v1475, %v1471
  %v1792 = vpack.c.b16 %v1476, %v1472
  %v1793 = vpack.c.b16 %v1481, %v1477
  %v1794 = vpack.c.b16 %v1482, %v1478
  %v1795 = vpack.c.b16 %v1483, %v1479
  %v1796 = vpack.c.b16 %v1484, %v1480
  %v1797 = vpack.c.b16 %v1489, %v1485
  %v1798 = vpack.c.b16 %v1490, %v1486
  %v1799 = vpack.c.b16 %v1491, %v1487
  %v1800 = vpack.c.b16 %v1492, %v1488
  %v1801 = vpack.c.b16 %v1497, %v1493
  %v1802 = vpack.c.b16 %v1498, %v1494
  %v1803 = vpack.c.b16 %v1499, %v1495
  %v1804 = vpack.c.b16 %v1500, %v1496
  %v1805 = vpack.c.b16 %v1505, %v1501
  %v1806 = vpack.c.b16 %v1506, %v1502
  %v1807 = vpack.c.b16 %v1507, %v1503
  %v1808 = vpack.c.b16 %v1508, %v1504
  %v1809 = vpack.c.b16 %v1513, %v1509
  %v1810 = vpack.c.b16 %v1514, %v1510
  %v1811 = vpack.c.b16 %v1515, %v1511
  %v1812 = vpack.c.b16 %v1516, %v1512
  %v1813 = vpack.c.b16 %v1521, %v1517
  %v1814 = vpack.c.b16 %v1522, %v1518
  %v1815 = vpack.c.b16 %v1523, %v1519
  %v1816 = vpack.c.b16 %v1524, %v1520
  %v1817 = vpack.c.b16 %v1529, %v1525
  %v1818 = vpack.c.b16 %v1530, %v1526
  %v1819 = vpack.c.b16 %v1531, %v1527
  %v1820 = vpack.c.b16 %v1532, %v1528
  %v1821 = vpack.c.b16 %v1537, %v1533
  %v1822 = vpack.c.b16 %v1538, %v1534
  %v1823 = vpack.c.b16 %v1539, %v1535
  %v1824 = vpack.c.b16 %v1540, %v1536
  %v1825 = vpack.c.b16 %v1545, %v1541
  %v1826 = vpack.c.b16 %v1546, %v1542
  %v1827 = vpack.c.b16 %v1547, %v1543
  %v1828 = vpack.c.b16 %v1548, %v1544
  %v1829 = vpack.c.b16 %v1553, %v1549
  %v1830 = vpack.c.b16 %v1554, %v1550
  %v1831 = vpack.c.b16 %v1555, %v1551
  %v1832 = vpack.c.b16 %v1556, %v1552
  %v1833 = vpack.c.b16 %v1561, %v1557
  %v1834 = vpack.c.b16 %v1562, %v1558
  %v1835 = vpack.c.b16 %v1563, %v1559
  %v1836 = vpack.c.b16 %v1564, %v1560
  %v1837 = vpack.c.b16 %v1569, %v1565
  %v1838 = vpack.c.b16 %v1570, %v1566
  %v1839 = vpack.c.b16 %v1571, %v1567
  %v1840 = vpack.c.b16 %v1572, %v1568
  %v1841 = vpack.c.b16 %v1577, %v1573
  %v1842 = vpack.c.b16 %v1578, %v1574
  %v1843 = vpack.c.b16 %v1579, %v1575
  %v1844 = vpack.c.b16 %v1580, %v1576
  %v1845 = vpack.c.b16 %v1585, %v1581
  %v1846 = vpack.c.b16 %v1586, %v1582
  %v1847 = vpack.c.b16 %v1587, %v1583
  %v1848 = vpack.c.b16 %v1588, %v1584
  %v1849 = vpack.c.b16 %v1593, %v1589
  %v1850 = vpack.c.b16 %v1594, %v1590
  %v1851 = vpack.c.b16 %v1595, %v1591
  %v1852 = vpack.c.b16 %v1596, %v1592
  %v1853 = vpack.c.b16 %v1601, %v1597
  %v1854 = vpack.c.b16 %v1602, %v1598
  %v1855 = vpack.c.b16 %v1603, %v1599
  %v1856 = vpack.c.b16 %v1604, %v1600
  %v1857 = vpack.c.b16 %v1609, %v1605
  %v1858 = vpack.c.b16 %v1610, %v1606
  %v1859 = vpack.c.b16 %v1611, %v1607
  %v1860 = vpack.c.b16 %v1612, %v1608
  %v1861 = vpack.c.b16 %v1617, %v1613
  %v1862 = vpack.c.b16 %v1618, %v1614
  %v1863 = vpack.c.b16 %v1619, %v1615
  %v1864 = vpack.c.b16 %v1620, %v1616
  %v1865 = vpack.c.b16 %v1625, %v1621
  %v1866 = vpack.c.b16 %v1626, %v1622
  %v1867 = vpack.c.b16 %v1627, %v1623
  %v1868 = vpack.c.b16 %v1628, %v1624
  %v1869 = vpack.c.b16 %v1633, %v1629
  %v1870 = vpack.c.b16 %v1634, %v1630
  %v1871 = vpack.c.b16 %v1635, %v1631
  %v1872 = vpack.c.b16 %v1636, %v1632
  %v1873 = vpack.c.b16 %v1641, %v1637
  %v1874 = vpack.c.b16 %v1642, %v1638
  %v1875 = vpack.c.b16 %v1643, %v1639
  %v1876 = vpack.c.b16 %v1644, %v1640
  %v1877 = vpack.c.b16 %v1649, %v1645
  %v1878 = vpack.c.b16 %v1650, %v1646
  %v1879 = vpack.c.b16 %v1651, %v1647
  %v1880 = vpack.c.b16 %v1652, %v1648
  %v1881 = vpack.c.b16 %v1657, %v1653
  %v1882 = vpack.c.b16 %v1658, %v1654
  %v1883 = vpack.c.b16 %v1659, %v1655
  %v1884 = vpack.c.b16 %v1660, %v1656
  %2109 = vmatprep.subr.bf16.mxu0 %v1662
  %2110 = vmatpush1.bf16.msra.mxu0 %v1661
  %2111 = vmatprep.subr.bf16.mxu0 %v1666
  %2112 = vmatpush1.bf16.msra.mxu0 %v1665
  %2113 = vmatprep.subr.bf16.mxu0 %v1670
  %2114 = vmatpush1.bf16.msra.mxu0 %v1669
  %2115 = vmatprep.subr.bf16.mxu0 %v1674
  %2116 = vmatpush1.bf16.msra.mxu0 %v1673
  %2117 = vmatprep.subr.bf16.mxu0 %v1678
  %2118 = vmatpush1.bf16.msra.mxu0 %v1677
  %2119 = vmatprep.subr.bf16.mxu0 %v1682
  %2120 = vmatpush1.bf16.msra.mxu0 %v1681
  %2121 = vmatprep.subr.bf16.mxu0 %v1686
  %2122 = vmatpush1.bf16.msra.mxu0 %v1685
  %2123 = vmatprep.subr.bf16.mxu0 %v1690
  %2124 = vmatpush1.bf16.msra.mxu0 %v1689
  %2125 = vmatprep.subr.bf16.mxu0 %v1694
  %2126 = vmatpush1.bf16.msra.mxu0 %v1693
  %2127 = vmatprep.subr.bf16.mxu0 %v1698
  %2128 = vmatpush1.bf16.msra.mxu0 %v1697
  %2129 = vmatprep.subr.bf16.mxu0 %v1702
  %2130 = vmatpush1.bf16.msra.mxu0 %v1701
  %2131 = vmatprep.subr.bf16.mxu0 %v1706
  %2132 = vmatpush1.bf16.msra.mxu0 %v1705
  %2133 = vmatprep.subr.bf16.mxu0 %v1710
  %2134 = vmatpush1.bf16.msra.mxu0 %v1709
  %2135 = vmatprep.subr.bf16.mxu0 %v1714
  %2136 = vmatpush1.bf16.msra.mxu0 %v1713
  %2137 = vmatprep.subr.bf16.mxu0 %v1718
  %2138 = vmatpush1.bf16.msra.mxu0 %v1717
  %2139 = vmatprep.subr.bf16.mxu0 %v1722
  %2140 = vmatpush1.bf16.msra.mxu0 %v1721
  %2141 = vmatprep.mubr.bf16.mxu0 %v766
  %2142 = vmatmul.mubr.bf16.gmra.mrb[0].mxu0 %v765
  %v2143 = vpop.f32.mrb[0].mxu0
  %v2144 = vadd.f32 %v396, %v2143
  %v2145 = vpop.f32.mrb[0].mxu0
  %v2146 = vadd.f32 %v400, %v2145
  %v2147 = vpop.f32.mrb[0].mxu0
  %v2148 = vadd.f32 %v396, %v2147
  %v2149 = vpop.f32.mrb[0].mxu0
  %v2150 = vadd.f32 %v400, %v2149
  %2151 = vmatprep.mubr.bf16.mxu0 %v773
  %2152 = vmatmul.mubr.bf16.gmra.mrb[0].mxu0 %v772
  %v2153 = vpop.f32.mrb[0].mxu0
  %v2154 = vadd.f32 %v396, %v2153
  %v2155 = vpop.f32.mrb[0].mxu0
  %v2156 = vadd.f32 %v400, %v2155
  %v2157 = vpop.f32.mrb[0].mxu0
  %v2158 = vadd.f32 %v396, %v2157
  %v2159 = vpop.f32.mrb[0].mxu0
  %v2160 = vadd.f32 %v400, %v2159
  %2161 = vmatprep.mubr.bf16.mxu0 %v780
  %2162 = vmatmul.mubr.bf16.gmra.mrb[0].mxu0 %v779
  %v2163 = vpop.f32.mrb[0].mxu0
  %v2164 = vadd.f32 %v396, %v2163
  %v2165 = vpop.f32.mrb[0].mxu0
  %v2166 = vadd.f32 %v400, %v2165
  %v2167 = vpop.f32.mrb[0].mxu0
  %v2168 = vadd.f32 %v396, %v2167
  %v2169 = vpop.f32.mrb[0].mxu0
  %v2170 = vadd.f32 %v400, %v2169
  %2171 = vmatprep.mubr.bf16.mxu0 %v787
  %2172 = vmatmul.mubr.bf16.gmra.mrb[0].mxu0 %v786
  %v2173 = vpop.f32.mrb[0].mxu0
  %v2174 = vadd.f32 %v396, %v2173
  %v2175 = vpop.f32.mrb[0].mxu0
  %v2176 = vadd.f32 %v400, %v2175
  %v2177 = vpop.f32.mrb[0].mxu0
  %v2178 = vadd.f32 %v396, %v2177
  %v2179 = vpop.f32.mrb[0].mxu0
  %v2180 = vadd.f32 %v400, %v2179
  %2181 = vmatprep.mubr.bf16.mxu0 %v794
  %2182 = vmatmul.mubr.bf16.gmra.mrb[0].mxu0 %v793
  %v2183 = vpop.f32.mrb[0].mxu0
  %v2184 = vadd.f32 %v396, %v2183
  %v2185 = vpop.f32.mrb[0].mxu0
  %v2186 = vadd.f32 %v400, %v2185
  %v2187 = vpop.f32.mrb[0].mxu0
  %v2188 = vadd.f32 %v396, %v2187
  %v2189 = vpop.f32.mrb[0].mxu0
  %v2190 = vadd.f32 %v400, %v2189
  %2191 = vmatprep.mubr.bf16.mxu0 %v801
  %2192 = vmatmul.mubr.bf16.gmra.mrb[0].mxu0 %v800
  %v2193 = vpop.f32.mrb[0].mxu0
  %v2194 = vadd.f32 %v396, %v2193
  %v2195 = vpop.f32.mrb[0].mxu0
  %v2196 = vadd.f32 %v400, %v2195
  %v2197 = vpop.f32.mrb[0].mxu0
  %v2198 = vadd.f32 %v396, %v2197
  %v2199 = vpop.f32.mrb[0].mxu0
  %v2200 = vadd.f32 %v400, %v2199
  %2201 = vmatprep.mubr.bf16.mxu0 %v808
  %2202 = vmatmul.mubr.bf16.gmra.mrb[0].mxu0 %v807
  %v2203 = vpop.f32.mrb[0].mxu0
  %v2204 = vadd.f32 %v396, %v2203
  %v2205 = vpop.f32.mrb[0].mxu0
  %v2206 = vadd.f32 %v400, %v2205
  %v2207 = vpop.f32.mrb[0].mxu0
  %v2208 = vadd.f32 %v396, %v2207
  %v2209 = vpop.f32.mrb[0].mxu0
  %v2210 = vadd.f32 %v400, %v2209
  %2211 = vmatprep.mubr.bf16.mxu0 %v815
  %2212 = vmatmul.mubr.bf16.gmra.mrb[0].mxu0 %v814
  %v2213 = vpop.f32.mrb[0].mxu0
  %v2214 = vadd.f32 %v396, %v2213
  %v2215 = vpop.f32.mrb[0].mxu0
  %v2216 = vadd.f32 %v400, %v2215
  %v2217 = vpop.f32.mrb[0].mxu0
  %v2218 = vadd.f32 %v396, %v2217
  %v2219 = vpop.f32.mrb[0].mxu0
  %v2220 = vadd.f32 %v400, %v2219
  %2221 = vmatprep.mubr.bf16.mxu0 %v822
  %2222 = vmatmul.mubr.bf16.gmra.mrb[0].mxu0 %v821
  %v2223 = vpop.f32.mrb[0].mxu0
  %v2224 = vadd.f32 %v396, %v2223
  %v2225 = vpop.f32.mrb[0].mxu0
  %v2226 = vadd.f32 %v400, %v2225
  %v2227 = vpop.f32.mrb[0].mxu0
  %v2228 = vadd.f32 %v396, %v2227
  %v2229 = vpop.f32.mrb[0].mxu0
  %v2230 = vadd.f32 %v400, %v2229
  %2231 = vmatprep.mubr.bf16.mxu0 %v829
  %2232 = vmatmul.mubr.bf16.gmra.mrb[0].mxu0 %v828
  %v2233 = vpop.f32.mrb[0].mxu0
  %v2234 = vadd.f32 %v396, %v2233
  %v2235 = vpop.f32.mrb[0].mxu0
  %v2236 = vadd.f32 %v400, %v2235
  %v2237 = vpop.f32.mrb[0].mxu0
  %v2238 = vadd.f32 %v396, %v2237
  %v2239 = vpop.f32.mrb[0].mxu0
  %v2240 = vadd.f32 %v400, %v2239
  %2241 = vmatprep.mubr.bf16.mxu0 %v836
  %2242 = vmatmul.mubr.bf16.gmra.mrb[0].mxu0 %v835
  %v2243 = vpop.f32.mrb[0].mxu0
  %v2244 = vadd.f32 %v396, %v2243
  %v2245 = vpop.f32.mrb[0].mxu0
  %v2246 = vadd.f32 %v400, %v2245
  %v2247 = vpop.f32.mrb[0].mxu0
  %v2248 = vadd.f32 %v396, %v2247
  %v2249 = vpop.f32.mrb[0].mxu0
  %v2250 = vadd.f32 %v400, %v2249
  %2251 = vmatprep.mubr.bf16.mxu0 %v843
  %2252 = vmatmul.mubr.bf16.gmra.mrb[0].mxu0 %v842
  %v2253 = vpop.f32.mrb[0].mxu0
  %v2254 = vadd.f32 %v396, %v2253
  %v2255 = vpop.f32.mrb[0].mxu0
  %v2256 = vadd.f32 %v400, %v2255
  %v2257 = vpop.f32.mrb[0].mxu0
  %v2258 = vadd.f32 %v396, %v2257
  %v2259 = vpop.f32.mrb[0].mxu0
  %v2260 = vadd.f32 %v400, %v2259
  %2261 = vmatprep.mubr.bf16.mxu0 %v850
  %2262 = vmatmul.mubr.bf16.gmra.mrb[0].mxu0 %v849
  %v2263 = vpop.f32.mrb[0].mxu0
  %v2264 = vadd.f32 %v396, %v2263
  %v2265 = vpop.f32.mrb[0].mxu0
  %v2266 = vadd.f32 %v400, %v2265
  %v2267 = vpop.f32.mrb[0].mxu0
  %v2268 = vadd.f32 %v396, %v2267
  %v2269 = vpop.f32.mrb[0].mxu0
  %v2270 = vadd.f32 %v400, %v2269
  %2271 = vmatprep.mubr.bf16.mxu0 %v857
  %2272 = vmatmul.mubr.bf16.gmra.mrb[0].mxu0 %v856
  %v2273 = vpop.f32.mrb[0].mxu0
  %v2274 = vadd.f32 %v396, %v2273
  %v2275 = vpop.f32.mrb[0].mxu0
  %v2276 = vadd.f32 %v400, %v2275
  %v2277 = vpop.f32.mrb[0].mxu0
  %v2278 = vadd.f32 %v396, %v2277
  %v2279 = vpop.f32.mrb[0].mxu0
  %v2280 = vadd.f32 %v400, %v2279
  %2281 = vmatprep.mubr.bf16.mxu0 %v864
  %2282 = vmatmul.mubr.bf16.gmra.mrb[0].mxu0 %v863
  %v2283 = vpop.f32.mrb[0].mxu0
  %v2284 = vadd.f32 %v396, %v2283
  %v2285 = vpop.f32.mrb[0].mxu0
  %v2286 = vadd.f32 %v400, %v2285
  %v2287 = vpop.f32.mrb[0].mxu0
  %v2288 = vadd.f32 %v396, %v2287
  %v2289 = vpop.f32.mrb[0].mxu0
  %v2290 = vadd.f32 %v400, %v2289
  %2291 = vmatprep.mubr.bf16.mxu0 %v871
  %2292 = vmatmul.mubr.bf16.gmra.mrb[0].mxu0 %v870
  %v2293 = vpop.f32.mrb[0].mxu0
  %v2294 = vadd.f32 %v396, %v2293
  %v2295 = vpop.f32.mrb[0].mxu0
  %v2296 = vadd.f32 %v400, %v2295
  %v2297 = vpop.f32.mrb[0].mxu0
  %v2298 = vadd.f32 %v396, %v2297
  %v2299 = vpop.f32.mrb[0].mxu0
  %v2300 = vadd.f32 %v400, %v2299
  %2301 = vdwg.mxu0
  %2302 = vmatprep.subr.bf16.mxu0 %v1726
  %2303 = vmatpush1.bf16.msra.mxu0 %v1725
  %2304 = vmatprep.subr.bf16.mxu0 %v1730
  %2305 = vmatpush1.bf16.msra.mxu0 %v1729
  %2306 = vmatprep.subr.bf16.mxu0 %v1734
  %2307 = vmatpush1.bf16.msra.mxu0 %v1733
  %2308 = vmatprep.subr.bf16.mxu0 %v1738
  %2309 = vmatpush1.bf16.msra.mxu0 %v1737
  %2310 = vmatprep.subr.bf16.mxu0 %v1742
  %2311 = vmatpush1.bf16.msra.mxu0 %v1741
  %2312 = vmatprep.subr.bf16.mxu0 %v1746
  %2313 = vmatpush1.bf16.msra.mxu0 %v1745
  %2314 = vmatprep.subr.bf16.mxu0 %v1750
  %2315 = vmatpush1.bf16.msra.mxu0 %v1749
  %2316 = vmatprep.subr.bf16.mxu0 %v1754
  %2317 = vmatpush1.bf16.msra.mxu0 %v1753
  %2318 = vmatprep.subr.bf16.mxu0 %v1758
  %2319 = vmatpush1.bf16.msra.mxu0 %v1757
  %2320 = vmatprep.subr.bf16.mxu0 %v1762
  %2321 = vmatpush1.bf16.msra.mxu0 %v1761
  %2322 = vmatprep.subr.bf16.mxu0 %v1766
  %2323 = vmatpush1.bf16.msra.mxu0 %v1765
  %2324 = vmatprep.subr.bf16.mxu0 %v1770
  %2325 = vmatpush1.bf16.msra.mxu0 %v1769
  %2326 = vmatprep.subr.bf16.mxu0 %v1774
  %2327 = vmatpush1.bf16.msra.mxu0 %v1773
  %2328 = vmatprep.subr.bf16.mxu0 %v1778
  %2329 = vmatpush1.bf16.msra.mxu0 %v1777
  %2330 = vmatprep.subr.bf16.mxu0 %v1782
  %2331 = vmatpush1.bf16.msra.mxu0 %v1781
  %2332 = vmatprep.subr.bf16.mxu0 %v1786
  %2333 = vmatpush1.bf16.msra.mxu0 %v1785
  %2334 = vmatprep.mubr.bf16.mxu0 %v768
  %2335 = vmatmul.mubr.bf16.gmra.mrb[0].mxu0 %v767
  %v2336 = vpop.f32.mrb[0].mxu0
  %v2337 = vadd.f32 %v2144, %v2336
  %v2338 = vpop.f32.mrb[0].mxu0
  %v2339 = vadd.f32 %v2146, %v2338
  %v2340 = vpop.f32.mrb[0].mxu0
  %v2341 = vadd.f32 %v2148, %v2340
  %v2342 = vpop.f32.mrb[0].mxu0
  %v2343 = vadd.f32 %v2150, %v2342
  %2344 = vmatprep.mubr.bf16.mxu0 %v775
  %2345 = vmatmul.mubr.bf16.gmra.mrb[0].mxu0 %v774
  %v2346 = vpop.f32.mrb[0].mxu0
  %v2347 = vadd.f32 %v2154, %v2346
  %v2348 = vpop.f32.mrb[0].mxu0
  %v2349 = vadd.f32 %v2156, %v2348
  %v2350 = vpop.f32.mrb[0].mxu0
  %v2351 = vadd.f32 %v2158, %v2350
  %v2352 = vpop.f32.mrb[0].mxu0
  %v2353 = vadd.f32 %v2160, %v2352
  %2354 = vmatprep.mubr.bf16.mxu0 %v782
  %2355 = vmatmul.mubr.bf16.gmra.mrb[0].mxu0 %v781
  %v2356 = vpop.f32.mrb[0].mxu0
  %v2357 = vadd.f32 %v2164, %v2356
  %v2358 = vpop.f32.mrb[0].mxu0
  %v2359 = vadd.f32 %v2166, %v2358
  %v2360 = vpop.f32.mrb[0].mxu0
  %v2361 = vadd.f32 %v2168, %v2360
  %v2362 = vpop.f32.mrb[0].mxu0
  %v2363 = vadd.f32 %v2170, %v2362
  %2364 = vmatprep.mubr.bf16.mxu0 %v789
  %2365 = vmatmul.mubr.bf16.gmra.mrb[0].mxu0 %v788
  %v2366 = vpop.f32.mrb[0].mxu0
  %v2367 = vadd.f32 %v2174, %v2366
  %v2368 = vpop.f32.mrb[0].mxu0
  %v2369 = vadd.f32 %v2176, %v2368
  %v2370 = vpop.f32.mrb[0].mxu0
  %v2371 = vadd.f32 %v2178, %v2370
  %v2372 = vpop.f32.mrb[0].mxu0
  %v2373 = vadd.f32 %v2180, %v2372
  %2374 = vmatprep.mubr.bf16.mxu0 %v796
  %2375 = vmatmul.mubr.bf16.gmra.mrb[0].mxu0 %v795
  %v2376 = vpop.f32.mrb[0].mxu0
  %v2377 = vadd.f32 %v2184, %v2376
  %v2378 = vpop.f32.mrb[0].mxu0
  %v2379 = vadd.f32 %v2186, %v2378
  %v2380 = vpop.f32.mrb[0].mxu0
  %v2381 = vadd.f32 %v2188, %v2380
  %v2382 = vpop.f32.mrb[0].mxu0
  %v2383 = vadd.f32 %v2190, %v2382
  %2384 = vmatprep.mubr.bf16.mxu0 %v803
  %2385 = vmatmul.mubr.bf16.gmra.mrb[0].mxu0 %v802
  %v2386 = vpop.f32.mrb[0].mxu0
  %v2387 = vadd.f32 %v2194, %v2386
  %v2388 = vpop.f32.mrb[0].mxu0
  %v2389 = vadd.f32 %v2196, %v2388
  %v2390 = vpop.f32.mrb[0].mxu0
  %v2391 = vadd.f32 %v2198, %v2390
  %v2392 = vpop.f32.mrb[0].mxu0
  %v2393 = vadd.f32 %v2200, %v2392
  %2394 = vmatprep.mubr.bf16.mxu0 %v810
  %2395 = vmatmul.mubr.bf16.gmra.mrb[0].mxu0 %v809
  %v2396 = vpop.f32.mrb[0].mxu0
  %v2397 = vadd.f32 %v2204, %v2396
  %v2398 = vpop.f32.mrb[0].mxu0
  %v2399 = vadd.f32 %v2206, %v2398
  %v2400 = vpop.f32.mrb[0].mxu0
  %v2401 = vadd.f32 %v2208, %v2400
  %v2402 = vpop.f32.mrb[0].mxu0
  %v2403 = vadd.f32 %v2210, %v2402
  %2404 = vmatprep.mubr.bf16.mxu0 %v817
  %2405 = vmatmul.mubr.bf16.gmra.mrb[0].mxu0 %v816
  %v2406 = vpop.f32.mrb[0].mxu0
  %v2407 = vadd.f32 %v2214, %v2406
  %v2408 = vpop.f32.mrb[0].mxu0
  %v2409 = vadd.f32 %v2216, %v2408
  %v2410 = vpop.f32.mrb[0].mxu0
  %v2411 = vadd.f32 %v2218, %v2410
  %v2412 = vpop.f32.mrb[0].mxu0
  %v2413 = vadd.f32 %v2220, %v2412
  %2414 = vmatprep.mubr.bf16.mxu0 %v824
  %2415 = vmatmul.mubr.bf16.gmra.mrb[0].mxu0 %v823
  %v2416 = vpop.f32.mrb[0].mxu0
  %v2417 = vadd.f32 %v2224, %v2416
  %v2418 = vpop.f32.mrb[0].mxu0
  %v2419 = vadd.f32 %v2226, %v2418
  %v2420 = vpop.f32.mrb[0].mxu0
  %v2421 = vadd.f32 %v2228, %v2420
  %v2422 = vpop.f32.mrb[0].mxu0
  %v2423 = vadd.f32 %v2230, %v2422
  %2424 = vmatprep.mubr.bf16.mxu0 %v831
  %2425 = vmatmul.mubr.bf16.gmra.mrb[0].mxu0 %v830
  %v2426 = vpop.f32.mrb[0].mxu0
  %v2427 = vadd.f32 %v2234, %v2426
  %v2428 = vpop.f32.mrb[0].mxu0
  %v2429 = vadd.f32 %v2236, %v2428
  %v2430 = vpop.f32.mrb[0].mxu0
  %v2431 = vadd.f32 %v2238, %v2430
  %v2432 = vpop.f32.mrb[0].mxu0
  %v2433 = vadd.f32 %v2240, %v2432
  %2434 = vmatprep.mubr.bf16.mxu0 %v838
  %2435 = vmatmul.mubr.bf16.gmra.mrb[0].mxu0 %v837
  %v2436 = vpop.f32.mrb[0].mxu0
  %v2437 = vadd.f32 %v2244, %v2436
  %v2438 = vpop.f32.mrb[0].mxu0
  %v2439 = vadd.f32 %v2246, %v2438
  %v2440 = vpop.f32.mrb[0].mxu0
  %v2441 = vadd.f32 %v2248, %v2440
  %v2442 = vpop.f32.mrb[0].mxu0
  %v2443 = vadd.f32 %v2250, %v2442
  %2444 = vmatprep.mubr.bf16.mxu0 %v845
  %2445 = vmatmul.mubr.bf16.gmra.mrb[0].mxu0 %v844
  %v2446 = vpop.f32.mrb[0].mxu0
  %v2447 = vadd.f32 %v2254, %v2446
  %v2448 = vpop.f32.mrb[0].mxu0
  %v2449 = vadd.f32 %v2256, %v2448
  %v2450 = vpop.f32.mrb[0].mxu0
  %v2451 = vadd.f32 %v2258, %v2450
  %v2452 = vpop.f32.mrb[0].mxu0
  %v2453 = vadd.f32 %v2260, %v2452
  %2454 = vmatprep.mubr.bf16.mxu0 %v852
  %2455 = vmatmul.mubr.bf16.gmra.mrb[0].mxu0 %v851
  %v2456 = vpop.f32.mrb[0].mxu0
  %v2457 = vadd.f32 %v2264, %v2456
  %v2458 = vpop.f32.mrb[0].mxu0
  %v2459 = vadd.f32 %v2266, %v2458
  %v2460 = vpop.f32.mrb[0].mxu0
  %v2461 = vadd.f32 %v2268, %v2460
  %v2462 = vpop.f32.mrb[0].mxu0
  %v2463 = vadd.f32 %v2270, %v2462
  %2464 = vmatprep.mubr.bf16.mxu0 %v859
  %2465 = vmatmul.mubr.bf16.gmra.mrb[0].mxu0 %v858
  %v2466 = vpop.f32.mrb[0].mxu0
  %v2467 = vadd.f32 %v2274, %v2466
  %v2468 = vpop.f32.mrb[0].mxu0
  %v2469 = vadd.f32 %v2276, %v2468
  %v2470 = vpop.f32.mrb[0].mxu0
  %v2471 = vadd.f32 %v2278, %v2470
  %v2472 = vpop.f32.mrb[0].mxu0
  %v2473 = vadd.f32 %v2280, %v2472
  %2474 = vmatprep.mubr.bf16.mxu0 %v866
  %2475 = vmatmul.mubr.bf16.gmra.mrb[0].mxu0 %v865
  %v2476 = vpop.f32.mrb[0].mxu0
  %v2477 = vadd.f32 %v2284, %v2476
  %v2478 = vpop.f32.mrb[0].mxu0
  %v2479 = vadd.f32 %v2286, %v2478
  %v2480 = vpop.f32.mrb[0].mxu0
  %v2481 = vadd.f32 %v2288, %v2480
  %v2482 = vpop.f32.mrb[0].mxu0
  %v2483 = vadd.f32 %v2290, %v2482
  %2484 = vmatprep.mubr.bf16.mxu0 %v873
  %2485 = vmatmul.mubr.bf16.gmra.mrb[0].mxu0 %v872
  %v2486 = vpop.f32.mrb[0].mxu0
  %v2487 = vadd.f32 %v2294, %v2486
  %v2488 = vpop.f32.mrb[0].mxu0
  %v2489 = vadd.f32 %v2296, %v2488
  %v2490 = vpop.f32.mrb[0].mxu0
  %v2491 = vadd.f32 %v2298, %v2490
  %v2492 = vpop.f32.mrb[0].mxu0
  %v2493 = vadd.f32 %v2300, %v2492
  %2494 = vdwg.mxu0
  %2495 = vmatprep.subr.bf16.mxu0 %v1790
  %2496 = vmatpush1.bf16.msra.mxu0 %v1789
  %2497 = vmatprep.subr.bf16.mxu0 %v1794
  %2498 = vmatpush1.bf16.msra.mxu0 %v1793
  %2499 = vmatprep.subr.bf16.mxu0 %v1798
  %2500 = vmatpush1.bf16.msra.mxu0 %v1797
  %2501 = vmatprep.subr.bf16.mxu0 %v1802
  %2502 = vmatpush1.bf16.msra.mxu0 %v1801
  %2503 = vmatprep.subr.bf16.mxu0 %v1806
  %2504 = vmatpush1.bf16.msra.mxu0 %v1805
  %2505 = vmatprep.subr.bf16.mxu0 %v1810
  %2506 = vmatpush1.bf16.msra.mxu0 %v1809
  %2507 = vmatprep.subr.bf16.mxu0 %v1814
  %2508 = vmatpush1.bf16.msra.mxu0 %v1813
  %2509 = vmatprep.subr.bf16.mxu0 %v1818
  %2510 = vmatpush1.bf16.msra.mxu0 %v1817
  %2511 = vmatprep.subr.bf16.mxu0 %v1822
  %2512 = vmatpush1.bf16.msra.mxu0 %v1821
  %2513 = vmatprep.subr.bf16.mxu0 %v1826
  %2514 = vmatpush1.bf16.msra.mxu0 %v1825
  %2515 = vmatprep.subr.bf16.mxu0 %v1830
  %2516 = vmatpush1.bf16.msra.mxu0 %v1829
  %2517 = vmatprep.subr.bf16.mxu0 %v1834
  %2518 = vmatpush1.bf16.msra.mxu0 %v1833
  %2519 = vmatprep.subr.bf16.mxu0 %v1838
  %2520 = vmatpush1.bf16.msra.mxu0 %v1837
  %2521 = vmatprep.subr.bf16.mxu0 %v1842
  %2522 = vmatpush1.bf16.msra.mxu0 %v1841
  %2523 = vmatprep.subr.bf16.mxu0 %v1846
  %2524 = vmatpush1.bf16.msra.mxu0 %v1845
  %2525 = vmatprep.subr.bf16.mxu0 %v1850
  %2526 = vmatpush1.bf16.msra.mxu0 %v1849
  %2527 = vmatprep.mubr.bf16.mxu0 %v770
  %2528 = vmatmul.mubr.bf16.gmra.mrb[0].mxu0 %v769
  %v2529 = vpop.f32.mrb[0].mxu0
  %v2530 = vadd.f32 %v2337, %v2529
  %v2531 = vpop.f32.mrb[0].mxu0
  %v2532 = vadd.f32 %v2339, %v2531
  %v2533 = vpop.f32.mrb[0].mxu0
  %v2534 = vadd.f32 %v2341, %v2533
  %v2535 = vpop.f32.mrb[0].mxu0
  %v2536 = vadd.f32 %v2343, %v2535
  %2537 = vmatprep.mubr.bf16.mxu0 %v777
  %2538 = vmatmul.mubr.bf16.gmra.mrb[0].mxu0 %v776
  %v2539 = vpop.f32.mrb[0].mxu0
  %v2540 = vadd.f32 %v2347, %v2539
  %v2541 = vpop.f32.mrb[0].mxu0
  %v2542 = vadd.f32 %v2349, %v2541
  %v2543 = vpop.f32.mrb[0].mxu0
  %v2544 = vadd.f32 %v2351, %v2543
  %v2545 = vpop.f32.mrb[0].mxu0
  %v2546 = vadd.f32 %v2353, %v2545
  %2547 = vmatprep.mubr.bf16.mxu0 %v784
  %2548 = vmatmul.mubr.bf16.gmra.mrb[0].mxu0 %v783
  %v2549 = vpop.f32.mrb[0].mxu0
  %v2550 = vadd.f32 %v2357, %v2549
  %v2551 = vpop.f32.mrb[0].mxu0
  %v2552 = vadd.f32 %v2359, %v2551
  %v2553 = vpop.f32.mrb[0].mxu0
  %v2554 = vadd.f32 %v2361, %v2553
  %v2555 = vpop.f32.mrb[0].mxu0
  %v2556 = vadd.f32 %v2363, %v2555
  %2557 = vmatprep.mubr.bf16.mxu0 %v791
  %2558 = vmatmul.mubr.bf16.gmra.mrb[0].mxu0 %v790
  %v2559 = vpop.f32.mrb[0].mxu0
  %v2560 = vadd.f32 %v2367, %v2559
  %v2561 = vpop.f32.mrb[0].mxu0
  %v2562 = vadd.f32 %v2369, %v2561
  %v2563 = vpop.f32.mrb[0].mxu0
  %v2564 = vadd.f32 %v2371, %v2563
  %v2565 = vpop.f32.mrb[0].mxu0
  %v2566 = vadd.f32 %v2373, %v2565
  %2567 = vmatprep.mubr.bf16.mxu0 %v798
  %2568 = vmatmul.mubr.bf16.gmra.mrb[0].mxu0 %v797
  %v2569 = vpop.f32.mrb[0].mxu0
  %v2570 = vadd.f32 %v2377, %v2569
  %v2571 = vpop.f32.mrb[0].mxu0
  %v2572 = vadd.f32 %v2379, %v2571
  %v2573 = vpop.f32.mrb[0].mxu0
  %v2574 = vadd.f32 %v2381, %v2573
  %v2575 = vpop.f32.mrb[0].mxu0
  %v2576 = vadd.f32 %v2383, %v2575
  %2577 = vmatprep.mubr.bf16.mxu0 %v805
  %2578 = vmatmul.mubr.bf16.gmra.mrb[0].mxu0 %v804
  %v2579 = vpop.f32.mrb[0].mxu0
  %v2580 = vadd.f32 %v2387, %v2579
  %v2581 = vpop.f32.mrb[0].mxu0
  %v2582 = vadd.f32 %v2389, %v2581
  %v2583 = vpop.f32.mrb[0].mxu0
  %v2584 = vadd.f32 %v2391, %v2583
  %v2585 = vpop.f32.mrb[0].mxu0
  %v2586 = vadd.f32 %v2393, %v2585
  %2587 = vmatprep.mubr.bf16.mxu0 %v812
  %2588 = vmatmul.mubr.bf16.gmra.mrb[0].mxu0 %v811
  %v2589 = vpop.f32.mrb[0].mxu0
  %v2590 = vadd.f32 %v2397, %v2589
  %v2591 = vpop.f32.mrb[0].mxu0
  %v2592 = vadd.f32 %v2399, %v2591
  %v2593 = vpop.f32.mrb[0].mxu0
  %v2594 = vadd.f32 %v2401, %v2593
  %v2595 = vpop.f32.mrb[0].mxu0
  %v2596 = vadd.f32 %v2403, %v2595
  %2597 = vmatprep.mubr.bf16.mxu0 %v819
  %2598 = vmatmul.mubr.bf16.gmra.mrb[0].mxu0 %v818
  %v2599 = vpop.f32.mrb[0].mxu0
  %v2600 = vadd.f32 %v2407, %v2599
  %v2601 = vpop.f32.mrb[0].mxu0
  %v2602 = vadd.f32 %v2409, %v2601
  %v2603 = vpop.f32.mrb[0].mxu0
  %v2604 = vadd.f32 %v2411, %v2603
  %v2605 = vpop.f32.mrb[0].mxu0
  %v2606 = vadd.f32 %v2413, %v2605
  %2607 = vmatprep.mubr.bf16.mxu0 %v826
  %2608 = vmatmul.mubr.bf16.gmra.mrb[0].mxu0 %v825
  %v2609 = vpop.f32.mrb[0].mxu0
  %v2610 = vadd.f32 %v2417, %v2609
  %v2611 = vpop.f32.mrb[0].mxu0
  %v2612 = vadd.f32 %v2419, %v2611
  %v2613 = vpop.f32.mrb[0].mxu0
  %v2614 = vadd.f32 %v2421, %v2613
  %v2615 = vpop.f32.mrb[0].mxu0
  %v2616 = vadd.f32 %v2423, %v2615
  %2617 = vmatprep.mubr.bf16.mxu0 %v833
  %2618 = vmatmul.mubr.bf16.gmra.mrb[0].mxu0 %v832
  %v2619 = vpop.f32.mrb[0].mxu0
  %v2620 = vadd.f32 %v2427, %v2619
  %v2621 = vpop.f32.mrb[0].mxu0
  %v2622 = vadd.f32 %v2429, %v2621
  %v2623 = vpop.f32.mrb[0].mxu0
  %v2624 = vadd.f32 %v2431, %v2623
  %v2625 = vpop.f32.mrb[0].mxu0
  %v2626 = vadd.f32 %v2433, %v2625
  %2627 = vmatprep.mubr.bf16.mxu0 %v840
  %2628 = vmatmul.mubr.bf16.gmra.mrb[0].mxu0 %v839
  %v2629 = vpop.f32.mrb[0].mxu0
  %v2630 = vadd.f32 %v2437, %v2629
  %v2631 = vpop.f32.mrb[0].mxu0
  %v2632 = vadd.f32 %v2439, %v2631
  %v2633 = vpop.f32.mrb[0].mxu0
  %v2634 = vadd.f32 %v2441, %v2633
  %v2635 = vpop.f32.mrb[0].mxu0
  %v2636 = vadd.f32 %v2443, %v2635
  %2637 = vmatprep.mubr.bf16.mxu0 %v847
  %2638 = vmatmul.mubr.bf16.gmra.mrb[0].mxu0 %v846
  %v2639 = vpop.f32.mrb[0].mxu0
  %v2640 = vadd.f32 %v2447, %v2639
  %v2641 = vpop.f32.mrb[0].mxu0
  %v2642 = vadd.f32 %v2449, %v2641
  %v2643 = vpop.f32.mrb[0].mxu0
  %v2644 = vadd.f32 %v2451, %v2643
  %v2645 = vpop.f32.mrb[0].mxu0
  %v2646 = vadd.f32 %v2453, %v2645
  %2647 = vmatprep.mubr.bf16.mxu0 %v854
  %2648 = vmatmul.mubr.bf16.gmra.mrb[0].mxu0 %v853
  %v2649 = vpop.f32.mrb[0].mxu0
  %v2650 = vadd.f32 %v2457, %v2649
  %v2651 = vpop.f32.mrb[0].mxu0
  %v2652 = vadd.f32 %v2459, %v2651
  %v2653 = vpop.f32.mrb[0].mxu0
  %v2654 = vadd.f32 %v2461, %v2653
  %v2655 = vpop.f32.mrb[0].mxu0
  %v2656 = vadd.f32 %v2463, %v2655
  %2657 = vmatprep.mubr.bf16.mxu0 %v861
  %2658 = vmatmul.mubr.bf16.gmra.mrb[0].mxu0 %v860
  %v2659 = vpop.f32.mrb[0].mxu0
  %v2660 = vadd.f32 %v2467, %v2659
  %v2661 = vpop.f32.mrb[0].mxu0
  %v2662 = vadd.f32 %v2469, %v2661
  %v2663 = vpop.f32.mrb[0].mxu0
  %v2664 = vadd.f32 %v2471, %v2663
  %v2665 = vpop.f32.mrb[0].mxu0
  %v2666 = vadd.f32 %v2473, %v2665
  %2667 = vmatprep.mubr.bf16.mxu0 %v868
  %2668 = vmatmul.mubr.bf16.gmra.mrb[0].mxu0 %v867
  %v2669 = vpop.f32.mrb[0].mxu0
  %v2670 = vadd.f32 %v2477, %v2669
  %v2671 = vpop.f32.mrb[0].mxu0
  %v2672 = vadd.f32 %v2479, %v2671
  %v2673 = vpop.f32.mrb[0].mxu0
  %v2674 = vadd.f32 %v2481, %v2673
  %v2675 = vpop.f32.mrb[0].mxu0
  %v2676 = vadd.f32 %v2483, %v2675
  %2677 = vmatprep.mubr.bf16.mxu0 %v875
  %2678 = vmatmul.mubr.bf16.gmra.mrb[0].mxu0 %v874
  %v2679 = vpop.f32.mrb[0].mxu0
  %v2680 = vadd.f32 %v2487, %v2679
  %v2681 = vpop.f32.mrb[0].mxu0
  %v2682 = vadd.f32 %v2489, %v2681
  %v2683 = vpop.f32.mrb[0].mxu0
  %v2684 = vadd.f32 %v2491, %v2683
  %v2685 = vpop.f32.mrb[0].mxu0
  %v2686 = vadd.f32 %v2493, %v2685
  %2687 = vdwg.mxu0
  %2688 = vmatprep.subr.bf16.mxu0 %v1854
  %2689 = vmatpush1.bf16.msra.mxu0 %v1853
  %2690 = vmatprep.subr.bf16.mxu0 %v1858
  %2691 = vmatpush1.bf16.msra.mxu0 %v1857
  %2692 = vmatprep.subr.bf16.mxu0 %v1862
  %2693 = vmatpush1.bf16.msra.mxu0 %v1861
  %2694 = vmatprep.subr.bf16.mxu0 %v1866
  %2695 = vmatpush1.bf16.msra.mxu0 %v1865
  %2696 = vmatprep.subr.bf16.mxu0 %v1870
  %2697 = vmatpush1.bf16.msra.mxu0 %v1869
  %2698 = vmatprep.subr.bf16.mxu0 %v1874
  %2699 = vmatpush1.bf16.msra.mxu0 %v1873
  %2700 = vmatprep.subr.bf16.mxu0 %v1878
  %2701 = vmatpush1.bf16.msra.mxu0 %v1877
  %2702 = vmatprep.subr.bf16.mxu0 %v1882
  %2703 = vmatpush1.bf16.msra.mxu0 %v1881
  %2704 = vmatprep.subr.bf16.mxu0 0
  %2705 = vmatpush1.bf16.msra.mxu0 0
  %2706 = vmatprep.subr.bf16.mxu0 0
  %2707 = vmatpush1.bf16.msra.mxu0 0
  %2708 = vmatprep.subr.bf16.mxu0 0
  %2709 = vmatpush1.bf16.msra.mxu0 0
  %2710 = vmatprep.subr.bf16.mxu0 0
  %2711 = vmatpush1.bf16.msra.mxu0 0
  %2712 = vmatprep.subr.bf16.mxu0 0
  %2713 = vmatpush1.bf16.msra.mxu0 0
  %2714 = vmatprep.subr.bf16.mxu0 0
  %2715 = vmatpush1.bf16.msra.mxu0 0
  %2716 = vmatprep.subr.bf16.mxu0 0
  %2717 = vmatpush1.bf16.msra.mxu0 0
  %2718 = vmatprep.subr.bf16.mxu0 0
  %2719 = vmatpush1.bf16.msra.mxu0 0
  %2720 = vmatprep.mubr.bf16.mxu0 0
  %2721 = vmatmul.mubr.bf16.gmra.mrb[0].mxu0 %v771
  %v2722 = vpop.f32.mrb[0].mxu0
  %v2723 = vadd.f32 %v2530, %v2722
  %v2724 = vpop.f32.mrb[0].mxu0
  %v2725 = vadd.f32 %v2532, %v2724
  %v2726 = vpop.f32.mrb[0].mxu0
  %v2727 = vadd.f32 %v2534, %v2726
  %v2728 = vpop.f32.mrb[0].mxu0
  %v2729 = vadd.f32 %v2536, %v2728
  %2730 = vmatprep.mubr.bf16.mxu0 0
  %2731 = vmatmul.mubr.bf16.gmra.mrb[0].mxu0 %v778
  %v2732 = vpop.f32.mrb[0].mxu0
  %v2733 = vadd.f32 %v2540, %v2732
  %v2734 = vpop.f32.mrb[0].mxu0
  %v2735 = vadd.f32 %v2542, %v2734
  %v2736 = vpop.f32.mrb[0].mxu0
  %v2737 = vadd.f32 %v2544, %v2736
  %v2738 = vpop.f32.mrb[0].mxu0
  %v2739 = vadd.f32 %v2546, %v2738
  %2740 = vmatprep.mubr.bf16.mxu0 0
  %2741 = vmatmul.mubr.bf16.gmra.mrb[0].mxu0 %v785
  %v2742 = vpop.f32.mrb[0].mxu0
  %v2743 = vadd.f32 %v2550, %v2742
  %v2744 = vpop.f32.mrb[0].mxu0
  %v2745 = vadd.f32 %v2552, %v2744
  %v2746 = vpop.f32.mrb[0].mxu0
  %v2747 = vadd.f32 %v2554, %v2746
  %v2748 = vpop.f32.mrb[0].mxu0
  %v2749 = vadd.f32 %v2556, %v2748
  %2750 = vmatprep.mubr.bf16.mxu0 0
  %2751 = vmatmul.mubr.bf16.gmra.mrb[0].mxu0 %v792
  %v2752 = vpop.f32.mrb[0].mxu0
  %v2753 = vadd.f32 %v2560, %v2752
  %v2754 = vpop.f32.mrb[0].mxu0
  %v2755 = vadd.f32 %v2562, %v2754
  %v2756 = vpop.f32.mrb[0].mxu0
  %v2757 = vadd.f32 %v2564, %v2756
  %v2758 = vpop.f32.mrb[0].mxu0
  %v2759 = vadd.f32 %v2566, %v2758
  %2760 = vmatprep.mubr.bf16.mxu0 0
  %2761 = vmatmul.mubr.bf16.gmra.mrb[0].mxu0 %v799
  %v2762 = vpop.f32.mrb[0].mxu0
  %v2763 = vadd.f32 %v2570, %v2762
  %v2764 = vpop.f32.mrb[0].mxu0
  %v2765 = vadd.f32 %v2572, %v2764
  %v2766 = vpop.f32.mrb[0].mxu0
  %v2767 = vadd.f32 %v2574, %v2766
  %v2768 = vpop.f32.mrb[0].mxu0
  %v2769 = vadd.f32 %v2576, %v2768
  %2770 = vmatprep.mubr.bf16.mxu0 0
  %2771 = vmatmul.mubr.bf16.gmra.mrb[0].mxu0 %v806
  %v2772 = vpop.f32.mrb[0].mxu0
  %v2773 = vadd.f32 %v2580, %v2772
  %v2774 = vpop.f32.mrb[0].mxu0
  %v2775 = vadd.f32 %v2582, %v2774
  %v2776 = vpop.f32.mrb[0].mxu0
  %v2777 = vadd.f32 %v2584, %v2776
  %v2778 = vpop.f32.mrb[0].mxu0
  %v2779 = vadd.f32 %v2586, %v2778
  %2780 = vmatprep.mubr.bf16.mxu0 0
  %2781 = vmatmul.mubr.bf16.gmra.mrb[0].mxu0 %v813
  %v2782 = vpop.f32.mrb[0].mxu0
  %v2783 = vadd.f32 %v2590, %v2782
  %v2784 = vpop.f32.mrb[0].mxu0
  %v2785 = vadd.f32 %v2592, %v2784
  %v2786 = vpop.f32.mrb[0].mxu0
  %v2787 = vadd.f32 %v2594, %v2786
  %v2788 = vpop.f32.mrb[0].mxu0
  %v2789 = vadd.f32 %v2596, %v2788
  %2790 = vmatprep.mubr.bf16.mxu0 0
  %2791 = vmatmul.mubr.bf16.gmra.mrb[0].mxu0 %v820
  %v2792 = vpop.f32.mrb[0].mxu0
  %v2793 = vadd.f32 %v2600, %v2792
  %v2794 = vpop.f32.mrb[0].mxu0
  %v2795 = vadd.f32 %v2602, %v2794
  %v2796 = vpop.f32.mrb[0].mxu0
  %v2797 = vadd.f32 %v2604, %v2796
  %v2798 = vpop.f32.mrb[0].mxu0
  %v2799 = vadd.f32 %v2606, %v2798
  %2800 = vmatprep.mubr.bf16.mxu0 0
  %2801 = vmatmul.mubr.bf16.gmra.mrb[0].mxu0 %v827
  %v2802 = vpop.f32.mrb[0].mxu0
  %v2803 = vadd.f32 %v2610, %v2802
  %v2804 = vpop.f32.mrb[0].mxu0
  %v2805 = vadd.f32 %v2612, %v2804
  %v2806 = vpop.f32.mrb[0].mxu0
  %v2807 = vadd.f32 %v2614, %v2806
  %v2808 = vpop.f32.mrb[0].mxu0
  %v2809 = vadd.f32 %v2616, %v2808
  %2810 = vmatprep.mubr.bf16.mxu0 0
  %2811 = vmatmul.mubr.bf16.gmra.mrb[0].mxu0 %v834
  %v2812 = vpop.f32.mrb[0].mxu0
  %v2813 = vadd.f32 %v2620, %v2812
  %v2814 = vpop.f32.mrb[0].mxu0
  %v2815 = vadd.f32 %v2622, %v2814
  %v2816 = vpop.f32.mrb[0].mxu0
  %v2817 = vadd.f32 %v2624, %v2816
  %v2818 = vpop.f32.mrb[0].mxu0
  %v2819 = vadd.f32 %v2626, %v2818
  %2820 = vmatprep.mubr.bf16.mxu0 0
  %2821 = vmatmul.mubr.bf16.gmra.mrb[0].mxu0 %v841
  %v2822 = vpop.f32.mrb[0].mxu0
  %v2823 = vadd.f32 %v2630, %v2822
  %v2824 = vpop.f32.mrb[0].mxu0
  %v2825 = vadd.f32 %v2632, %v2824
  %v2826 = vpop.f32.mrb[0].mxu0
  %v2827 = vadd.f32 %v2634, %v2826
  %v2828 = vpop.f32.mrb[0].mxu0
  %v2829 = vadd.f32 %v2636, %v2828
  %2830 = vmatprep.mubr.bf16.mxu0 0
  %2831 = vmatmul.mubr.bf16.gmra.mrb[0].mxu0 %v848
  %v2832 = vpop.f32.mrb[0].mxu0
  %v2833 = vadd.f32 %v2640, %v2832
  %v2834 = vpop.f32.mrb[0].mxu0
  %v2835 = vadd.f32 %v2642, %v2834
  %v2836 = vpop.f32.mrb[0].mxu0
  %v2837 = vadd.f32 %v2644, %v2836
  %v2838 = vpop.f32.mrb[0].mxu0
  %v2839 = vadd.f32 %v2646, %v2838
  %2840 = vmatprep.mubr.bf16.mxu0 0
  %2841 = vmatmul.mubr.bf16.gmra.mrb[0].mxu0 %v855
  %v2842 = vpop.f32.mrb[0].mxu0
  %v2843 = vadd.f32 %v2650, %v2842
  %v2844 = vpop.f32.mrb[0].mxu0
  %v2845 = vadd.f32 %v2652, %v2844
  %v2846 = vpop.f32.mrb[0].mxu0
  %v2847 = vadd.f32 %v2654, %v2846
  %v2848 = vpop.f32.mrb[0].mxu0
  %v2849 = vadd.f32 %v2656, %v2848
  %2850 = vmatprep.mubr.bf16.mxu0 0
  %2851 = vmatmul.mubr.bf16.gmra.mrb[0].mxu0 %v862
  %v2852 = vpop.f32.mrb[0].mxu0
  %v2853 = vadd.f32 %v2660, %v2852
  %v2854 = vpop.f32.mrb[0].mxu0
  %v2855 = vadd.f32 %v2662, %v2854
  %v2856 = vpop.f32.mrb[0].mxu0
  %v2857 = vadd.f32 %v2664, %v2856
  %v2858 = vpop.f32.mrb[0].mxu0
  %v2859 = vadd.f32 %v2666, %v2858
  %2860 = vmatprep.mubr.bf16.mxu0 0
  %2861 = vmatmul.mubr.bf16.gmra.mrb[0].mxu0 %v869
  %v2862 = vpop.f32.mrb[0].mxu0
  %v2863 = vadd.f32 %v2670, %v2862
  %v2864 = vpop.f32.mrb[0].mxu0
  %v2865 = vadd.f32 %v2672, %v2864
  %v2866 = vpop.f32.mrb[0].mxu0
  %v2867 = vadd.f32 %v2674, %v2866
  %v2868 = vpop.f32.mrb[0].mxu0
  %v2869 = vadd.f32 %v2676, %v2868
  %2870 = vmatprep.mubr.bf16.mxu0 0
  %2871 = vmatmul.mubr.bf16.gmra.mrb[0].mxu0 %v876
  %v2872 = vpop.f32.mrb[0].mxu0
  %v2873 = vadd.f32 %v2680, %v2872
  %v2874 = vpop.f32.mrb[0].mxu0
  %v2875 = vadd.f32 %v2682, %v2874
  %v2876 = vpop.f32.mrb[0].mxu0
  %v2877 = vadd.f32 %v2684, %v2876
  %v2878 = vpop.f32.mrb[0].mxu0
  %v2879 = vadd.f32 %v2686, %v2878
  %2880 = vdwg.mxu0
  %2881 = vmatprep.subr.bf16.mxu0 %v1664
  %2882 = vmatpush1.bf16.msra.mxu0 %v1663
  %2883 = vmatprep.subr.bf16.mxu0 %v1668
  %2884 = vmatpush1.bf16.msra.mxu0 %v1667
  %2885 = vmatprep.subr.bf16.mxu0 %v1672
  %2886 = vmatpush1.bf16.msra.mxu0 %v1671
  %2887 = vmatprep.subr.bf16.mxu0 %v1676
  %2888 = vmatpush1.bf16.msra.mxu0 %v1675
  %2889 = vmatprep.subr.bf16.mxu0 %v1680
  %2890 = vmatpush1.bf16.msra.mxu0 %v1679
  %2891 = vmatprep.subr.bf16.mxu0 %v1684
  %2892 = vmatpush1.bf16.msra.mxu0 %v1683
  %2893 = vmatprep.subr.bf16.mxu0 %v1688
  %2894 = vmatpush1.bf16.msra.mxu0 %v1687
  %2895 = vmatprep.subr.bf16.mxu0 %v1692
  %2896 = vmatpush1.bf16.msra.mxu0 %v1691
  %2897 = vmatprep.subr.bf16.mxu0 %v1696
  %2898 = vmatpush1.bf16.msra.mxu0 %v1695
  %2899 = vmatprep.subr.bf16.mxu0 %v1700
  %2900 = vmatpush1.bf16.msra.mxu0 %v1699
  %2901 = vmatprep.subr.bf16.mxu0 %v1704
  %2902 = vmatpush1.bf16.msra.mxu0 %v1703
  %2903 = vmatprep.subr.bf16.mxu0 %v1708
  %2904 = vmatpush1.bf16.msra.mxu0 %v1707
  %2905 = vmatprep.subr.bf16.mxu0 %v1712
  %2906 = vmatpush1.bf16.msra.mxu0 %v1711
  %2907 = vmatprep.subr.bf16.mxu0 %v1716
  %2908 = vmatpush1.bf16.msra.mxu0 %v1715
  %2909 = vmatprep.subr.bf16.mxu0 %v1720
  %2910 = vmatpush1.bf16.msra.mxu0 %v1719
  %2911 = vmatprep.subr.bf16.mxu0 %v1724
  %2912 = vmatpush1.bf16.msra.mxu0 %v1723
  %2913 = vmatprep.mubr.bf16.mxu0 %v766
  %2914 = vmatmul.mubr.bf16.gmra.mrb[0].mxu0 %v765
  %v2915 = vpop.f32.mrb[0].mxu0
  %v2916 = vadd.f32 %v404, %v2915
  %v2917 = vpop.f32.mrb[0].mxu0
  %v2918 = vadd.f32 %v408, %v2917
  %v2919 = vpop.f32.mrb[0].mxu0
  %v2920 = vadd.f32 %v404, %v2919
  %v2921 = vpop.f32.mrb[0].mxu0
  %v2922 = vadd.f32 %v408, %v2921
  %2923 = vmatprep.mubr.bf16.mxu0 %v773
  %2924 = vmatmul.mubr.bf16.gmra.mrb[0].mxu0 %v772
  %v2925 = vpop.f32.mrb[0].mxu0
  %v2926 = vadd.f32 %v404, %v2925
  %v2927 = vpop.f32.mrb[0].mxu0
  %v2928 = vadd.f32 %v408, %v2927
  %v2929 = vpop.f32.mrb[0].mxu0
  %v2930 = vadd.f32 %v404, %v2929
  %v2931 = vpop.f32.mrb[0].mxu0
  %v2932 = vadd.f32 %v408, %v2931
  %2933 = vmatprep.mubr.bf16.mxu0 %v780
  %2934 = vmatmul.mubr.bf16.gmra.mrb[0].mxu0 %v779
  %v2935 = vpop.f32.mrb[0].mxu0
  %v2936 = vadd.f32 %v404, %v2935
  %v2937 = vpop.f32.mrb[0].mxu0
  %v2938 = vadd.f32 %v408, %v2937
  %v2939 = vpop.f32.mrb[0].mxu0
  %v2940 = vadd.f32 %v404, %v2939
  %v2941 = vpop.f32.mrb[0].mxu0
  %v2942 = vadd.f32 %v408, %v2941
  %2943 = vmatprep.mubr.bf16.mxu0 %v787
  %2944 = vmatmul.mubr.bf16.gmra.mrb[0].mxu0 %v786
  %v2945 = vpop.f32.mrb[0].mxu0
  %v2946 = vadd.f32 %v404, %v2945
  %v2947 = vpop.f32.mrb[0].mxu0
  %v2948 = vadd.f32 %v408, %v2947
  %v2949 = vpop.f32.mrb[0].mxu0
  %v2950 = vadd.f32 %v404, %v2949
  %v2951 = vpop.f32.mrb[0].mxu0
  %v2952 = vadd.f32 %v408, %v2951
  %2953 = vmatprep.mubr.bf16.mxu0 %v794
  %2954 = vmatmul.mubr.bf16.gmra.mrb[0].mxu0 %v793
  %v2955 = vpop.f32.mrb[0].mxu0
  %v2956 = vadd.f32 %v404, %v2955
  %v2957 = vpop.f32.mrb[0].mxu0
  %v2958 = vadd.f32 %v408, %v2957
  %v2959 = vpop.f32.mrb[0].mxu0
  %v2960 = vadd.f32 %v404, %v2959
  %v2961 = vpop.f32.mrb[0].mxu0
  %v2962 = vadd.f32 %v408, %v2961
  %2963 = vmatprep.mubr.bf16.mxu0 %v801
  %2964 = vmatmul.mubr.bf16.gmra.mrb[0].mxu0 %v800
  %v2965 = vpop.f32.mrb[0].mxu0
  %v2966 = vadd.f32 %v404, %v2965
  %v2967 = vpop.f32.mrb[0].mxu0
  %v2968 = vadd.f32 %v408, %v2967
  %v2969 = vpop.f32.mrb[0].mxu0
  %v2970 = vadd.f32 %v404, %v2969
  %v2971 = vpop.f32.mrb[0].mxu0
  %v2972 = vadd.f32 %v408, %v2971
  %2973 = vmatprep.mubr.bf16.mxu0 %v808
  %2974 = vmatmul.mubr.bf16.gmra.mrb[0].mxu0 %v807
  %v2975 = vpop.f32.mrb[0].mxu0
  %v2976 = vadd.f32 %v404, %v2975
  %v2977 = vpop.f32.mrb[0].mxu0
  %v2978 = vadd.f32 %v408, %v2977
  %v2979 = vpop.f32.mrb[0].mxu0
  %v2980 = vadd.f32 %v404, %v2979
  %v2981 = vpop.f32.mrb[0].mxu0
  %v2982 = vadd.f32 %v408, %v2981
  %2983 = vmatprep.mubr.bf16.mxu0 %v815
  %2984 = vmatmul.mubr.bf16.gmra.mrb[0].mxu0 %v814
  %v2985 = vpop.f32.mrb[0].mxu0
  %v2986 = vadd.f32 %v404, %v2985
  %v2987 = vpop.f32.mrb[0].mxu0
  %v2988 = vadd.f32 %v408, %v2987
  %v2989 = vpop.f32.mrb[0].mxu0
  %v2990 = vadd.f32 %v404, %v2989
  %v2991 = vpop.f32.mrb[0].mxu0
  %v2992 = vadd.f32 %v408, %v2991
  %2993 = vmatprep.mubr.bf16.mxu0 %v822
  %2994 = vmatmul.mubr.bf16.gmra.mrb[0].mxu0 %v821
  %v2995 = vpop.f32.mrb[0].mxu0
  %v2996 = vadd.f32 %v404, %v2995
  %v2997 = vpop.f32.mrb[0].mxu0
  %v2998 = vadd.f32 %v408, %v2997
  %v2999 = vpop.f32.mrb[0].mxu0
  %v3000 = vadd.f32 %v404, %v2999
  %v3001 = vpop.f32.mrb[0].mxu0
  %v3002 = vadd.f32 %v408, %v3001
  %3003 = vmatprep.mubr.bf16.mxu0 %v829
  %3004 = vmatmul.mubr.bf16.gmra.mrb[0].mxu0 %v828
  %v3005 = vpop.f32.mrb[0].mxu0
  %v3006 = vadd.f32 %v404, %v3005
  %v3007 = vpop.f32.mrb[0].mxu0
  %v3008 = vadd.f32 %v408, %v3007
  %v3009 = vpop.f32.mrb[0].mxu0
  %v3010 = vadd.f32 %v404, %v3009
  %v3011 = vpop.f32.mrb[0].mxu0
  %v3012 = vadd.f32 %v408, %v3011
  %3013 = vmatprep.mubr.bf16.mxu0 %v836
  %3014 = vmatmul.mubr.bf16.gmra.mrb[0].mxu0 %v835
  %v3015 = vpop.f32.mrb[0].mxu0
  %v3016 = vadd.f32 %v404, %v3015
  %v3017 = vpop.f32.mrb[0].mxu0
  %v3018 = vadd.f32 %v408, %v3017
  %v3019 = vpop.f32.mrb[0].mxu0
  %v3020 = vadd.f32 %v404, %v3019
  %v3021 = vpop.f32.mrb[0].mxu0
  %v3022 = vadd.f32 %v408, %v3021
  %3023 = vmatprep.mubr.bf16.mxu0 %v843
  %3024 = vmatmul.mubr.bf16.gmra.mrb[0].mxu0 %v842
  %v3025 = vpop.f32.mrb[0].mxu0
  %v3026 = vadd.f32 %v404, %v3025
  %v3027 = vpop.f32.mrb[0].mxu0
  %v3028 = vadd.f32 %v408, %v3027
  %v3029 = vpop.f32.mrb[0].mxu0
  %v3030 = vadd.f32 %v404, %v3029
  %v3031 = vpop.f32.mrb[0].mxu0
  %v3032 = vadd.f32 %v408, %v3031
  %3033 = vmatprep.mubr.bf16.mxu0 %v850
  %3034 = vmatmul.mubr.bf16.gmra.mrb[0].mxu0 %v849
  %v3035 = vpop.f32.mrb[0].mxu0
  %v3036 = vadd.f32 %v404, %v3035
  %v3037 = vpop.f32.mrb[0].mxu0
  %v3038 = vadd.f32 %v408, %v3037
  %v3039 = vpop.f32.mrb[0].mxu0
  %v3040 = vadd.f32 %v404, %v3039
  %v3041 = vpop.f32.mrb[0].mxu0
  %v3042 = vadd.f32 %v408, %v3041
  %3043 = vmatprep.mubr.bf16.mxu0 %v857
  %3044 = vmatmul.mubr.bf16.gmra.mrb[0].mxu0 %v856
  %v3045 = vpop.f32.mrb[0].mxu0
  %v3046 = vadd.f32 %v404, %v3045
  %v3047 = vpop.f32.mrb[0].mxu0
  %v3048 = vadd.f32 %v408, %v3047
  %v3049 = vpop.f32.mrb[0].mxu0
  %v3050 = vadd.f32 %v404, %v3049
  %v3051 = vpop.f32.mrb[0].mxu0
  %v3052 = vadd.f32 %v408, %v3051
  %3053 = vmatprep.mubr.bf16.mxu0 %v864
  %3054 = vmatmul.mubr.bf16.gmra.mrb[0].mxu0 %v863
  %v3055 = vpop.f32.mrb[0].mxu0
  %v3056 = vadd.f32 %v404, %v3055
  %v3057 = vpop.f32.mrb[0].mxu0
  %v3058 = vadd.f32 %v408, %v3057
  %v3059 = vpop.f32.mrb[0].mxu0
  %v3060 = vadd.f32 %v404, %v3059
  %v3061 = vpop.f32.mrb[0].mxu0
  %v3062 = vadd.f32 %v408, %v3061
  %3063 = vmatprep.mubr.bf16.mxu0 %v871
  %3064 = vmatmul.mubr.bf16.gmra.mrb[0].mxu0 %v870
  %v3065 = vpop.f32.mrb[0].mxu0
  %v3066 = vadd.f32 %v404, %v3065
  %v3067 = vpop.f32.mrb[0].mxu0
  %v3068 = vadd.f32 %v408, %v3067
  %v3069 = vpop.f32.mrb[0].mxu0
  %v3070 = vadd.f32 %v404, %v3069
  %v3071 = vpop.f32.mrb[0].mxu0
  %v3072 = vadd.f32 %v408, %v3071
  %3073 = vdwg.mxu0
  %3074 = vmatprep.subr.bf16.mxu0 %v1728
  %3075 = vmatpush1.bf16.msra.mxu0 %v1727
  %3076 = vmatprep.subr.bf16.mxu0 %v1732
  %3077 = vmatpush1.bf16.msra.mxu0 %v1731
  %3078 = vmatprep.subr.bf16.mxu0 %v1736
  %3079 = vmatpush1.bf16.msra.mxu0 %v1735
  %3080 = vmatprep.subr.bf16.mxu0 %v1740
  %3081 = vmatpush1.bf16.msra.mxu0 %v1739
  %3082 = vmatprep.subr.bf16.mxu0 %v1744
  %3083 = vmatpush1.bf16.msra.mxu0 %v1743
  %3084 = vmatprep.subr.bf16.mxu0 %v1748
  %3085 = vmatpush1.bf16.msra.mxu0 %v1747
  %3086 = vmatprep.subr.bf16.mxu0 %v1752
  %3087 = vmatpush1.bf16.msra.mxu0 %v1751
  %3088 = vmatprep.subr.bf16.mxu0 %v1756
  %3089 = vmatpush1.bf16.msra.mxu0 %v1755
  %3090 = vmatprep.subr.bf16.mxu0 %v1760
  %3091 = vmatpush1.bf16.msra.mxu0 %v1759
  %3092 = vmatprep.subr.bf16.mxu0 %v1764
  %3093 = vmatpush1.bf16.msra.mxu0 %v1763
  %3094 = vmatprep.subr.bf16.mxu0 %v1768
  %3095 = vmatpush1.bf16.msra.mxu0 %v1767
  %3096 = vmatprep.subr.bf16.mxu0 %v1772
  %3097 = vmatpush1.bf16.msra.mxu0 %v1771
  %3098 = vmatprep.subr.bf16.mxu0 %v1776
  %3099 = vmatpush1.bf16.msra.mxu0 %v1775
  %3100 = vmatprep.subr.bf16.mxu0 %v1780
  %3101 = vmatpush1.bf16.msra.mxu0 %v1779
  %3102 = vmatprep.subr.bf16.mxu0 %v1784
  %3103 = vmatpush1.bf16.msra.mxu0 %v1783
  %3104 = vmatprep.subr.bf16.mxu0 %v1788
  %3105 = vmatpush1.bf16.msra.mxu0 %v1787
  %3106 = vmatprep.mubr.bf16.mxu0 %v768
  %3107 = vmatmul.mubr.bf16.gmra.mrb[0].mxu0 %v767
  %v3108 = vpop.f32.mrb[0].mxu0
  %v3109 = vadd.f32 %v2916, %v3108
  %v3110 = vpop.f32.mrb[0].mxu0
  %v3111 = vadd.f32 %v2918, %v3110
  %v3112 = vpop.f32.mrb[0].mxu0
  %v3113 = vadd.f32 %v2920, %v3112
  %v3114 = vpop.f32.mrb[0].mxu0
  %v3115 = vadd.f32 %v2922, %v3114
  %3116 = vmatprep.mubr.bf16.mxu0 %v775
  %3117 = vmatmul.mubr.bf16.gmra.mrb[0].mxu0 %v774
  %v3118 = vpop.f32.mrb[0].mxu0
  %v3119 = vadd.f32 %v2926, %v3118
  %v3120 = vpop.f32.mrb[0].mxu0
  %v3121 = vadd.f32 %v2928, %v3120
  %v3122 = vpop.f32.mrb[0].mxu0
  %v3123 = vadd.f32 %v2930, %v3122
  %v3124 = vpop.f32.mrb[0].mxu0
  %v3125 = vadd.f32 %v2932, %v3124
  %3126 = vmatprep.mubr.bf16.mxu0 %v782
  %3127 = vmatmul.mubr.bf16.gmra.mrb[0].mxu0 %v781
  %v3128 = vpop.f32.mrb[0].mxu0
  %v3129 = vadd.f32 %v2936, %v3128
  %v3130 = vpop.f32.mrb[0].mxu0
  %v3131 = vadd.f32 %v2938, %v3130
  %v3132 = vpop.f32.mrb[0].mxu0
  %v3133 = vadd.f32 %v2940, %v3132
  %v3134 = vpop.f32.mrb[0].mxu0
  %v3135 = vadd.f32 %v2942, %v3134
  %3136 = vmatprep.mubr.bf16.mxu0 %v789
  %3137 = vmatmul.mubr.bf16.gmra.mrb[0].mxu0 %v788
  %v3138 = vpop.f32.mrb[0].mxu0
  %v3139 = vadd.f32 %v2946, %v3138
  %v3140 = vpop.f32.mrb[0].mxu0
  %v3141 = vadd.f32 %v2948, %v3140
  %v3142 = vpop.f32.mrb[0].mxu0
  %v3143 = vadd.f32 %v2950, %v3142
  %v3144 = vpop.f32.mrb[0].mxu0
  %v3145 = vadd.f32 %v2952, %v3144
  %3146 = vmatprep.mubr.bf16.mxu0 %v796
  %3147 = vmatmul.mubr.bf16.gmra.mrb[0].mxu0 %v795
  %v3148 = vpop.f32.mrb[0].mxu0
  %v3149 = vadd.f32 %v2956, %v3148
  %v3150 = vpop.f32.mrb[0].mxu0
  %v3151 = vadd.f32 %v2958, %v3150
  %v3152 = vpop.f32.mrb[0].mxu0
  %v3153 = vadd.f32 %v2960, %v3152
  %v3154 = vpop.f32.mrb[0].mxu0
  %v3155 = vadd.f32 %v2962, %v3154
  %3156 = vmatprep.mubr.bf16.mxu0 %v803
  %3157 = vmatmul.mubr.bf16.gmra.mrb[0].mxu0 %v802
  %v3158 = vpop.f32.mrb[0].mxu0
  %v3159 = vadd.f32 %v2966, %v3158
  %v3160 = vpop.f32.mrb[0].mxu0
  %v3161 = vadd.f32 %v2968, %v3160
  %v3162 = vpop.f32.mrb[0].mxu0
  %v3163 = vadd.f32 %v2970, %v3162
  %v3164 = vpop.f32.mrb[0].mxu0
  %v3165 = vadd.f32 %v2972, %v3164
  %3166 = vmatprep.mubr.bf16.mxu0 %v810
  %3167 = vmatmul.mubr.bf16.gmra.mrb[0].mxu0 %v809
  %v3168 = vpop.f32.mrb[0].mxu0
  %v3169 = vadd.f32 %v2976, %v3168
  %v3170 = vpop.f32.mrb[0].mxu0
  %v3171 = vadd.f32 %v2978, %v3170
  %v3172 = vpop.f32.mrb[0].mxu0
  %v3173 = vadd.f32 %v2980, %v3172
  %v3174 = vpop.f32.mrb[0].mxu0
  %v3175 = vadd.f32 %v2982, %v3174
  %3176 = vmatprep.mubr.bf16.mxu0 %v817
  %3177 = vmatmul.mubr.bf16.gmra.mrb[0].mxu0 %v816
  %v3178 = vpop.f32.mrb[0].mxu0
  %v3179 = vadd.f32 %v2986, %v3178
  %v3180 = vpop.f32.mrb[0].mxu0
  %v3181 = vadd.f32 %v2988, %v3180
  %v3182 = vpop.f32.mrb[0].mxu0
  %v3183 = vadd.f32 %v2990, %v3182
  %v3184 = vpop.f32.mrb[0].mxu0
  %v3185 = vadd.f32 %v2992, %v3184
  %3186 = vmatprep.mubr.bf16.mxu0 %v824
  %3187 = vmatmul.mubr.bf16.gmra.mrb[0].mxu0 %v823
  %v3188 = vpop.f32.mrb[0].mxu0
  %v3189 = vadd.f32 %v2996, %v3188
  %v3190 = vpop.f32.mrb[0].mxu0
  %v3191 = vadd.f32 %v2998, %v3190
  %v3192 = vpop.f32.mrb[0].mxu0
  %v3193 = vadd.f32 %v3000, %v3192
  %v3194 = vpop.f32.mrb[0].mxu0
  %v3195 = vadd.f32 %v3002, %v3194
  %3196 = vmatprep.mubr.bf16.mxu0 %v831
  %3197 = vmatmul.mubr.bf16.gmra.mrb[0].mxu0 %v830
  %v3198 = vpop.f32.mrb[0].mxu0
  %v3199 = vadd.f32 %v3006, %v3198
  %v3200 = vpop.f32.mrb[0].mxu0
  %v3201 = vadd.f32 %v3008, %v3200
  %v3202 = vpop.f32.mrb[0].mxu0
  %v3203 = vadd.f32 %v3010, %v3202
  %v3204 = vpop.f32.mrb[0].mxu0
  %v3205 = vadd.f32 %v3012, %v3204
  %3206 = vmatprep.mubr.bf16.mxu0 %v838
  %3207 = vmatmul.mubr.bf16.gmra.mrb[0].mxu0 %v837
  %v3208 = vpop.f32.mrb[0].mxu0
  %v3209 = vadd.f32 %v3016, %v3208
  %v3210 = vpop.f32.mrb[0].mxu0
  %v3211 = vadd.f32 %v3018, %v3210
  %v3212 = vpop.f32.mrb[0].mxu0
  %v3213 = vadd.f32 %v3020, %v3212
  %v3214 = vpop.f32.mrb[0].mxu0
  %v3215 = vadd.f32 %v3022, %v3214
  %3216 = vmatprep.mubr.bf16.mxu0 %v845
  %3217 = vmatmul.mubr.bf16.gmra.mrb[0].mxu0 %v844
  %v3218 = vpop.f32.mrb[0].mxu0
  %v3219 = vadd.f32 %v3026, %v3218
  %v3220 = vpop.f32.mrb[0].mxu0
  %v3221 = vadd.f32 %v3028, %v3220
  %v3222 = vpop.f32.mrb[0].mxu0
  %v3223 = vadd.f32 %v3030, %v3222
  %v3224 = vpop.f32.mrb[0].mxu0
  %v3225 = vadd.f32 %v3032, %v3224
  %3226 = vmatprep.mubr.bf16.mxu0 %v852
  %3227 = vmatmul.mubr.bf16.gmra.mrb[0].mxu0 %v851
  %v3228 = vpop.f32.mrb[0].mxu0
  %v3229 = vadd.f32 %v3036, %v3228
  %v3230 = vpop.f32.mrb[0].mxu0
  %v3231 = vadd.f32 %v3038, %v3230
  %v3232 = vpop.f32.mrb[0].mxu0
  %v3233 = vadd.f32 %v3040, %v3232
  %v3234 = vpop.f32.mrb[0].mxu0
  %v3235 = vadd.f32 %v3042, %v3234
  %3236 = vmatprep.mubr.bf16.mxu0 %v859
  %3237 = vmatmul.mubr.bf16.gmra.mrb[0].mxu0 %v858
  %v3238 = vpop.f32.mrb[0].mxu0
  %v3239 = vadd.f32 %v3046, %v3238
  %v3240 = vpop.f32.mrb[0].mxu0
  %v3241 = vadd.f32 %v3048, %v3240
  %v3242 = vpop.f32.mrb[0].mxu0
  %v3243 = vadd.f32 %v3050, %v3242
  %v3244 = vpop.f32.mrb[0].mxu0
  %v3245 = vadd.f32 %v3052, %v3244
  %3246 = vmatprep.mubr.bf16.mxu0 %v866
  %3247 = vmatmul.mubr.bf16.gmra.mrb[0].mxu0 %v865
  %v3248 = vpop.f32.mrb[0].mxu0
  %v3249 = vadd.f32 %v3056, %v3248
  %v3250 = vpop.f32.mrb[0].mxu0
  %v3251 = vadd.f32 %v3058, %v3250
  %v3252 = vpop.f32.mrb[0].mxu0
  %v3253 = vadd.f32 %v3060, %v3252
  %v3254 = vpop.f32.mrb[0].mxu0
  %v3255 = vadd.f32 %v3062, %v3254
  %3256 = vmatprep.mubr.bf16.mxu0 %v873
  %3257 = vmatmul.mubr.bf16.gmra.mrb[0].mxu0 %v872
  %v3258 = vpop.f32.mrb[0].mxu0
  %v3259 = vadd.f32 %v3066, %v3258
  %v3260 = vpop.f32.mrb[0].mxu0
  %v3261 = vadd.f32 %v3068, %v3260
  %v3262 = vpop.f32.mrb[0].mxu0
  %v3263 = vadd.f32 %v3070, %v3262
  %v3264 = vpop.f32.mrb[0].mxu0
  %v3265 = vadd.f32 %v3072, %v3264
  %3266 = vdwg.mxu0
  %3267 = vmatprep.subr.bf16.mxu0 %v1792
  %3268 = vmatpush1.bf16.msra.mxu0 %v1791
  %3269 = vmatprep.subr.bf16.mxu0 %v1796
  %3270 = vmatpush1.bf16.msra.mxu0 %v1795
  %3271 = vmatprep.subr.bf16.mxu0 %v1800
  %3272 = vmatpush1.bf16.msra.mxu0 %v1799
  %3273 = vmatprep.subr.bf16.mxu0 %v1804
  %3274 = vmatpush1.bf16.msra.mxu0 %v1803
  %3275 = vmatprep.subr.bf16.mxu0 %v1808
  %3276 = vmatpush1.bf16.msra.mxu0 %v1807
  %3277 = vmatprep.subr.bf16.mxu0 %v1812
  %3278 = vmatpush1.bf16.msra.mxu0 %v1811
  %3279 = vmatprep.subr.bf16.mxu0 %v1816
  %3280 = vmatpush1.bf16.msra.mxu0 %v1815
  %3281 = vmatprep.subr.bf16.mxu0 %v1820
  %3282 = vmatpush1.bf16.msra.mxu0 %v1819
  %3283 = vmatprep.subr.bf16.mxu0 %v1824
  %3284 = vmatpush1.bf16.msra.mxu0 %v1823
  %3285 = vmatprep.subr.bf16.mxu0 %v1828
  %3286 = vmatpush1.bf16.msra.mxu0 %v1827
  %3287 = vmatprep.subr.bf16.mxu0 %v1832
  %3288 = vmatpush1.bf16.msra.mxu0 %v1831
  %3289 = vmatprep.subr.bf16.mxu0 %v1836
  %3290 = vmatpush1.bf16.msra.mxu0 %v1835
  %3291 = vmatprep.subr.bf16.mxu0 %v1840
  %3292 = vmatpush1.bf16.msra.mxu0 %v1839
  %3293 = vmatprep.subr.bf16.mxu0 %v1844
  %3294 = vmatpush1.bf16.msra.mxu0 %v1843
  %3295 = vmatprep.subr.bf16.mxu0 %v1848
  %3296 = vmatpush1.bf16.msra.mxu0 %v1847
  %3297 = vmatprep.subr.bf16.mxu0 %v1852
  %3298 = vmatpush1.bf16.msra.mxu0 %v1851
  %3299 = vmatprep.mubr.bf16.mxu0 %v770
  %3300 = vmatmul.mubr.bf16.gmra.mrb[0].mxu0 %v769
  %v3301 = vpop.f32.mrb[0].mxu0
  %v3302 = vadd.f32 %v3109, %v3301
  %v3303 = vpop.f32.mrb[0].mxu0
  %v3304 = vadd.f32 %v3111, %v3303
  %v3305 = vpop.f32.mrb[0].mxu0
  %v3306 = vadd.f32 %v3113, %v3305
  %v3307 = vpop.f32.mrb[0].mxu0
  %v3308 = vadd.f32 %v3115, %v3307
  %3309 = vmatprep.mubr.bf16.mxu0 %v777
  %3310 = vmatmul.mubr.bf16.gmra.mrb[0].mxu0 %v776
  %v3311 = vpop.f32.mrb[0].mxu0
  %v3312 = vadd.f32 %v3119, %v3311
  %v3313 = vpop.f32.mrb[0].mxu0
  %v3314 = vadd.f32 %v3121, %v3313
  %v3315 = vpop.f32.mrb[0].mxu0
  %v3316 = vadd.f32 %v3123, %v3315
  %v3317 = vpop.f32.mrb[0].mxu0
  %v3318 = vadd.f32 %v3125, %v3317
  %3319 = vmatprep.mubr.bf16.mxu0 %v784
  %3320 = vmatmul.mubr.bf16.gmra.mrb[0].mxu0 %v783
  %v3321 = vpop.f32.mrb[0].mxu0
  %v3322 = vadd.f32 %v3129, %v3321
  %v3323 = vpop.f32.mrb[0].mxu0
  %v3324 = vadd.f32 %v3131, %v3323
  %v3325 = vpop.f32.mrb[0].mxu0
  %v3326 = vadd.f32 %v3133, %v3325
  %v3327 = vpop.f32.mrb[0].mxu0
  %v3328 = vadd.f32 %v3135, %v3327
  %3329 = vmatprep.mubr.bf16.mxu0 %v791
  %3330 = vmatmul.mubr.bf16.gmra.mrb[0].mxu0 %v790
  %v3331 = vpop.f32.mrb[0].mxu0
  %v3332 = vadd.f32 %v3139, %v3331
  %v3333 = vpop.f32.mrb[0].mxu0
  %v3334 = vadd.f32 %v3141, %v3333
  %v3335 = vpop.f32.mrb[0].mxu0
  %v3336 = vadd.f32 %v3143, %v3335
  %v3337 = vpop.f32.mrb[0].mxu0
  %v3338 = vadd.f32 %v3145, %v3337
  %3339 = vmatprep.mubr.bf16.mxu0 %v798
  %3340 = vmatmul.mubr.bf16.gmra.mrb[0].mxu0 %v797
  %v3341 = vpop.f32.mrb[0].mxu0
  %v3342 = vadd.f32 %v3149, %v3341
  %v3343 = vpop.f32.mrb[0].mxu0
  %v3344 = vadd.f32 %v3151, %v3343
  %v3345 = vpop.f32.mrb[0].mxu0
  %v3346 = vadd.f32 %v3153, %v3345
  %v3347 = vpop.f32.mrb[0].mxu0
  %v3348 = vadd.f32 %v3155, %v3347
  %3349 = vmatprep.mubr.bf16.mxu0 %v805
  %3350 = vmatmul.mubr.bf16.gmra.mrb[0].mxu0 %v804
  %v3351 = vpop.f32.mrb[0].mxu0
  %v3352 = vadd.f32 %v3159, %v3351
  %v3353 = vpop.f32.mrb[0].mxu0
  %v3354 = vadd.f32 %v3161, %v3353
  %v3355 = vpop.f32.mrb[0].mxu0
  %v3356 = vadd.f32 %v3163, %v3355
  %v3357 = vpop.f32.mrb[0].mxu0
  %v3358 = vadd.f32 %v3165, %v3357
  %3359 = vmatprep.mubr.bf16.mxu0 %v812
  %3360 = vmatmul.mubr.bf16.gmra.mrb[0].mxu0 %v811
  %v3361 = vpop.f32.mrb[0].mxu0
  %v3362 = vadd.f32 %v3169, %v3361
  %v3363 = vpop.f32.mrb[0].mxu0
  %v3364 = vadd.f32 %v3171, %v3363
  %v3365 = vpop.f32.mrb[0].mxu0
  %v3366 = vadd.f32 %v3173, %v3365
  %v3367 = vpop.f32.mrb[0].mxu0
  %v3368 = vadd.f32 %v3175, %v3367
  %3369 = vmatprep.mubr.bf16.mxu0 %v819
  %3370 = vmatmul.mubr.bf16.gmra.mrb[0].mxu0 %v818
  %v3371 = vpop.f32.mrb[0].mxu0
  %v3372 = vadd.f32 %v3179, %v3371
  %v3373 = vpop.f32.mrb[0].mxu0
  %v3374 = vadd.f32 %v3181, %v3373
  %v3375 = vpop.f32.mrb[0].mxu0
  %v3376 = vadd.f32 %v3183, %v3375
  %v3377 = vpop.f32.mrb[0].mxu0
  %v3378 = vadd.f32 %v3185, %v3377
  %3379 = vmatprep.mubr.bf16.mxu0 %v826
  %3380 = vmatmul.mubr.bf16.gmra.mrb[0].mxu0 %v825
  %v3381 = vpop.f32.mrb[0].mxu0
  %v3382 = vadd.f32 %v3189, %v3381
  %v3383 = vpop.f32.mrb[0].mxu0
  %v3384 = vadd.f32 %v3191, %v3383
  %v3385 = vpop.f32.mrb[0].mxu0
  %v3386 = vadd.f32 %v3193, %v3385
  %v3387 = vpop.f32.mrb[0].mxu0
  %v3388 = vadd.f32 %v3195, %v3387
  %3389 = vmatprep.mubr.bf16.mxu0 %v833
  %3390 = vmatmul.mubr.bf16.gmra.mrb[0].mxu0 %v832
  %v3391 = vpop.f32.mrb[0].mxu0
  %v3392 = vadd.f32 %v3199, %v3391
  %v3393 = vpop.f32.mrb[0].mxu0
  %v3394 = vadd.f32 %v3201, %v3393
  %v3395 = vpop.f32.mrb[0].mxu0
  %v3396 = vadd.f32 %v3203, %v3395
  %v3397 = vpop.f32.mrb[0].mxu0
  %v3398 = vadd.f32 %v3205, %v3397
  %3399 = vmatprep.mubr.bf16.mxu0 %v840
  %3400 = vmatmul.mubr.bf16.gmra.mrb[0].mxu0 %v839
  %v3401 = vpop.f32.mrb[0].mxu0
  %v3402 = vadd.f32 %v3209, %v3401
  %v3403 = vpop.f32.mrb[0].mxu0
  %v3404 = vadd.f32 %v3211, %v3403
  %v3405 = vpop.f32.mrb[0].mxu0
  %v3406 = vadd.f32 %v3213, %v3405
  %v3407 = vpop.f32.mrb[0].mxu0
  %v3408 = vadd.f32 %v3215, %v3407
  %3409 = vmatprep.mubr.bf16.mxu0 %v847
  %3410 = vmatmul.mubr.bf16.gmra.mrb[0].mxu0 %v846
  %v3411 = vpop.f32.mrb[0].mxu0
  %v3412 = vadd.f32 %v3219, %v3411
  %v3413 = vpop.f32.mrb[0].mxu0
  %v3414 = vadd.f32 %v3221, %v3413
  %v3415 = vpop.f32.mrb[0].mxu0
  %v3416 = vadd.f32 %v3223, %v3415
  %v3417 = vpop.f32.mrb[0].mxu0
  %v3418 = vadd.f32 %v3225, %v3417
  %3419 = vmatprep.mubr.bf16.mxu0 %v854
  %3420 = vmatmul.mubr.bf16.gmra.mrb[0].mxu0 %v853
  %v3421 = vpop.f32.mrb[0].mxu0
  %v3422 = vadd.f32 %v3229, %v3421
  %v3423 = vpop.f32.mrb[0].mxu0
  %v3424 = vadd.f32 %v3231, %v3423
  %v3425 = vpop.f32.mrb[0].mxu0
  %v3426 = vadd.f32 %v3233, %v3425
  %v3427 = vpop.f32.mrb[0].mxu0
  %v3428 = vadd.f32 %v3235, %v3427
  %3429 = vmatprep.mubr.bf16.mxu0 %v861
  %3430 = vmatmul.mubr.bf16.gmra.mrb[0].mxu0 %v860
  %v3431 = vpop.f32.mrb[0].mxu0
  %v3432 = vadd.f32 %v3239, %v3431
  %v3433 = vpop.f32.mrb[0].mxu0
  %v3434 = vadd.f32 %v3241, %v3433
  %v3435 = vpop.f32.mrb[0].mxu0
  %v3436 = vadd.f32 %v3243, %v3435
  %v3437 = vpop.f32.mrb[0].mxu0
  %v3438 = vadd.f32 %v3245, %v3437
  %3439 = vmatprep.mubr.bf16.mxu0 %v868
  %3440 = vmatmul.mubr.bf16.gmra.mrb[0].mxu0 %v867
  %v3441 = vpop.f32.mrb[0].mxu0
  %v3442 = vadd.f32 %v3249, %v3441
  %v3443 = vpop.f32.mrb[0].mxu0
  %v3444 = vadd.f32 %v3251, %v3443
  %v3445 = vpop.f32.mrb[0].mxu0
  %v3446 = vadd.f32 %v3253, %v3445
  %v3447 = vpop.f32.mrb[0].mxu0
  %v3448 = vadd.f32 %v3255, %v3447
  %3449 = vmatprep.mubr.bf16.mxu0 %v875
  %3450 = vmatmul.mubr.bf16.gmra.mrb[0].mxu0 %v874
  %v3451 = vpop.f32.mrb[0].mxu0
  %v3452 = vadd.f32 %v3259, %v3451
  %v3453 = vpop.f32.mrb[0].mxu0
  %v3454 = vadd.f32 %v3261, %v3453
  %v3455 = vpop.f32.mrb[0].mxu0
  %v3456 = vadd.f32 %v3263, %v3455
  %v3457 = vpop.f32.mrb[0].mxu0
  %v3458 = vadd.f32 %v3265, %v3457
  %3459 = vdwg.mxu0
  %3460 = vmatprep.subr.bf16.mxu0 %v1856
  %3461 = vmatpush1.bf16.msra.mxu0 %v1855
  %3462 = vmatprep.subr.bf16.mxu0 %v1860
  %3463 = vmatpush1.bf16.msra.mxu0 %v1859
  %3464 = vmatprep.subr.bf16.mxu0 %v1864
  %3465 = vmatpush1.bf16.msra.mxu0 %v1863
  %3466 = vmatprep.subr.bf16.mxu0 %v1868
  %3467 = vmatpush1.bf16.msra.mxu0 %v1867
  %3468 = vmatprep.subr.bf16.mxu0 %v1872
  %3469 = vmatpush1.bf16.msra.mxu0 %v1871
  %3470 = vmatprep.subr.bf16.mxu0 %v1876
  %3471 = vmatpush1.bf16.msra.mxu0 %v1875
  %3472 = vmatprep.subr.bf16.mxu0 %v1880
  %3473 = vmatpush1.bf16.msra.mxu0 %v1879
  %3474 = vmatprep.subr.bf16.mxu0 %v1884
  %3475 = vmatpush1.bf16.msra.mxu0 %v1883
  %3476 = vmatprep.subr.bf16.mxu0 0
  %3477 = vmatpush1.bf16.msra.mxu0 0
  %3478 = vmatprep.subr.bf16.mxu0 0
  %3479 = vmatpush1.bf16.msra.mxu0 0
  %3480 = vmatprep.subr.bf16.mxu0 0
  %3481 = vmatpush1.bf16.msra.mxu0 0
  %3482 = vmatprep.subr.bf16.mxu0 0
  %3483 = vmatpush1.bf16.msra.mxu0 0
  %3484 = vmatprep.subr.bf16.mxu0 0
  %3485 = vmatpush1.bf16.msra.mxu0 0
  %3486 = vmatprep.subr.bf16.mxu0 0
  %3487 = vmatpush1.bf16.msra.mxu0 0
  %3488 = vmatprep.subr.bf16.mxu0 0
  %3489 = vmatpush1.bf16.msra.mxu0 0
  %3490 = vmatprep.subr.bf16.mxu0 0
  %3491 = vmatpush1.bf16.msra.mxu0 0
  %3492 = vmatprep.mubr.bf16.mxu0 0
  %3493 = vmatmul.mubr.bf16.gmra.mrb[0].mxu0 %v771
  %v3494 = vpop.f32.mrb[0].mxu0
  %v3495 = vadd.f32 %v3302, %v3494
  %v3496 = vpop.f32.mrb[0].mxu0
  %v3497 = vadd.f32 %v3304, %v3496
  %v3498 = vpop.f32.mrb[0].mxu0
  %v3499 = vadd.f32 %v3306, %v3498
  %v3500 = vpop.f32.mrb[0].mxu0
  %v3501 = vadd.f32 %v3308, %v3500
  %3502 = vmatprep.mubr.bf16.mxu0 0
  %3503 = vmatmul.mubr.bf16.gmra.mrb[0].mxu0 %v778
  %v3504 = vpop.f32.mrb[0].mxu0
  %v3505 = vadd.f32 %v3312, %v3504
  %v3506 = vpop.f32.mrb[0].mxu0
  %v3507 = vadd.f32 %v3314, %v3506
  %v3508 = vpop.f32.mrb[0].mxu0
  %v3509 = vadd.f32 %v3316, %v3508
  %v3510 = vpop.f32.mrb[0].mxu0
  %v3511 = vadd.f32 %v3318, %v3510
  %3512 = vmatprep.mubr.bf16.mxu0 0
  %3513 = vmatmul.mubr.bf16.gmra.mrb[0].mxu0 %v785
  %v3514 = vpop.f32.mrb[0].mxu0
  %v3515 = vadd.f32 %v3322, %v3514
  %v3516 = vpop.f32.mrb[0].mxu0
  %v3517 = vadd.f32 %v3324, %v3516
  %v3518 = vpop.f32.mrb[0].mxu0
  %v3519 = vadd.f32 %v3326, %v3518
  %v3520 = vpop.f32.mrb[0].mxu0
  %v3521 = vadd.f32 %v3328, %v3520
  %3522 = vmatprep.mubr.bf16.mxu0 0
  %3523 = vmatmul.mubr.bf16.gmra.mrb[0].mxu0 %v792
  %v3524 = vpop.f32.mrb[0].mxu0
  %v3525 = vadd.f32 %v3332, %v3524
  %v3526 = vpop.f32.mrb[0].mxu0
  %v3527 = vadd.f32 %v3334, %v3526
  %v3528 = vpop.f32.mrb[0].mxu0
  %v3529 = vadd.f32 %v3336, %v3528
  %v3530 = vpop.f32.mrb[0].mxu0
  %v3531 = vadd.f32 %v3338, %v3530
  %3532 = vmatprep.mubr.bf16.mxu0 0
  %3533 = vmatmul.mubr.bf16.gmra.mrb[0].mxu0 %v799
  %v3534 = vpop.f32.mrb[0].mxu0
  %v3535 = vadd.f32 %v3342, %v3534
  %v3536 = vpop.f32.mrb[0].mxu0
  %v3537 = vadd.f32 %v3344, %v3536
  %v3538 = vpop.f32.mrb[0].mxu0
  %v3539 = vadd.f32 %v3346, %v3538
  %v3540 = vpop.f32.mrb[0].mxu0
  %v3541 = vadd.f32 %v3348, %v3540
  %3542 = vmatprep.mubr.bf16.mxu0 0
  %3543 = vmatmul.mubr.bf16.gmra.mrb[0].mxu0 %v806
  %v3544 = vpop.f32.mrb[0].mxu0
  %v3545 = vadd.f32 %v3352, %v3544
  %v3546 = vpop.f32.mrb[0].mxu0
  %v3547 = vadd.f32 %v3354, %v3546
  %v3548 = vpop.f32.mrb[0].mxu0
  %v3549 = vadd.f32 %v3356, %v3548
  %v3550 = vpop.f32.mrb[0].mxu0
  %v3551 = vadd.f32 %v3358, %v3550
  %3552 = vmatprep.mubr.bf16.mxu0 0
  %3553 = vmatmul.mubr.bf16.gmra.mrb[0].mxu0 %v813
  %v3554 = vpop.f32.mrb[0].mxu0
  %v3555 = vadd.f32 %v3362, %v3554
  %v3556 = vpop.f32.mrb[0].mxu0
  %v3557 = vadd.f32 %v3364, %v3556
  %v3558 = vpop.f32.mrb[0].mxu0
  %v3559 = vadd.f32 %v3366, %v3558
  %v3560 = vpop.f32.mrb[0].mxu0
  %v3561 = vadd.f32 %v3368, %v3560
  %3562 = vmatprep.mubr.bf16.mxu0 0
  %3563 = vmatmul.mubr.bf16.gmra.mrb[0].mxu0 %v820
  %v3564 = vpop.f32.mrb[0].mxu0
  %v3565 = vadd.f32 %v3372, %v3564
  %v3566 = vpop.f32.mrb[0].mxu0
  %v3567 = vadd.f32 %v3374, %v3566
  %v3568 = vpop.f32.mrb[0].mxu0
  %v3569 = vadd.f32 %v3376, %v3568
  %v3570 = vpop.f32.mrb[0].mxu0
  %v3571 = vadd.f32 %v3378, %v3570
  %3572 = vmatprep.mubr.bf16.mxu0 0
  %3573 = vmatmul.mubr.bf16.gmra.mrb[0].mxu0 %v827
  %v3574 = vpop.f32.mrb[0].mxu0
  %v3575 = vadd.f32 %v3382, %v3574
  %v3576 = vpop.f32.mrb[0].mxu0
  %v3577 = vadd.f32 %v3384, %v3576
  %v3578 = vpop.f32.mrb[0].mxu0
  %v3579 = vadd.f32 %v3386, %v3578
  %v3580 = vpop.f32.mrb[0].mxu0
  %v3581 = vadd.f32 %v3388, %v3580
  %3582 = vmatprep.mubr.bf16.mxu0 0
  %3583 = vmatmul.mubr.bf16.gmra.mrb[0].mxu0 %v834
  %v3584 = vpop.f32.mrb[0].mxu0
  %v3585 = vadd.f32 %v3392, %v3584
  %v3586 = vpop.f32.mrb[0].mxu0
  %v3587 = vadd.f32 %v3394, %v3586
  %v3588 = vpop.f32.mrb[0].mxu0
  %v3589 = vadd.f32 %v3396, %v3588
  %v3590 = vpop.f32.mrb[0].mxu0
  %v3591 = vadd.f32 %v3398, %v3590
  %3592 = vmatprep.mubr.bf16.mxu0 0
  %3593 = vmatmul.mubr.bf16.gmra.mrb[0].mxu0 %v841
  %v3594 = vpop.f32.mrb[0].mxu0
  %v3595 = vadd.f32 %v3402, %v3594
  %v3596 = vpop.f32.mrb[0].mxu0
  %v3597 = vadd.f32 %v3404, %v3596
  %v3598 = vpop.f32.mrb[0].mxu0
  %v3599 = vadd.f32 %v3406, %v3598
  %v3600 = vpop.f32.mrb[0].mxu0
  %v3601 = vadd.f32 %v3408, %v3600
  %3602 = vmatprep.mubr.bf16.mxu0 0
  %3603 = vmatmul.mubr.bf16.gmra.mrb[0].mxu0 %v848
  %v3604 = vpop.f32.mrb[0].mxu0
  %v3605 = vadd.f32 %v3412, %v3604
  %v3606 = vpop.f32.mrb[0].mxu0
  %v3607 = vadd.f32 %v3414, %v3606
  %v3608 = vpop.f32.mrb[0].mxu0
  %v3609 = vadd.f32 %v3416, %v3608
  %v3610 = vpop.f32.mrb[0].mxu0
  %v3611 = vadd.f32 %v3418, %v3610
  %3612 = vmatprep.mubr.bf16.mxu0 0
  %3613 = vmatmul.mubr.bf16.gmra.mrb[0].mxu0 %v855
  %v3614 = vpop.f32.mrb[0].mxu0
  %v3615 = vadd.f32 %v3422, %v3614
  %v3616 = vpop.f32.mrb[0].mxu0
  %v3617 = vadd.f32 %v3424, %v3616
  %v3618 = vpop.f32.mrb[0].mxu0
  %v3619 = vadd.f32 %v3426, %v3618
  %v3620 = vpop.f32.mrb[0].mxu0
  %v3621 = vadd.f32 %v3428, %v3620
  %3622 = vmatprep.mubr.bf16.mxu0 0
  %3623 = vmatmul.mubr.bf16.gmra.mrb[0].mxu0 %v862
  %v3624 = vpop.f32.mrb[0].mxu0
  %v3625 = vadd.f32 %v3432, %v3624
  %v3626 = vpop.f32.mrb[0].mxu0
  %v3627 = vadd.f32 %v3434, %v3626
  %v3628 = vpop.f32.mrb[0].mxu0
  %v3629 = vadd.f32 %v3436, %v3628
  %v3630 = vpop.f32.mrb[0].mxu0
  %v3631 = vadd.f32 %v3438, %v3630
  %3632 = vmatprep.mubr.bf16.mxu0 0
  %3633 = vmatmul.mubr.bf16.gmra.mrb[0].mxu0 %v869
  %v3634 = vpop.f32.mrb[0].mxu0
  %v3635 = vadd.f32 %v3442, %v3634
  %v3636 = vpop.f32.mrb[0].mxu0
  %v3637 = vadd.f32 %v3444, %v3636
  %v3638 = vpop.f32.mrb[0].mxu0
  %v3639 = vadd.f32 %v3446, %v3638
  %v3640 = vpop.f32.mrb[0].mxu0
  %v3641 = vadd.f32 %v3448, %v3640
  %3642 = vmatprep.mubr.bf16.mxu0 0
  %3643 = vmatmul.mubr.bf16.gmra.mrb[0].mxu0 %v876
  %v3644 = vpop.f32.mrb[0].mxu0
  %v3645 = vadd.f32 %v3452, %v3644
  %v3646 = vpop.f32.mrb[0].mxu0
  %v3647 = vadd.f32 %v3454, %v3646
  %v3648 = vpop.f32.mrb[0].mxu0
  %v3649 = vadd.f32 %v3456, %v3648
  %v3650 = vpop.f32.mrb[0].mxu0
  %v3651 = vadd.f32 %v3458, %v3650
  %3652 = vdwg.mxu0
  %v3653 = vmax.f32 %v2723, 0.0
  %v3654 = vmax.f32 %v2725, 0.0
  %v3655 = vmax.f32 %v3495, 0.0
  %v3656 = vmax.f32 %v3497, 0.0
  %v3657 = vmax.f32 %v2727, 0.0
  %v3658 = vmax.f32 %v2729, 0.0
  %v3659 = vmax.f32 %v3499, 0.0
  %v3660 = vmax.f32 %v3501, 0.0
  %v3661 = vmax.f32 %v2733, 0.0
  %v3662 = vmax.f32 %v2735, 0.0
  %v3663 = vmax.f32 %v3505, 0.0
  %v3664 = vmax.f32 %v3507, 0.0
  %v3665 = vmax.f32 %v2737, 0.0
  %v3666 = vmax.f32 %v2739, 0.0
  %v3667 = vmax.f32 %v3509, 0.0
  %v3668 = vmax.f32 %v3511, 0.0
  %v3669 = vmax.f32 %v2743, 0.0
  %v3670 = vmax.f32 %v2745, 0.0
  %v3671 = vmax.f32 %v3515, 0.0
  %v3672 = vmax.f32 %v3517, 0.0
  %v3673 = vmax.f32 %v2747, 0.0
  %v3674 = vmax.f32 %v2749, 0.0
  %v3675 = vmax.f32 %v3519, 0.0
  %v3676 = vmax.f32 %v3521, 0.0
  %v3677 = vmax.f32 %v2753, 0.0
  %v3678 = vmax.f32 %v2755, 0.0
  %v3679 = vmax.f32 %v3525, 0.0
  %v3680 = vmax.f32 %v3527, 0.0
  %v3681 = vmax.f32 %v2757, 0.0
  %v3682 = vmax.f32 %v2759, 0.0
  %v3683 = vmax.f32 %v3529, 0.0
  %v3684 = vmax.f32 %v3531, 0.0
  %v3685 = vmax.f32 %v2763, 0.0
  %v3686 = vmax.f32 %v2765, 0.0
  %v3687 = vmax.f32 %v3535, 0.0
  %v3688 = vmax.f32 %v3537, 0.0
  %v3689 = vmax.f32 %v2767, 0.0
  %v3690 = vmax.f32 %v2769, 0.0
  %v3691 = vmax.f32 %v3539, 0.0
  %v3692 = vmax.f32 %v3541, 0.0
  %v3693 = vmax.f32 %v2773, 0.0
  %v3694 = vmax.f32 %v2775, 0.0
  %v3695 = vmax.f32 %v3545, 0.0
  %v3696 = vmax.f32 %v3547, 0.0
  %v3697 = vmax.f32 %v2777, 0.0
  %v3698 = vmax.f32 %v2779, 0.0
  %v3699 = vmax.f32 %v3549, 0.0
  %v3700 = vmax.f32 %v3551, 0.0
  %v3701 = vmax.f32 %v2783, 0.0
  %v3702 = vmax.f32 %v2785, 0.0
  %v3703 = vmax.f32 %v3555, 0.0
  %v3704 = vmax.f32 %v3557, 0.0
  %v3705 = vmax.f32 %v2787, 0.0
  %v3706 = vmax.f32 %v2789, 0.0
  %v3707 = vmax.f32 %v3559, 0.0
  %v3708 = vmax.f32 %v3561, 0.0
  %v3709 = vmax.f32 %v2793, 0.0
  %v3710 = vmax.f32 %v2795, 0.0
  %v3711 = vmax.f32 %v3565, 0.0
  %v3712 = vmax.f32 %v3567, 0.0
  %v3713 = vmax.f32 %v2797, 0.0
  %v3714 = vmax.f32 %v2799, 0.0
  %v3715 = vmax.f32 %v3569, 0.0
  %v3716 = vmax.f32 %v3571, 0.0
  %v3717 = vmax.f32 %v2803, 0.0
  %v3718 = vmax.f32 %v2805, 0.0
  %v3719 = vmax.f32 %v3575, 0.0
  %v3720 = vmax.f32 %v3577, 0.0
  %v3721 = vmax.f32 %v2807, 0.0
  %v3722 = vmax.f32 %v2809, 0.0
  %v3723 = vmax.f32 %v3579, 0.0
  %v3724 = vmax.f32 %v3581, 0.0
  %v3725 = vmax.f32 %v2813, 0.0
  %v3726 = vmax.f32 %v2815, 0.0
  %v3727 = vmax.f32 %v3585, 0.0
  %v3728 = vmax.f32 %v3587, 0.0
  %v3729 = vmax.f32 %v2817, 0.0
  %v3730 = vmax.f32 %v2819, 0.0
  %v3731 = vmax.f32 %v3589, 0.0
  %v3732 = vmax.f32 %v3591, 0.0
  %v3733 = vmax.f32 %v2823, 0.0
  %v3734 = vmax.f32 %v2825, 0.0
  %v3735 = vmax.f32 %v3595, 0.0
  %v3736 = vmax.f32 %v3597, 0.0
  %v3737 = vmax.f32 %v2827, 0.0
  %v3738 = vmax.f32 %v2829, 0.0
  %v3739 = vmax.f32 %v3599, 0.0
  %v3740 = vmax.f32 %v3601, 0.0
  %v3741 = vmax.f32 %v2833, 0.0
  %v3742 = vmax.f32 %v2835, 0.0
  %v3743 = vmax.f32 %v3605, 0.0
  %v3744 = vmax.f32 %v3607, 0.0
  %v3745 = vmax.f32 %v2837, 0.0
  %v3746 = vmax.f32 %v2839, 0.0
  %v3747 = vmax.f32 %v3609, 0.0
  %v3748 = vmax.f32 %v3611, 0.0
  %v3749 = vmax.f32 %v2843, 0.0
  %v3750 = vmax.f32 %v2845, 0.0
  %v3751 = vmax.f32 %v3615, 0.0
  %v3752 = vmax.f32 %v3617, 0.0
  %v3753 = vmax.f32 %v2847, 0.0
  %v3754 = vmax.f32 %v2849, 0.0
  %v3755 = vmax.f32 %v3619, 0.0
  %v3756 = vmax.f32 %v3621, 0.0
  %v3757 = vmax.f32 %v2853, 0.0
  %v3758 = vmax.f32 %v2855, 0.0
  %v3759 = vmax.f32 %v3625, 0.0
  %v3760 = vmax.f32 %v3627, 0.0
  %v3761 = vmax.f32 %v2857, 0.0
  %v3762 = vmax.f32 %v2859, 0.0
  %v3763 = vmax.f32 %v3629, 0.0
  %v3764 = vmax.f32 %v3631, 0.0
  %v3765 = vmax.f32 %v2863, 0.0
  %v3766 = vmax.f32 %v2865, 0.0
  %v3767 = vmax.f32 %v3635, 0.0
  %v3768 = vmax.f32 %v3637, 0.0
  %v3769 = vmax.f32 %v2867, 0.0
  %v3770 = vmax.f32 %v2869, 0.0
  %v3771 = vmax.f32 %v3639, 0.0
  %v3772 = vmax.f32 %v3641, 0.0
  %v3773 = vmax.f32 %v2873, 0.0
  %v3774 = vmax.f32 %v2875, 0.0
  %v3775 = vmax.f32 %v3645, 0.0
  %v3776 = vmax.f32 %v3647, 0.0
  %v3777 = vmax.f32 %v2877, 0.0
  %v3778 = vmax.f32 %v2879, 0.0
  %v3779 = vmax.f32 %v3649, 0.0
  %v3780 = vmax.f32 %v3651, 0.0
  %v3781 = vpack.c.bf16 %v3657, %v3653
  %v3782 = vpack.c.bf16 %v3658, %v3654
  %v3783 = vpack.c.bf16 %v3659, %v3655
  %v3784 = vpack.c.bf16 %v3660, %v3656
  %v3785 = vpack.c.bf16 %v3665, %v3661
  %v3786 = vpack.c.bf16 %v3666, %v3662
  %v3787 = vpack.c.bf16 %v3667, %v3663
  %v3788 = vpack.c.bf16 %v3668, %v3664
  %v3789 = vpack.c.bf16 %v3673, %v3669
  %v3790 = vpack.c.bf16 %v3674, %v3670
  %v3791 = vpack.c.bf16 %v3675, %v3671
  %v3792 = vpack.c.bf16 %v3676, %v3672
  %v3793 = vpack.c.bf16 %v3681, %v3677
  %v3794 = vpack.c.bf16 %v3682, %v3678
  %v3795 = vpack.c.bf16 %v3683, %v3679
  %v3796 = vpack.c.bf16 %v3684, %v3680
  %v3797 = vpack.c.bf16 %v3689, %v3685
  %v3798 = vpack.c.bf16 %v3690, %v3686
  %v3799 = vpack.c.bf16 %v3691, %v3687
  %v3800 = vpack.c.bf16 %v3692, %v3688
  %v3801 = vpack.c.bf16 %v3697, %v3693
  %v3802 = vpack.c.bf16 %v3698, %v3694
  %v3803 = vpack.c.bf16 %v3699, %v3695
  %v3804 = vpack.c.bf16 %v3700, %v3696
  %v3805 = vpack.c.bf16 %v3705, %v3701
  %v3806 = vpack.c.bf16 %v3706, %v3702
  %v3807 = vpack.c.bf16 %v3707, %v3703
  %v3808 = vpack.c.bf16 %v3708, %v3704
  %v3809 = vpack.c.bf16 %v3713, %v3709
  %v3810 = vpack.c.bf16 %v3714, %v3710
  %v3811 = vpack.c.bf16 %v3715, %v3711
  %v3812 = vpack.c.bf16 %v3716, %v3712
  %v3813 = vpack.c.bf16 %v3721, %v3717
  %v3814 = vpack.c.bf16 %v3722, %v3718
  %v3815 = vpack.c.bf16 %v3723, %v3719
  %v3816 = vpack.c.bf16 %v3724, %v3720
  %v3817 = vpack.c.bf16 %v3729, %v3725
  %v3818 = vpack.c.bf16 %v3730, %v3726
  %v3819 = vpack.c.bf16 %v3731, %v3727
  %v3820 = vpack.c.bf16 %v3732, %v3728
  %v3821 = vpack.c.bf16 %v3737, %v3733
  %v3822 = vpack.c.bf16 %v3738, %v3734
  %v3823 = vpack.c.bf16 %v3739, %v3735
  %v3824 = vpack.c.bf16 %v3740, %v3736
  %v3825 = vpack.c.bf16 %v3745, %v3741
  %v3826 = vpack.c.bf16 %v3746, %v3742
  %v3827 = vpack.c.bf16 %v3747, %v3743
  %v3828 = vpack.c.bf16 %v3748, %v3744
  %v3829 = vpack.c.bf16 %v3753, %v3749
  %v3830 = vpack.c.bf16 %v3754, %v3750
  %v3831 = vpack.c.bf16 %v3755, %v3751
  %v3832 = vpack.c.bf16 %v3756, %v3752
  %v3833 = vpack.c.bf16 %v3761, %v3757
  %v3834 = vpack.c.bf16 %v3762, %v3758
  %v3835 = vpack.c.bf16 %v3763, %v3759
  %v3836 = vpack.c.bf16 %v3764, %v3760
  %v3837 = vpack.c.bf16 %v3769, %v3765
  %v3838 = vpack.c.bf16 %v3770, %v3766
  %v3839 = vpack.c.bf16 %v3771, %v3767
  %v3840 = vpack.c.bf16 %v3772, %v3768
  %v3841 = vpack.c.bf16 %v3777, %v3773
  %v3842 = vpack.c.bf16 %v3778, %v3774
  %v3843 = vpack.c.bf16 %v3779, %v3775
  %v3844 = vpack.c.bf16 %v3780, %v3776
  %v3845 = vld [vmem:[%s3] sm:$0xff]
  %v3846 = vld [vmem:[%s3 + $0x8] sm:$0xff]
  %v3847 = vld [vmem:[%s3 + $0x10] sm:$0xff]
  %v3848 = vld [vmem:[%s3 + $0x18] sm:$0xff]
  %v3849 = vld [vmem:[%s3 + $0x20] sm:$0xff]
  %v3850 = vld [vmem:[%s3 + $0x28] sm:$0xff]
  %v3851 = vld [vmem:[%s3 + $0x30] sm:$0xff]
  %v3852 = vld [vmem:[%s3 + $0x38] sm:$0xff]
  %v3853 = vld [vmem:[%s3 + $0x40] sm:$0xff]
  %v3854 = vld [vmem:[%s3 + $0x48] sm:$0xff]
  %v3855 = vld [vmem:[%s3 + $0x50] sm:$0xff]
  %v3856 = vld [vmem:[%s3 + $0x58] sm:$0xff]
  %v3857 = vld [vmem:[%s3 + $0x60] sm:$0xff]
  %v3858 = vld [vmem:[%s3 + $0x68] sm:$0xff]
  %v3859 = vld [vmem:[%s3 + $0x70] sm:$0xff]
  %v3860 = vld [vmem:[%s3 + $0x78] sm:$0xff]
  %v3861 = vld [vmem:[%s3 + $0x80] sm:$0xff]
  %v3862 = vld [vmem:[%s3 + $0x88] sm:$0xff]
  %v3863 = vld [vmem:[%s3 + $0x90] sm:$0xff]
  %v3864 = vld [vmem:[%s3 + $0x98] sm:$0xff]
  %v3865 = vld [vmem:[%s3 + $0xa0] sm:$0xff]
  %v3866 = vld [vmem:[%s3 + $0xa8] sm:$0xff]
  %v3867 = vld [vmem:[%s3 + $0xb0] sm:$0xff]
  %v3868 = vld [vmem:[%s3 + $0xb8] sm:$0xff]
  %v3869 = vld [vmem:[%s3 + $0xc0] sm:$0xff]
  %v3870 = vld [vmem:[%s3 + $0xc8] sm:$0xff]
  %v3871 = vld [vmem:[%s3 + $0xd0] sm:$0xff]
  %v3872 = vld [vmem:[%s3 + $0xd8] sm:$0xff]
  %v3873 = vld [vmem:[%s3 + $0xe0] sm:$0xff]
  %v3874 = vld [vmem:[%s3 + $0xe8] sm:$0xff]
  %v3875 = vld [vmem:[%s3 + $0xf0] sm:$0xff]
  %v3876 = vld [vmem:[%s3 + $0xf8] sm:$0xff]
  %v3877 = vld [vmem:[%s3 + $0x100] sm:$0xff]
  %v3878 = vld [vmem:[%s3 + $0x108] sm:$0xff]
  %v3879 = vld [vmem:[%s3 + $0x110] sm:$0xff]
  %v3880 = vld [vmem:[%s3 + $0x118] sm:$0xff]
  %v3881 = vld [vmem:[%s3 + $0x120] sm:$0xff]
  %v3882 = vld [vmem:[%s3 + $0x128] sm:$0xff]
  %v3883 = vld [vmem:[%s3 + $0x130] sm:$0xff]
  %v3884 = vld [vmem:[%s3 + $0x138] sm:$0xff]
  %v3885 = vld [vmem:[%s3 + $0x140] sm:$0xff]
  %v3886 = vld [vmem:[%s3 + $0x148] sm:$0xff]
  %v3887 = vld [vmem:[%s3 + $0x150] sm:$0xff]
  %v3888 = vld [vmem:[%s3 + $0x158] sm:$0xff]
  %v3889 = vld [vmem:[%s3 + $0x160] sm:$0xff]
  %v3890 = vld [vmem:[%s3 + $0x168] sm:$0xff]
  %v3891 = vld [vmem:[%s3 + $0x170] sm:$0xff]
  %v3892 = vld [vmem:[%s3 + $0x178] sm:$0xff]
  %v3893 = vld [vmem:[%s3 + $0x180] sm:$0xff]
  %v3894 = vld [vmem:[%s3 + $0x188] sm:$0xff]
  %v3895 = vld [vmem:[%s3 + $0x190] sm:$0xff]
  %v3896 = vld [vmem:[%s3 + $0x198] sm:$0xff]
  %v3897 = vld [vmem:[%s3 + $0x1a0] sm:$0xff]
  %v3898 = vld [vmem:[%s3 + $0x1a8] sm:$0xff]
  %v3899 = vld [vmem:[%s3 + $0x1b0] sm:$0xff]
  %v3900 = vld [vmem:[%s3 + $0x1b8] sm:$0xff]
  %v3901 = vld [vmem:[%s3 + $0x1c0] sm:$0xff]
  %v3902 = vld [vmem:[%s3 + $0x1c8] sm:$0xff]
  %v3903 = vld [vmem:[%s3 + $0x1d0] sm:$0xff]
  %v3904 = vld [vmem:[%s3 + $0x1d8] sm:$0xff]
  %v3905 = vld [vmem:[%s3 + $0x1e0] sm:$0xff]
  %v3906 = vld [vmem:[%s3 + $0x1e8] sm:$0xff]
  %v3907 = vld [vmem:[%s3 + $0x1f0] sm:$0xff]
  %v3908 = vld [vmem:[%s3 + $0x1f8] sm:$0xff]
  %v3909 = vld [vmem:[%s4] sm:$0x3]
  %v3911 = vlaneseq
  %v3912 = vshrl.u32 %v3911, 7
  %v3913 = vsub.s32 0, %v3912
  %v3914 = vrot.slane %v3909, %v3913
  %v3915 = vlaneseq
  %v3916 = vshrl.u32 %v3915, 7
  %v3917 = vsub.s32 1, %v3916
  %v3918 = vrot.slane %v3909, %v3917
  %v3985 = vunpack.c.l.b16 %v3845
  %v3986 = vunpack.c.h.b16 %v3845
  %v3987 = vunpack.c.l.b16 %v3846
  %v3988 = vunpack.c.h.b16 %v3846
  %v3989 = vunpack.c.l.b16 %v3847
  %v3990 = vunpack.c.h.b16 %v3847
  %v3991 = vunpack.c.l.b16 %v3848
  %v3992 = vunpack.c.h.b16 %v3848
  %v3993 = vunpack.c.l.b16 %v3849
  %v3994 = vunpack.c.h.b16 %v3849
  %v3995 = vunpack.c.l.b16 %v3850
  %v3996 = vunpack.c.h.b16 %v3850
  %v3997 = vunpack.c.l.b16 %v3851
  %v3998 = vunpack.c.h.b16 %v3851
  %v3999 = vunpack.c.l.b16 %v3852
  %v4000 = vunpack.c.h.b16 %v3852
  %v4001 = vunpack.c.l.b16 %v3853
  %v4002 = vunpack.c.h.b16 %v3853
  %v4003 = vunpack.c.l.b16 %v3854
  %v4004 = vunpack.c.h.b16 %v3854
  %v4005 = vunpack.c.l.b16 %v3855
  %v4006 = vunpack.c.h.b16 %v3855
  %v4007 = vunpack.c.l.b16 %v3856
  %v4008 = vunpack.c.h.b16 %v3856
  %v4009 = vunpack.c.l.b16 %v3857
  %v4010 = vunpack.c.h.b16 %v3857
  %v4011 = vunpack.c.l.b16 %v3858
  %v4012 = vunpack.c.h.b16 %v3858
  %v4013 = vunpack.c.l.b16 %v3859
  %v4014 = vunpack.c.h.b16 %v3859
  %v4015 = vunpack.c.l.b16 %v3860
  %v4016 = vunpack.c.h.b16 %v3860
  %v4017 = vunpack.c.l.b16 %v3861
  %v4018 = vunpack.c.h.b16 %v3861
  %v4019 = vunpack.c.l.b16 %v3862
  %v4020 = vunpack.c.h.b16 %v3862
  %v4021 = vunpack.c.l.b16 %v3863
  %v4022 = vunpack.c.h.b16 %v3863
  %v4023 = vunpack.c.l.b16 %v3864
  %v4024 = vunpack.c.h.b16 %v3864
  %v4025 = vunpack.c.l.b16 %v3865
  %v4026 = vunpack.c.h.b16 %v3865
  %v4027 = vunpack.c.l.b16 %v3866
  %v4028 = vunpack.c.h.b16 %v3866
  %v4029 = vunpack.c.l.b16 %v3867
  %v4030 = vunpack.c.h.b16 %v3867
  %v4031 = vunpack.c.l.b16 %v3868
  %v4032 = vunpack.c.h.b16 %v3868
  %v4033 = vunpack.c.l.b16 %v3869
  %v4034 = vunpack.c.h.b16 %v3869
  %v4035 = vunpack.c.l.b16 %v3870
  %v4036 = vunpack.c.h.b16 %v3870
  %v4037 = vunpack.c.l.b16 %v3871
  %v4038 = vunpack.c.h.b16 %v3871
  %v4039 = vunpack.c.l.b16 %v3872
  %v4040 = vunpack.c.h.b16 %v3872
  %v4041 = vunpack.c.l.b16 %v3873
  %v4042 = vunpack.c.h.b16 %v3873
  %v4043 = vunpack.c.l.b16 %v3874
  %v4044 = vunpack.c.h.b16 %v3874
  %v4045 = vunpack.c.l.b16 %v3875
  %v4046 = vunpack.c.h.b16 %v3875
  %v4047 = vunpack.c.l.b16 %v3876
  %v4048 = vunpack.c.h.b16 %v3876
  %v4049 = vunpack.c.l.b16 %v3877
  %v4050 = vunpack.c.h.b16 %v3877
  %v4051 = vunpack.c.l.b16 %v3878
  %v4052 = vunpack.c.h.b16 %v3878
  %v4053 = vunpack.c.l.b16 %v3879
  %v4054 = vunpack.c.h.b16 %v3879
  %v4055 = vunpack.c.l.b16 %v3880
  %v4056 = vunpack.c.h.b16 %v3880
  %v4057 = vunpack.c.l.b16 %v3881
  %v4058 = vunpack.c.h.b16 %v3881
  %v4059 = vunpack.c.l.b16 %v3882
  %v4060 = vunpack.c.h.b16 %v3882
  %v4061 = vunpack.c.l.b16 %v3883
  %v4062 = vunpack.c.h.b16 %v3883
  %v4063 = vunpack.c.l.b16 %v3884
  %v4064 = vunpack.c.h.b16 %v3884
  %v4065 = vunpack.c.l.b16 %v3885
  %v4066 = vunpack.c.h.b16 %v3885
  %v4067 = vunpack.c.l.b16 %v3886
  %v4068 = vunpack.c.h.b16 %v3886
  %v4069 = vunpack.c.l.b16 %v3887
  %v4070 = vunpack.c.h.b16 %v3887
  %v4071 = vunpack.c.l.b16 %v3888
  %v4072 = vunpack.c.h.b16 %v3888
  %v4073 = vunpack.c.l.b16 %v3889
  %v4074 = vunpack.c.h.b16 %v3889
  %v4075 = vunpack.c.l.b16 %v3890
  %v4076 = vunpack.c.h.b16 %v3890
  %v4077 = vunpack.c.l.b16 %v3891
  %v4078 = vunpack.c.h.b16 %v3891
  %v4079 = vunpack.c.l.b16 %v3892
  %v4080 = vunpack.c.h.b16 %v3892
  %v4081 = vunpack.c.l.b16 %v3893
  %v4082 = vunpack.c.h.b16 %v3893
  %v4083 = vunpack.c.l.b16 %v3894
  %v4084 = vunpack.c.h.b16 %v3894
  %v4085 = vunpack.c.l.b16 %v3895
  %v4086 = vunpack.c.h.b16 %v3895
  %v4087 = vunpack.c.l.b16 %v3896
  %v4088 = vunpack.c.h.b16 %v3896
  %v4089 = vunpack.c.l.b16 %v3897
  %v4090 = vunpack.c.h.b16 %v3897
  %v4091 = vunpack.c.l.b16 %v3898
  %v4092 = vunpack.c.h.b16 %v3898
  %v4093 = vunpack.c.l.b16 %v3899
  %v4094 = vunpack.c.h.b16 %v3899
  %v4095 = vunpack.c.l.b16 %v3900
  %v4096 = vunpack.c.h.b16 %v3900
  %v4097 = vunpack.c.l.b16 %v3901
  %v4098 = vunpack.c.h.b16 %v3901
  %v4099 = vunpack.c.l.b16 %v3902
  %v4100 = vunpack.c.h.b16 %v3902
  %v4101 = vunpack.c.l.b16 %v3903
  %v4102 = vunpack.c.h.b16 %v3903
  %v4103 = vunpack.c.l.b16 %v3904
  %v4104 = vunpack.c.h.b16 %v3904
  %v4105 = vunpack.c.l.b16 %v3905
  %v4106 = vunpack.c.h.b16 %v3905
  %v4107 = vunpack.c.l.b16 %v3906
  %v4108 = vunpack.c.h.b16 %v3906
  %v4109 = vunpack.c.l.b16 %v3907
  %v4110 = vunpack.c.h.b16 %v3907
  %v4111 = vunpack.c.l.b16 %v3908
  %v4112 = vunpack.c.h.b16 %v3908
  %v4113 = vpack.c.b16 %v3987, %v3985
  %v4114 = vpack.c.b16 %v3988, %v3986
  %v4115 = vpack.c.b16 %v3991, %v3989
  %v4116 = vpack.c.b16 %v3992, %v3990
  %v4117 = vpack.c.b16 %v3995, %v3993
  %v4118 = vpack.c.b16 %v3996, %v3994
  %v4119 = vpack.c.b16 %v3999, %v3997
  %v4120 = vpack.c.b16 %v4000, %v3998
  %v4121 = vpack.c.b16 %v4003, %v4001
  %v4122 = vpack.c.b16 %v4004, %v4002
  %v4123 = vpack.c.b16 %v4007, %v4005
  %v4124 = vpack.c.b16 %v4008, %v4006
  %v4125 = vpack.c.b16 %v4011, %v4009
  %v4126 = vpack.c.b16 %v4012, %v4010
  %v4127 = vpack.c.b16 %v4015, %v4013
  %v4128 = vpack.c.b16 %v4016, %v4014
  %v4129 = vpack.c.b16 %v4019, %v4017
  %v4130 = vpack.c.b16 %v4020, %v4018
  %v4131 = vpack.c.b16 %v4023, %v4021
  %v4132 = vpack.c.b16 %v4024, %v4022
  %v4133 = vpack.c.b16 %v4027, %v4025
  %v4134 = vpack.c.b16 %v4028, %v4026
  %v4135 = vpack.c.b16 %v4031, %v4029
  %v4136 = vpack.c.b16 %v4032, %v4030
  %v4137 = vpack.c.b16 %v4035, %v4033
  %v4138 = vpack.c.b16 %v4036, %v4034
  %v4139 = vpack.c.b16 %v4039, %v4037
  %v4140 = vpack.c.b16 %v4040, %v4038
  %v4141 = vpack.c.b16 %v4043, %v4041
  %v4142 = vpack.c.b16 %v4044, %v4042
  %v4143 = vpack.c.b16 %v4047, %v4045
  %v4144 = vpack.c.b16 %v4048, %v4046
  %v4145 = vpack.c.b16 %v4051, %v4049
  %v4146 = vpack.c.b16 %v4052, %v4050
  %v4147 = vpack.c.b16 %v4055, %v4053
  %v4148 = vpack.c.b16 %v4056, %v4054
  %v4149 = vpack.c.b16 %v4059, %v4057
  %v4150 = vpack.c.b16 %v4060, %v4058
  %v4151 = vpack.c.b16 %v4063, %v4061
  %v4152 = vpack.c.b16 %v4064, %v4062
  %v4153 = vpack.c.b16 %v4067, %v4065
  %v4154 = vpack.c.b16 %v4068, %v4066
  %v4155 = vpack.c.b16 %v4071, %v4069
  %v4156 = vpack.c.b16 %v4072, %v4070
  %v4157 = vpack.c.b16 %v4075, %v4073
  %v4158 = vpack.c.b16 %v4076, %v4074
  %v4159 = vpack.c.b16 %v4079, %v4077
  %v4160 = vpack.c.b16 %v4080, %v4078
  %v4161 = vpack.c.b16 %v4083, %v4081
  %v4162 = vpack.c.b16 %v4084, %v4082
  %v4163 = vpack.c.b16 %v4087, %v4085
  %v4164 = vpack.c.b16 %v4088, %v4086
  %v4165 = vpack.c.b16 %v4091, %v4089
  %v4166 = vpack.c.b16 %v4092, %v4090
  %v4167 = vpack.c.b16 %v4095, %v4093
  %v4168 = vpack.c.b16 %v4096, %v4094
  %v4169 = vpack.c.b16 %v4099, %v4097
  %v4170 = vpack.c.b16 %v4100, %v4098
  %v4171 = vpack.c.b16 %v4103, %v4101
  %v4172 = vpack.c.b16 %v4104, %v4102
  %v4173 = vpack.c.b16 %v4107, %v4105
  %v4174 = vpack.c.b16 %v4108, %v4106
  %v4175 = vpack.c.b16 %v4111, %v4109
  %v4176 = vpack.c.b16 %v4112, %v4110
  %4241 = vmatprep.subr.bf16.mxu0 %v4114
  %4242 = vmatpush1.bf16.msra.mxu0 %v4113
  %4243 = vmatprep.subr.bf16.mxu0 %v4116
  %4244 = vmatpush1.bf16.msra.mxu0 %v4115
  %4245 = vmatprep.subr.bf16.mxu0 %v4118
  %4246 = vmatpush1.bf16.msra.mxu0 %v4117
  %4247 = vmatprep.subr.bf16.mxu0 %v4120
  %4248 = vmatpush1.bf16.msra.mxu0 %v4119
  %4249 = vmatprep.subr.bf16.mxu0 %v4122
  %4250 = vmatpush1.bf16.msra.mxu0 %v4121
  %4251 = vmatprep.subr.bf16.mxu0 %v4124
  %4252 = vmatpush1.bf16.msra.mxu0 %v4123
  %4253 = vmatprep.subr.bf16.mxu0 %v4126
  %4254 = vmatpush1.bf16.msra.mxu0 %v4125
  %4255 = vmatprep.subr.bf16.mxu0 %v4128
  %4256 = vmatpush1.bf16.msra.mxu0 %v4127
  %4257 = vmatprep.subr.bf16.mxu0 %v4130
  %4258 = vmatpush1.bf16.msra.mxu0 %v4129
  %4259 = vmatprep.subr.bf16.mxu0 %v4132
  %4260 = vmatpush1.bf16.msra.mxu0 %v4131
  %4261 = vmatprep.subr.bf16.mxu0 %v4134
  %4262 = vmatpush1.bf16.msra.mxu0 %v4133
  %4263 = vmatprep.subr.bf16.mxu0 %v4136
  %4264 = vmatpush1.bf16.msra.mxu0 %v4135
  %4265 = vmatprep.subr.bf16.mxu0 %v4138
  %4266 = vmatpush1.bf16.msra.mxu0 %v4137
  %4267 = vmatprep.subr.bf16.mxu0 %v4140
  %4268 = vmatpush1.bf16.msra.mxu0 %v4139
  %4269 = vmatprep.subr.bf16.mxu0 %v4142
  %4270 = vmatpush1.bf16.msra.mxu0 %v4141
  %4271 = vmatprep.subr.bf16.mxu0 %v4144
  %4272 = vmatpush1.bf16.msra.mxu0 %v4143
  %4273 = vmatprep.mubr.bf16.mxu0 %v3782
  %4274 = vmatmul.mubr.bf16.gmra.mrb[0].mxu0 %v3781
  %v4275 = vpop.f32.mrb[0].mxu0
  %v4276 = vadd.f32 %v3914, %v4275
  %v4277 = vpop.f32.mrb[0].mxu0
  %v4278 = vadd.f32 %v3918, %v4277
  %v4279 = vpop.f32.mrb[0].mxu0
  %v4280 = vadd.f32 %v3914, %v4279
  %v4281 = vpop.f32.mrb[0].mxu0
  %v4282 = vadd.f32 %v3918, %v4281
  %4283 = vmatprep.mubr.bf16.mxu0 %v3786
  %4284 = vmatmul.mubr.bf16.gmra.mrb[0].mxu0 %v3785
  %v4285 = vpop.f32.mrb[0].mxu0
  %v4286 = vadd.f32 %v3914, %v4285
  %v4287 = vpop.f32.mrb[0].mxu0
  %v4288 = vadd.f32 %v3918, %v4287
  %v4289 = vpop.f32.mrb[0].mxu0
  %v4290 = vadd.f32 %v3914, %v4289
  %v4291 = vpop.f32.mrb[0].mxu0
  %v4292 = vadd.f32 %v3918, %v4291
  %4293 = vmatprep.mubr.bf16.mxu0 %v3790
  %4294 = vmatmul.mubr.bf16.gmra.mrb[0].mxu0 %v3789
  %v4295 = vpop.f32.mrb[0].mxu0
  %v4296 = vadd.f32 %v3914, %v4295
  %v4297 = vpop.f32.mrb[0].mxu0
  %v4298 = vadd.f32 %v3918, %v4297
  %v4299 = vpop.f32.mrb[0].mxu0
  %v4300 = vadd.f32 %v3914, %v4299
  %v4301 = vpop.f32.mrb[0].mxu0
  %v4302 = vadd.f32 %v3918, %v4301
  %4303 = vmatprep.mubr.bf16.mxu0 %v3794
  %4304 = vmatmul.mubr.bf16.gmra.mrb[0].mxu0 %v3793
  %v4305 = vpop.f32.mrb[0].mxu0
  %v4306 = vadd.f32 %v3914, %v4305
  %v4307 = vpop.f32.mrb[0].mxu0
  %v4308 = vadd.f32 %v3918, %v4307
  %v4309 = vpop.f32.mrb[0].mxu0
  %v4310 = vadd.f32 %v3914, %v4309
  %v4311 = vpop.f32.mrb[0].mxu0
  %v4312 = vadd.f32 %v3918, %v4311
  %4313 = vmatprep.mubr.bf16.mxu0 %v3798
  %4314 = vmatmul.mubr.bf16.gmra.mrb[0].mxu0 %v3797
  %v4315 = vpop.f32.mrb[0].mxu0
  %v4316 = vadd.f32 %v3914, %v4315
  %v4317 = vpop.f32.mrb[0].mxu0
  %v4318 = vadd.f32 %v3918, %v4317
  %v4319 = vpop.f32.mrb[0].mxu0
  %v4320 = vadd.f32 %v3914, %v4319
  %v4321 = vpop.f32.mrb[0].mxu0
  %v4322 = vadd.f32 %v3918, %v4321
  %4323 = vmatprep.mubr.bf16.mxu0 %v3802
  %4324 = vmatmul.mubr.bf16.gmra.mrb[0].mxu0 %v3801
  %v4325 = vpop.f32.mrb[0].mxu0
  %v4326 = vadd.f32 %v3914, %v4325
  %v4327 = vpop.f32.mrb[0].mxu0
  %v4328 = vadd.f32 %v3918, %v4327
  %v4329 = vpop.f32.mrb[0].mxu0
  %v4330 = vadd.f32 %v3914, %v4329
  %v4331 = vpop.f32.mrb[0].mxu0
  %v4332 = vadd.f32 %v3918, %v4331
  %4333 = vmatprep.mubr.bf16.mxu0 %v3806
  %4334 = vmatmul.mubr.bf16.gmra.mrb[0].mxu0 %v3805
  %v4335 = vpop.f32.mrb[0].mxu0
  %v4336 = vadd.f32 %v3914, %v4335
  %v4337 = vpop.f32.mrb[0].mxu0
  %v4338 = vadd.f32 %v3918, %v4337
  %v4339 = vpop.f32.mrb[0].mxu0
  %v4340 = vadd.f32 %v3914, %v4339
  %v4341 = vpop.f32.mrb[0].mxu0
  %v4342 = vadd.f32 %v3918, %v4341
  %4343 = vmatprep.mubr.bf16.mxu0 %v3810
  %4344 = vmatmul.mubr.bf16.gmra.mrb[0].mxu0 %v3809
  %v4345 = vpop.f32.mrb[0].mxu0
  %v4346 = vadd.f32 %v3914, %v4345
  %v4347 = vpop.f32.mrb[0].mxu0
  %v4348 = vadd.f32 %v3918, %v4347
  %v4349 = vpop.f32.mrb[0].mxu0
  %v4350 = vadd.f32 %v3914, %v4349
  %v4351 = vpop.f32.mrb[0].mxu0
  %v4352 = vadd.f32 %v3918, %v4351
  %4353 = vmatprep.mubr.bf16.mxu0 %v3814
  %4354 = vmatmul.mubr.bf16.gmra.mrb[0].mxu0 %v3813
  %v4355 = vpop.f32.mrb[0].mxu0
  %v4356 = vadd.f32 %v3914, %v4355
  %v4357 = vpop.f32.mrb[0].mxu0
  %v4358 = vadd.f32 %v3918, %v4357
  %v4359 = vpop.f32.mrb[0].mxu0
  %v4360 = vadd.f32 %v3914, %v4359
  %v4361 = vpop.f32.mrb[0].mxu0
  %v4362 = vadd.f32 %v3918, %v4361
  %4363 = vmatprep.mubr.bf16.mxu0 %v3818
  %4364 = vmatmul.mubr.bf16.gmra.mrb[0].mxu0 %v3817
  %v4365 = vpop.f32.mrb[0].mxu0
  %v4366 = vadd.f32 %v3914, %v4365
  %v4367 = vpop.f32.mrb[0].mxu0
  %v4368 = vadd.f32 %v3918, %v4367
  %v4369 = vpop.f32.mrb[0].mxu0
  %v4370 = vadd.f32 %v3914, %v4369
  %v4371 = vpop.f32.mrb[0].mxu0
  %v4372 = vadd.f32 %v3918, %v4371
  %4373 = vmatprep.mubr.bf16.mxu0 %v3822
  %4374 = vmatmul.mubr.bf16.gmra.mrb[0].mxu0 %v3821
  %v4375 = vpop.f32.mrb[0].mxu0
  %v4376 = vadd.f32 %v3914, %v4375
  %v4377 = vpop.f32.mrb[0].mxu0
  %v4378 = vadd.f32 %v3918, %v4377
  %v4379 = vpop.f32.mrb[0].mxu0
  %v4380 = vadd.f32 %v3914, %v4379
  %v4381 = vpop.f32.mrb[0].mxu0
  %v4382 = vadd.f32 %v3918, %v4381
  %4383 = vmatprep.mubr.bf16.mxu0 %v3826
  %4384 = vmatmul.mubr.bf16.gmra.mrb[0].mxu0 %v3825
  %v4385 = vpop.f32.mrb[0].mxu0
  %v4386 = vadd.f32 %v3914, %v4385
  %v4387 = vpop.f32.mrb[0].mxu0
  %v4388 = vadd.f32 %v3918, %v4387
  %v4389 = vpop.f32.mrb[0].mxu0
  %v4390 = vadd.f32 %v3914, %v4389
  %v4391 = vpop.f32.mrb[0].mxu0
  %v4392 = vadd.f32 %v3918, %v4391
  %4393 = vmatprep.mubr.bf16.mxu0 %v3830
  %4394 = vmatmul.mubr.bf16.gmra.mrb[0].mxu0 %v3829
  %v4395 = vpop.f32.mrb[0].mxu0
  %v4396 = vadd.f32 %v3914, %v4395
  %v4397 = vpop.f32.mrb[0].mxu0
  %v4398 = vadd.f32 %v3918, %v4397
  %v4399 = vpop.f32.mrb[0].mxu0
  %v4400 = vadd.f32 %v3914, %v4399
  %v4401 = vpop.f32.mrb[0].mxu0
  %v4402 = vadd.f32 %v3918, %v4401
  %4403 = vmatprep.mubr.bf16.mxu0 %v3834
  %4404 = vmatmul.mubr.bf16.gmra.mrb[0].mxu0 %v3833
  %v4405 = vpop.f32.mrb[0].mxu0
  %v4406 = vadd.f32 %v3914, %v4405
  %v4407 = vpop.f32.mrb[0].mxu0
  %v4408 = vadd.f32 %v3918, %v4407
  %v4409 = vpop.f32.mrb[0].mxu0
  %v4410 = vadd.f32 %v3914, %v4409
  %v4411 = vpop.f32.mrb[0].mxu0
  %v4412 = vadd.f32 %v3918, %v4411
  %4413 = vmatprep.mubr.bf16.mxu0 %v3838
  %4414 = vmatmul.mubr.bf16.gmra.mrb[0].mxu0 %v3837
  %v4415 = vpop.f32.mrb[0].mxu0
  %v4416 = vadd.f32 %v3914, %v4415
  %v4417 = vpop.f32.mrb[0].mxu0
  %v4418 = vadd.f32 %v3918, %v4417
  %v4419 = vpop.f32.mrb[0].mxu0
  %v4420 = vadd.f32 %v3914, %v4419
  %v4421 = vpop.f32.mrb[0].mxu0
  %v4422 = vadd.f32 %v3918, %v4421
  %4423 = vmatprep.mubr.bf16.mxu0 %v3842
  %4424 = vmatmul.mubr.bf16.gmra.mrb[0].mxu0 %v3841
  %v4425 = vpop.f32.mrb[0].mxu0
  %v4426 = vadd.f32 %v3914, %v4425
  %v4427 = vpop.f32.mrb[0].mxu0
  %v4428 = vadd.f32 %v3918, %v4427
  %v4429 = vpop.f32.mrb[0].mxu0
  %v4430 = vadd.f32 %v3914, %v4429
  %v4431 = vpop.f32.mrb[0].mxu0
  %v4432 = vadd.f32 %v3918, %v4431
  %4433 = vdwg.mxu0
  %4434 = vmatprep.subr.bf16.mxu0 %v4146
  %4435 = vmatpush1.bf16.msra.mxu0 %v4145
  %4436 = vmatprep.subr.bf16.mxu0 %v4148
  %4437 = vmatpush1.bf16.msra.mxu0 %v4147
  %4438 = vmatprep.subr.bf16.mxu0 %v4150
  %4439 = vmatpush1.bf16.msra.mxu0 %v4149
  %4440 = vmatprep.subr.bf16.mxu0 %v4152
  %4441 = vmatpush1.bf16.msra.mxu0 %v4151
  %4442 = vmatprep.subr.bf16.mxu0 %v4154
  %4443 = vmatpush1.bf16.msra.mxu0 %v4153
  %4444 = vmatprep.subr.bf16.mxu0 %v4156
  %4445 = vmatpush1.bf16.msra.mxu0 %v4155
  %4446 = vmatprep.subr.bf16.mxu0 %v4158
  %4447 = vmatpush1.bf16.msra.mxu0 %v4157
  %4448 = vmatprep.subr.bf16.mxu0 %v4160
  %4449 = vmatpush1.bf16.msra.mxu0 %v4159
  %4450 = vmatprep.subr.bf16.mxu0 %v4162
  %4451 = vmatpush1.bf16.msra.mxu0 %v4161
  %4452 = vmatprep.subr.bf16.mxu0 %v4164
  %4453 = vmatpush1.bf16.msra.mxu0 %v4163
  %4454 = vmatprep.subr.bf16.mxu0 %v4166
  %4455 = vmatpush1.bf16.msra.mxu0 %v4165
  %4456 = vmatprep.subr.bf16.mxu0 %v4168
  %4457 = vmatpush1.bf16.msra.mxu0 %v4167
  %4458 = vmatprep.subr.bf16.mxu0 %v4170
  %4459 = vmatpush1.bf16.msra.mxu0 %v4169
  %4460 = vmatprep.subr.bf16.mxu0 %v4172
  %4461 = vmatpush1.bf16.msra.mxu0 %v4171
  %4462 = vmatprep.subr.bf16.mxu0 %v4174
  %4463 = vmatpush1.bf16.msra.mxu0 %v4173
  %4464 = vmatprep.subr.bf16.mxu0 %v4176
  %4465 = vmatpush1.bf16.msra.mxu0 %v4175
  %4466 = vmatprep.mubr.bf16.mxu0 %v3784
  %4467 = vmatmul.mubr.bf16.gmra.mrb[0].mxu0 %v3783
  %v4468 = vpop.f32.mrb[0].mxu0
  %v4469 = vadd.f32 %v4276, %v4468
  %v4470 = vpop.f32.mrb[0].mxu0
  %v4471 = vadd.f32 %v4278, %v4470
  %v4472 = vpop.f32.mrb[0].mxu0
  %v4473 = vadd.f32 %v4280, %v4472
  %v4474 = vpop.f32.mrb[0].mxu0
  %v4475 = vadd.f32 %v4282, %v4474
  %4476 = vmatprep.mubr.bf16.mxu0 %v3788
  %4477 = vmatmul.mubr.bf16.gmra.mrb[0].mxu0 %v3787
  %v4478 = vpop.f32.mrb[0].mxu0
  %v4479 = vadd.f32 %v4286, %v4478
  %v4480 = vpop.f32.mrb[0].mxu0
  %v4481 = vadd.f32 %v4288, %v4480
  %v4482 = vpop.f32.mrb[0].mxu0
  %v4483 = vadd.f32 %v4290, %v4482
  %v4484 = vpop.f32.mrb[0].mxu0
  %v4485 = vadd.f32 %v4292, %v4484
  %4486 = vmatprep.mubr.bf16.mxu0 %v3792
  %4487 = vmatmul.mubr.bf16.gmra.mrb[0].mxu0 %v3791
  %v4488 = vpop.f32.mrb[0].mxu0
  %v4489 = vadd.f32 %v4296, %v4488
  %v4490 = vpop.f32.mrb[0].mxu0
  %v4491 = vadd.f32 %v4298, %v4490
  %v4492 = vpop.f32.mrb[0].mxu0
  %v4493 = vadd.f32 %v4300, %v4492
  %v4494 = vpop.f32.mrb[0].mxu0
  %v4495 = vadd.f32 %v4302, %v4494
  %4496 = vmatprep.mubr.bf16.mxu0 %v3796
  %4497 = vmatmul.mubr.bf16.gmra.mrb[0].mxu0 %v3795
  %v4498 = vpop.f32.mrb[0].mxu0
  %v4499 = vadd.f32 %v4306, %v4498
  %v4500 = vpop.f32.mrb[0].mxu0
  %v4501 = vadd.f32 %v4308, %v4500
  %v4502 = vpop.f32.mrb[0].mxu0
  %v4503 = vadd.f32 %v4310, %v4502
  %v4504 = vpop.f32.mrb[0].mxu0
  %v4505 = vadd.f32 %v4312, %v4504
  %4506 = vmatprep.mubr.bf16.mxu0 %v3800
  %4507 = vmatmul.mubr.bf16.gmra.mrb[0].mxu0 %v3799
  %v4508 = vpop.f32.mrb[0].mxu0
  %v4509 = vadd.f32 %v4316, %v4508
  %v4510 = vpop.f32.mrb[0].mxu0
  %v4511 = vadd.f32 %v4318, %v4510
  %v4512 = vpop.f32.mrb[0].mxu0
  %v4513 = vadd.f32 %v4320, %v4512
  %v4514 = vpop.f32.mrb[0].mxu0
  %v4515 = vadd.f32 %v4322, %v4514
  %4516 = vmatprep.mubr.bf16.mxu0 %v3804
  %4517 = vmatmul.mubr.bf16.gmra.mrb[0].mxu0 %v3803
  %v4518 = vpop.f32.mrb[0].mxu0
  %v4519 = vadd.f32 %v4326, %v4518
  %v4520 = vpop.f32.mrb[0].mxu0
  %v4521 = vadd.f32 %v4328, %v4520
  %v4522 = vpop.f32.mrb[0].mxu0
  %v4523 = vadd.f32 %v4330, %v4522
  %v4524 = vpop.f32.mrb[0].mxu0
  %v4525 = vadd.f32 %v4332, %v4524
  %4526 = vmatprep.mubr.bf16.mxu0 %v3808
  %4527 = vmatmul.mubr.bf16.gmra.mrb[0].mxu0 %v3807
  %v4528 = vpop.f32.mrb[0].mxu0
  %v4529 = vadd.f32 %v4336, %v4528
  %v4530 = vpop.f32.mrb[0].mxu0
  %v4531 = vadd.f32 %v4338, %v4530
  %v4532 = vpop.f32.mrb[0].mxu0
  %v4533 = vadd.f32 %v4340, %v4532
  %v4534 = vpop.f32.mrb[0].mxu0
  %v4535 = vadd.f32 %v4342, %v4534
  %4536 = vmatprep.mubr.bf16.mxu0 %v3812
  %4537 = vmatmul.mubr.bf16.gmra.mrb[0].mxu0 %v3811
  %v4538 = vpop.f32.mrb[0].mxu0
  %v4539 = vadd.f32 %v4346, %v4538
  %v4540 = vpop.f32.mrb[0].mxu0
  %v4541 = vadd.f32 %v4348, %v4540
  %v4542 = vpop.f32.mrb[0].mxu0
  %v4543 = vadd.f32 %v4350, %v4542
  %v4544 = vpop.f32.mrb[0].mxu0
  %v4545 = vadd.f32 %v4352, %v4544
  %4546 = vmatprep.mubr.bf16.mxu0 %v3816
  %4547 = vmatmul.mubr.bf16.gmra.mrb[0].mxu0 %v3815
  %v4548 = vpop.f32.mrb[0].mxu0
  %v4549 = vadd.f32 %v4356, %v4548
  %v4550 = vpop.f32.mrb[0].mxu0
  %v4551 = vadd.f32 %v4358, %v4550
  %v4552 = vpop.f32.mrb[0].mxu0
  %v4553 = vadd.f32 %v4360, %v4552
  %v4554 = vpop.f32.mrb[0].mxu0
  %v4555 = vadd.f32 %v4362, %v4554
  %4556 = vmatprep.mubr.bf16.mxu0 %v3820
  %4557 = vmatmul.mubr.bf16.gmra.mrb[0].mxu0 %v3819
  %v4558 = vpop.f32.mrb[0].mxu0
  %v4559 = vadd.f32 %v4366, %v4558
  %v4560 = vpop.f32.mrb[0].mxu0
  %v4561 = vadd.f32 %v4368, %v4560
  %v4562 = vpop.f32.mrb[0].mxu0
  %v4563 = vadd.f32 %v4370, %v4562
  %v4564 = vpop.f32.mrb[0].mxu0
  %v4565 = vadd.f32 %v4372, %v4564
  %4566 = vmatprep.mubr.bf16.mxu0 %v3824
  %4567 = vmatmul.mubr.bf16.gmra.mrb[0].mxu0 %v3823
  %v4568 = vpop.f32.mrb[0].mxu0
  %v4569 = vadd.f32 %v4376, %v4568
  %v4570 = vpop.f32.mrb[0].mxu0
  %v4571 = vadd.f32 %v4378, %v4570
  %v4572 = vpop.f32.mrb[0].mxu0
  %v4573 = vadd.f32 %v4380, %v4572
  %v4574 = vpop.f32.mrb[0].mxu0
  %v4575 = vadd.f32 %v4382, %v4574
  %4576 = vmatprep.mubr.bf16.mxu0 %v3828
  %4577 = vmatmul.mubr.bf16.gmra.mrb[0].mxu0 %v3827
  %v4578 = vpop.f32.mrb[0].mxu0
  %v4579 = vadd.f32 %v4386, %v4578
  %v4580 = vpop.f32.mrb[0].mxu0
  %v4581 = vadd.f32 %v4388, %v4580
  %v4582 = vpop.f32.mrb[0].mxu0
  %v4583 = vadd.f32 %v4390, %v4582
  %v4584 = vpop.f32.mrb[0].mxu0
  %v4585 = vadd.f32 %v4392, %v4584
  %4586 = vmatprep.mubr.bf16.mxu0 %v3832
  %4587 = vmatmul.mubr.bf16.gmra.mrb[0].mxu0 %v3831
  %v4588 = vpop.f32.mrb[0].mxu0
  %v4589 = vadd.f32 %v4396, %v4588
  %v4590 = vpop.f32.mrb[0].mxu0
  %v4591 = vadd.f32 %v4398, %v4590
  %v4592 = vpop.f32.mrb[0].mxu0
  %v4593 = vadd.f32 %v4400, %v4592
  %v4594 = vpop.f32.mrb[0].mxu0
  %v4595 = vadd.f32 %v4402, %v4594
  %4596 = vmatprep.mubr.bf16.mxu0 %v3836
  %4597 = vmatmul.mubr.bf16.gmra.mrb[0].mxu0 %v3835
  %v4598 = vpop.f32.mrb[0].mxu0
  %v4599 = vadd.f32 %v4406, %v4598
  %v4600 = vpop.f32.mrb[0].mxu0
  %v4601 = vadd.f32 %v4408, %v4600
  %v4602 = vpop.f32.mrb[0].mxu0
  %v4603 = vadd.f32 %v4410, %v4602
  %v4604 = vpop.f32.mrb[0].mxu0
  %v4605 = vadd.f32 %v4412, %v4604
  %4606 = vmatprep.mubr.bf16.mxu0 %v3840
  %4607 = vmatmul.mubr.bf16.gmra.mrb[0].mxu0 %v3839
  %v4608 = vpop.f32.mrb[0].mxu0
  %v4609 = vadd.f32 %v4416, %v4608
  %v4610 = vpop.f32.mrb[0].mxu0
  %v4611 = vadd.f32 %v4418, %v4610
  %v4612 = vpop.f32.mrb[0].mxu0
  %v4613 = vadd.f32 %v4420, %v4612
  %v4614 = vpop.f32.mrb[0].mxu0
  %v4615 = vadd.f32 %v4422, %v4614
  %4616 = vmatprep.mubr.bf16.mxu0 %v3844
  %4617 = vmatmul.mubr.bf16.gmra.mrb[0].mxu0 %v3843
  %v4618 = vpop.f32.mrb[0].mxu0
  %v4619 = vadd.f32 %v4426, %v4618
  %v4620 = vpop.f32.mrb[0].mxu0
  %v4621 = vadd.f32 %v4428, %v4620
  %v4622 = vpop.f32.mrb[0].mxu0
  %v4623 = vadd.f32 %v4430, %v4622
  %v4624 = vpop.f32.mrb[0].mxu0
  %v4625 = vadd.f32 %v4432, %v4624
  %4626 = vdwg.mxu0
  %v4627 = vmax.f32 %v4469, 0.0
  %v4628 = vmax.f32 %v4471, 0.0
  %v4629 = vmax.f32 %v4473, 0.0
  %v4630 = vmax.f32 %v4475, 0.0
  %v4631 = vmax.f32 %v4479, 0.0
  %v4632 = vmax.f32 %v4481, 0.0
  %v4633 = vmax.f32 %v4483, 0.0
  %v4634 = vmax.f32 %v4485, 0.0
  %v4635 = vmax.f32 %v4489, 0.0
  %v4636 = vmax.f32 %v4491, 0.0
  %v4637 = vmax.f32 %v4493, 0.0
  %v4638 = vmax.f32 %v4495, 0.0
  %v4639 = vmax.f32 %v4499, 0.0
  %v4640 = vmax.f32 %v4501, 0.0
  %v4641 = vmax.f32 %v4503, 0.0
  %v4642 = vmax.f32 %v4505, 0.0
  %v4643 = vmax.f32 %v4509, 0.0
  %v4644 = vmax.f32 %v4511, 0.0
  %v4645 = vmax.f32 %v4513, 0.0
  %v4646 = vmax.f32 %v4515, 0.0
  %v4647 = vmax.f32 %v4519, 0.0
  %v4648 = vmax.f32 %v4521, 0.0
  %v4649 = vmax.f32 %v4523, 0.0
  %v4650 = vmax.f32 %v4525, 0.0
  %v4651 = vmax.f32 %v4529, 0.0
  %v4652 = vmax.f32 %v4531, 0.0
  %v4653 = vmax.f32 %v4533, 0.0
  %v4654 = vmax.f32 %v4535, 0.0
  %v4655 = vmax.f32 %v4539, 0.0
  %v4656 = vmax.f32 %v4541, 0.0
  %v4657 = vmax.f32 %v4543, 0.0
  %v4658 = vmax.f32 %v4545, 0.0
  %v4659 = vmax.f32 %v4549, 0.0
  %v4660 = vmax.f32 %v4551, 0.0
  %v4661 = vmax.f32 %v4553, 0.0
  %v4662 = vmax.f32 %v4555, 0.0
  %v4663 = vmax.f32 %v4559, 0.0
  %v4664 = vmax.f32 %v4561, 0.0
  %v4665 = vmax.f32 %v4563, 0.0
  %v4666 = vmax.f32 %v4565, 0.0
  %v4667 = vmax.f32 %v4569, 0.0
  %v4668 = vmax.f32 %v4571, 0.0
  %v4669 = vmax.f32 %v4573, 0.0
  %v4670 = vmax.f32 %v4575, 0.0
  %v4671 = vmax.f32 %v4579, 0.0
  %v4672 = vmax.f32 %v4581, 0.0
  %v4673 = vmax.f32 %v4583, 0.0
  %v4674 = vmax.f32 %v4585, 0.0
  %v4675 = vmax.f32 %v4589, 0.0
  %v4676 = vmax.f32 %v4591, 0.0
  %v4677 = vmax.f32 %v4593, 0.0
  %v4678 = vmax.f32 %v4595, 0.0
  %v4679 = vmax.f32 %v4599, 0.0
  %v4680 = vmax.f32 %v4601, 0.0
  %v4681 = vmax.f32 %v4603, 0.0
  %v4682 = vmax.f32 %v4605, 0.0
  %v4683 = vmax.f32 %v4609, 0.0
  %v4684 = vmax.f32 %v4611, 0.0
  %v4685 = vmax.f32 %v4613, 0.0
  %v4686 = vmax.f32 %v4615, 0.0
  %v4687 = vmax.f32 %v4619, 0.0
  %v4688 = vmax.f32 %v4621, 0.0
  %v4689 = vmax.f32 %v4623, 0.0
  %v4690 = vmax.f32 %v4625, 0.0
  %v4691 = vpack.c.bf16 %v4629, %v4627
  %v4692 = vpack.c.bf16 %v4630, %v4628
  %v4693 = vpack.c.bf16 %v4633, %v4631
  %v4694 = vpack.c.bf16 %v4634, %v4632
  %v4695 = vpack.c.bf16 %v4637, %v4635
  %v4696 = vpack.c.bf16 %v4638, %v4636
  %v4697 = vpack.c.bf16 %v4641, %v4639
  %v4698 = vpack.c.bf16 %v4642, %v4640
  %v4699 = vpack.c.bf16 %v4645, %v4643
  %v4700 = vpack.c.bf16 %v4646, %v4644
  %v4701 = vpack.c.bf16 %v4649, %v4647
  %v4702 = vpack.c.bf16 %v4650, %v4648
  %v4703 = vpack.c.bf16 %v4653, %v4651
  %v4704 = vpack.c.bf16 %v4654, %v4652
  %v4705 = vpack.c.bf16 %v4657, %v4655
  %v4706 = vpack.c.bf16 %v4658, %v4656
  %v4707 = vpack.c.bf16 %v4661, %v4659
  %v4708 = vpack.c.bf16 %v4662, %v4660
  %v4709 = vpack.c.bf16 %v4665, %v4663
  %v4710 = vpack.c.bf16 %v4666, %v4664
  %v4711 = vpack.c.bf16 %v4669, %v4667
  %v4712 = vpack.c.bf16 %v4670, %v4668
  %v4713 = vpack.c.bf16 %v4673, %v4671
  %v4714 = vpack.c.bf16 %v4674, %v4672
  %v4715 = vpack.c.bf16 %v4677, %v4675
  %v4716 = vpack.c.bf16 %v4678, %v4676
  %v4717 = vpack.c.bf16 %v4681, %v4679
  %v4718 = vpack.c.bf16 %v4682, %v4680
  %v4719 = vpack.c.bf16 %v4685, %v4683
  %v4720 = vpack.c.bf16 %v4686, %v4684
  %v4721 = vpack.c.bf16 %v4689, %v4687
  %v4722 = vpack.c.bf16 %v4690, %v4688
  %v4723 = vld [vmem:[%s5] sm:$0xf]
  %v4724 = vld [vmem:[%s5 + $0x4] sm:$0xf]
  %v4725 = vld [vmem:[%s5 + $0x8] sm:$0xf]
  %v4726 = vld [vmem:[%s5 + $0xc] sm:$0xf]
  %v4727 = vld [vmem:[%s5 + $0x10] sm:$0xf]
  %v4728 = vld [vmem:[%s5 + $0x14] sm:$0xf]
  %v4729 = vld [vmem:[%s5 + $0x18] sm:$0xf]
  %v4730 = vld [vmem:[%s5 + $0x1c] sm:$0xf]
  %v4731 = vld [vmem:[%s5 + $0x20] sm:$0xf]
  %v4732 = vld [vmem:[%s5 + $0x24] sm:$0xf]
  %v4733 = vld [vmem:[%s5 + $0x28] sm:$0xf]
  %v4734 = vld [vmem:[%s5 + $0x2c] sm:$0xf]
  %v4735 = vld [vmem:[%s5 + $0x30] sm:$0xf]
  %v4736 = vld [vmem:[%s5 + $0x34] sm:$0xf]
  %v4737 = vld [vmem:[%s5 + $0x38] sm:$0xf]
  %v4738 = vld [vmem:[%s5 + $0x3c] sm:$0xf]
  %v4739 = vld [vmem:[%s5 + $0x40] sm:$0xf]
  %v4740 = vld [vmem:[%s5 + $0x44] sm:$0xf]
  %v4741 = vld [vmem:[%s5 + $0x48] sm:$0xf]
  %v4742 = vld [vmem:[%s5 + $0x4c] sm:$0xf]
  %v4743 = vld [vmem:[%s5 + $0x50] sm:$0xf]
  %v4744 = vld [vmem:[%s5 + $0x54] sm:$0xf]
  %v4745 = vld [vmem:[%s5 + $0x58] sm:$0xf]
  %v4746 = vld [vmem:[%s5 + $0x5c] sm:$0xf]
  %v4747 = vld [vmem:[%s5 + $0x60] sm:$0xf]
  %v4748 = vld [vmem:[%s5 + $0x64] sm:$0xf]
  %v4749 = vld [vmem:[%s5 + $0x68] sm:$0xf]
  %v4750 = vld [vmem:[%s5 + $0x6c] sm:$0xf]
  %v4751 = vld [vmem:[%s5 + $0x70] sm:$0xf]
  %v4752 = vld [vmem:[%s5 + $0x74] sm:$0xf]
  %v4753 = vld [vmem:[%s5 + $0x78] sm:$0xf]
  %v4754 = vld [vmem:[%s5 + $0x7c] sm:$0xf]
  %v4755 = vld [vmem:[%s6] sm:$0x1]
  %v4757 = vlaneseq
  %v4758 = vshrl.u32 %v4757, 7
  %v4759 = vsub.s32 0, %v4758
  %v4760 = vrot.slane %v4755, %v4759
  %v4794 = vunpack.c.l.b16 %v4723
  %v4795 = vunpack.c.l.b16 %v4724
  %v4796 = vunpack.c.l.b16 %v4725
  %v4797 = vunpack.c.l.b16 %v4726
  %v4798 = vunpack.c.l.b16 %v4727
  %v4799 = vunpack.c.l.b16 %v4728
  %v4800 = vunpack.c.l.b16 %v4729
  %v4801 = vunpack.c.l.b16 %v4730
  %v4802 = vunpack.c.l.b16 %v4731
  %v4803 = vunpack.c.l.b16 %v4732
  %v4804 = vunpack.c.l.b16 %v4733
  %v4805 = vunpack.c.l.b16 %v4734
  %v4806 = vunpack.c.l.b16 %v4735
  %v4807 = vunpack.c.l.b16 %v4736
  %v4808 = vunpack.c.l.b16 %v4737
  %v4809 = vunpack.c.l.b16 %v4738
  %v4810 = vunpack.c.l.b16 %v4739
  %v4811 = vunpack.c.l.b16 %v4740
  %v4812 = vunpack.c.l.b16 %v4741
  %v4813 = vunpack.c.l.b16 %v4742
  %v4814 = vunpack.c.l.b16 %v4743
  %v4815 = vunpack.c.l.b16 %v4744
  %v4816 = vunpack.c.l.b16 %v4745
  %v4817 = vunpack.c.l.b16 %v4746
  %v4818 = vunpack.c.l.b16 %v4747
  %v4819 = vunpack.c.l.b16 %v4748
  %v4820 = vunpack.c.l.b16 %v4749
  %v4821 = vunpack.c.l.b16 %v4750
  %v4822 = vunpack.c.l.b16 %v4751
  %v4823 = vunpack.c.l.b16 %v4752
  %v4824 = vunpack.c.l.b16 %v4753
  %v4825 = vunpack.c.l.b16 %v4754
  %v4826 = vpack.c.b16 %v4795, %v4794
  %v4827 = vpack.c.b16 %v4797, %v4796
  %v4828 = vpack.c.b16 %v4799, %v4798
  %v4829 = vpack.c.b16 %v4801, %v4800
  %v4830 = vpack.c.b16 %v4803, %v4802
  %v4831 = vpack.c.b16 %v4805, %v4804
  %v4832 = vpack.c.b16 %v4807, %v4806
  %v4833 = vpack.c.b16 %v4809, %v4808
  %v4834 = vpack.c.b16 %v4811, %v4810
  %v4835 = vpack.c.b16 %v4813, %v4812
  %v4836 = vpack.c.b16 %v4815, %v4814
  %v4837 = vpack.c.b16 %v4817, %v4816
  %v4838 = vpack.c.b16 %v4819, %v4818
  %v4839 = vpack.c.b16 %v4821, %v4820
  %v4840 = vpack.c.b16 %v4823, %v4822
  %v4841 = vpack.c.b16 %v4825, %v4824
  %4858 = vmatprep.subr.bf16.mxu0 0
  %4859 = vmatpush1.bf16.msra.mxu0 %v4826
  %4860 = vmatprep.subr.bf16.mxu0 0
  %4861 = vmatpush1.bf16.msra.mxu0 %v4827
  %4862 = vmatprep.subr.bf16.mxu0 0
  %4863 = vmatpush1.bf16.msra.mxu0 %v4828
  %4864 = vmatprep.subr.bf16.mxu0 0
  %4865 = vmatpush1.bf16.msra.mxu0 %v4829
  %4866 = vmatprep.subr.bf16.mxu0 0
  %4867 = vmatpush1.bf16.msra.mxu0 %v4830
  %4868 = vmatprep.subr.bf16.mxu0 0
  %4869 = vmatpush1.bf16.msra.mxu0 %v4831
  %4870 = vmatprep.subr.bf16.mxu0 0
  %4871 = vmatpush1.bf16.msra.mxu0 %v4832
  %4872 = vmatprep.subr.bf16.mxu0 0
  %4873 = vmatpush1.bf16.msra.mxu0 %v4833
  %4874 = vmatprep.subr.bf16.mxu0 0
  %4875 = vmatpush1.bf16.msra.mxu0 %v4834
  %4876 = vmatprep.subr.bf16.mxu0 0
  %4877 = vmatpush1.bf16.msra.mxu0 %v4835
  %4878 = vmatprep.subr.bf16.mxu0 0
  %4879 = vmatpush1.bf16.msra.mxu0 %v4836
  %4880 = vmatprep.subr.bf16.mxu0 0
  %4881 = vmatpush1.bf16.msra.mxu0 %v4837
  %4882 = vmatprep.subr.bf16.mxu0 0
  %4883 = vmatpush1.bf16.msra.mxu0 %v4838
  %4884 = vmatprep.subr.bf16.mxu0 0
  %4885 = vmatpush1.bf16.msra.mxu0 %v4839
  %4886 = vmatprep.subr.bf16.mxu0 0
  %4887 = vmatpush1.bf16.msra.mxu0 %v4840
  %4888 = vmatprep.subr.bf16.mxu0 0
  %4889 = vmatpush1.bf16.msra.mxu0 %v4841
  %4890 = vmatprep.mubr.bf16.mxu0 %v4692
  %4891 = vmatmul.mubr.bf16.gmra.mrb[0].mxu0 %v4691
  %v4892 = vpop.f32.mrb[0].mxu0
  %v4893 = vadd.f32 %v4760, %v4892
  %v4894 = vpop.f32.mrb[0].mxu0
  %v4895 = vpop.f32.mrb[0].mxu0
  %v4896 = vadd.f32 %v4760, %v4895
  %v4897 = vpop.f32.mrb[0].mxu0
  %4898 = vmatprep.mubr.bf16.mxu0 %v4694
  %4899 = vmatmul.mubr.bf16.gmra.mrb[0].mxu0 %v4693
  %v4900 = vpop.f32.mrb[0].mxu0
  %v4901 = vadd.f32 %v4760, %v4900
  %v4902 = vpop.f32.mrb[0].mxu0
  %v4903 = vpop.f32.mrb[0].mxu0
  %v4904 = vadd.f32 %v4760, %v4903
  %v4905 = vpop.f32.mrb[0].mxu0
  %4906 = vmatprep.mubr.bf16.mxu0 %v4696
  %4907 = vmatmul.mubr.bf16.gmra.mrb[0].mxu0 %v4695
  %v4908 = vpop.f32.mrb[0].mxu0
  %v4909 = vadd.f32 %v4760, %v4908
  %v4910 = vpop.f32.mrb[0].mxu0
  %v4911 = vpop.f32.mrb[0].mxu0
  %v4912 = vadd.f32 %v4760, %v4911
  %v4913 = vpop.f32.mrb[0].mxu0
  %4914 = vmatprep.mubr.bf16.mxu0 %v4698
  %4915 = vmatmul.mubr.bf16.gmra.mrb[0].mxu0 %v4697
  %v4916 = vpop.f32.mrb[0].mxu0
  %v4917 = vadd.f32 %v4760, %v4916
  %v4918 = vpop.f32.mrb[0].mxu0
  %v4919 = vpop.f32.mrb[0].mxu0
  %v4920 = vadd.f32 %v4760, %v4919
  %v4921 = vpop.f32.mrb[0].mxu0
  %4922 = vmatprep.mubr.bf16.mxu0 %v4700
  %4923 = vmatmul.mubr.bf16.gmra.mrb[0].mxu0 %v4699
  %v4924 = vpop.f32.mrb[0].mxu0
  %v4925 = vadd.f32 %v4760, %v4924
  %v4926 = vpop.f32.mrb[0].mxu0
  %v4927 = vpop.f32.mrb[0].mxu0
  %v4928 = vadd.f32 %v4760, %v4927
  %v4929 = vpop.f32.mrb[0].mxu0
  %4930 = vmatprep.mubr.bf16.mxu0 %v4702
  %4931 = vmatmul.mubr.bf16.gmra.mrb[0].mxu0 %v4701
  %v4932 = vpop.f32.mrb[0].mxu0
  %v4933 = vadd.f32 %v4760, %v4932
  %v4934 = vpop.f32.mrb[0].mxu0
  %v4935 = vpop.f32.mrb[0].mxu0
  %v4936 = vadd.f32 %v4760, %v4935
  %v4937 = vpop.f32.mrb[0].mxu0
  %4938 = vmatprep.mubr.bf16.mxu0 %v4704
  %4939 = vmatmul.mubr.bf16.gmra.mrb[0].mxu0 %v4703
  %v4940 = vpop.f32.mrb[0].mxu0
  %v4941 = vadd.f32 %v4760, %v4940
  %v4942 = vpop.f32.mrb[0].mxu0
  %v4943 = vpop.f32.mrb[0].mxu0
  %v4944 = vadd.f32 %v4760, %v4943
  %v4945 = vpop.f32.mrb[0].mxu0
  %4946 = vmatprep.mubr.bf16.mxu0 %v4706
  %4947 = vmatmul.mubr.bf16.gmra.mrb[0].mxu0 %v4705
  %v4948 = vpop.f32.mrb[0].mxu0
  %v4949 = vadd.f32 %v4760, %v4948
  %v4950 = vpop.f32.mrb[0].mxu0
  %v4951 = vpop.f32.mrb[0].mxu0
  %v4952 = vadd.f32 %v4760, %v4951
  %v4953 = vpop.f32.mrb[0].mxu0
  %4954 = vmatprep.mubr.bf16.mxu0 %v4708
  %4955 = vmatmul.mubr.bf16.gmra.mrb[0].mxu0 %v4707
  %v4956 = vpop.f32.mrb[0].mxu0
  %v4957 = vadd.f32 %v4760, %v4956
  %v4958 = vpop.f32.mrb[0].mxu0
  %v4959 = vpop.f32.mrb[0].mxu0
  %v4960 = vadd.f32 %v4760, %v4959
  %v4961 = vpop.f32.mrb[0].mxu0
  %4962 = vmatprep.mubr.bf16.mxu0 %v4710
  %4963 = vmatmul.mubr.bf16.gmra.mrb[0].mxu0 %v4709
  %v4964 = vpop.f32.mrb[0].mxu0
  %v4965 = vadd.f32 %v4760, %v4964
  %v4966 = vpop.f32.mrb[0].mxu0
  %v4967 = vpop.f32.mrb[0].mxu0
  %v4968 = vadd.f32 %v4760, %v4967
  %v4969 = vpop.f32.mrb[0].mxu0
  %4970 = vmatprep.mubr.bf16.mxu0 %v4712
  %4971 = vmatmul.mubr.bf16.gmra.mrb[0].mxu0 %v4711
  %v4972 = vpop.f32.mrb[0].mxu0
  %v4973 = vadd.f32 %v4760, %v4972
  %v4974 = vpop.f32.mrb[0].mxu0
  %v4975 = vpop.f32.mrb[0].mxu0
  %v4976 = vadd.f32 %v4760, %v4975
  %v4977 = vpop.f32.mrb[0].mxu0
  %4978 = vmatprep.mubr.bf16.mxu0 %v4714
  %4979 = vmatmul.mubr.bf16.gmra.mrb[0].mxu0 %v4713
  %v4980 = vpop.f32.mrb[0].mxu0
  %v4981 = vadd.f32 %v4760, %v4980
  %v4982 = vpop.f32.mrb[0].mxu0
  %v4983 = vpop.f32.mrb[0].mxu0
  %v4984 = vadd.f32 %v4760, %v4983
  %v4985 = vpop.f32.mrb[0].mxu0
  %4986 = vmatprep.mubr.bf16.mxu0 %v4716
  %4987 = vmatmul.mubr.bf16.gmra.mrb[0].mxu0 %v4715
  %v4988 = vpop.f32.mrb[0].mxu0
  %v4989 = vadd.f32 %v4760, %v4988
  %v4990 = vpop.f32.mrb[0].mxu0
  %v4991 = vpop.f32.mrb[0].mxu0
  %v4992 = vadd.f32 %v4760, %v4991
  %v4993 = vpop.f32.mrb[0].mxu0
  %4994 = vmatprep.mubr.bf16.mxu0 %v4718
  %4995 = vmatmul.mubr.bf16.gmra.mrb[0].mxu0 %v4717
  %v4996 = vpop.f32.mrb[0].mxu0
  %v4997 = vadd.f32 %v4760, %v4996
  %v4998 = vpop.f32.mrb[0].mxu0
  %v4999 = vpop.f32.mrb[0].mxu0
  %v5000 = vadd.f32 %v4760, %v4999
  %v5001 = vpop.f32.mrb[0].mxu0
  %5002 = vmatprep.mubr.bf16.mxu0 %v4720
  %5003 = vmatmul.mubr.bf16.gmra.mrb[0].mxu0 %v4719
  %v5004 = vpop.f32.mrb[0].mxu0
  %v5005 = vadd.f32 %v4760, %v5004
  %v5006 = vpop.f32.mrb[0].mxu0
  %v5007 = vpop.f32.mrb[0].mxu0
  %v5008 = vadd.f32 %v4760, %v5007
  %v5009 = vpop.f32.mrb[0].mxu0
  %5010 = vmatprep.mubr.bf16.mxu0 %v4722
  %5011 = vmatmul.mubr.bf16.gmra.mrb[0].mxu0 %v4721
  %v5012 = vpop.f32.mrb[0].mxu0
  %v5013 = vadd.f32 %v4760, %v5012
  %v5014 = vpop.f32.mrb[0].mxu0
  %v5015 = vpop.f32.mrb[0].mxu0
  %v5016 = vadd.f32 %v4760, %v5015
  %v5017 = vpop.f32.mrb[0].mxu0
  %5018 = vdwg.mxu0
  %v5019 = vmax.f32 %v4893, 0.0
  %v5020 = vmax.f32 %v4896, 0.0
  %v5021 = vmax.f32 %v4901, 0.0
  %v5022 = vmax.f32 %v4904, 0.0
  %v5023 = vmax.f32 %v4909, 0.0
  %v5024 = vmax.f32 %v4912, 0.0
  %v5025 = vmax.f32 %v4917, 0.0
  %v5026 = vmax.f32 %v4920, 0.0
  %v5027 = vmax.f32 %v4925, 0.0
  %v5028 = vmax.f32 %v4928, 0.0
  %v5029 = vmax.f32 %v4933, 0.0
  %v5030 = vmax.f32 %v4936, 0.0
  %v5031 = vmax.f32 %v4941, 0.0
  %v5032 = vmax.f32 %v4944, 0.0
  %v5033 = vmax.f32 %v4949, 0.0
  %v5034 = vmax.f32 %v4952, 0.0
  %v5035 = vmax.f32 %v4957, 0.0
  %v5036 = vmax.f32 %v4960, 0.0
  %v5037 = vmax.f32 %v4965, 0.0
  %v5038 = vmax.f32 %v4968, 0.0
  %v5039 = vmax.f32 %v4973, 0.0
  %v5040 = vmax.f32 %v4976, 0.0
  %v5041 = vmax.f32 %v4981, 0.0
  %v5042 = vmax.f32 %v4984, 0.0
  %v5043 = vmax.f32 %v4989, 0.0
  %v5044 = vmax.f32 %v4992, 0.0
  %v5045 = vmax.f32 %v4997, 0.0
  %v5046 = vmax.f32 %v5000, 0.0
  %v5047 = vmax.f32 %v5005, 0.0
  %v5048 = vmax.f32 %v5008, 0.0
  %v5049 = vmax.f32 %v5013, 0.0
  %v5050 = vmax.f32 %v5016, 0.0
  %v5051 = vpack.c.bf16 %v5020, %v5019
  %v5052 = vpack.c.bf16 %v5022, %v5021
  %v5053 = vpack.c.bf16 %v5024, %v5023
  %v5054 = vpack.c.bf16 %v5026, %v5025
  %v5055 = vpack.c.bf16 %v5028, %v5027
  %v5056 = vpack.c.bf16 %v5030, %v5029
  %v5057 = vpack.c.bf16 %v5032, %v5031
  %v5058 = vpack.c.bf16 %v5034, %v5033
  %v5059 = vpack.c.bf16 %v5036, %v5035
  %v5060 = vpack.c.bf16 %v5038, %v5037
  %v5061 = vpack.c.bf16 %v5040, %v5039
  %v5062 = vpack.c.bf16 %v5042, %v5041
  %v5063 = vpack.c.bf16 %v5044, %v5043
  %v5064 = vpack.c.bf16 %v5046, %v5045
  %v5065 = vpack.c.bf16 %v5048, %v5047
  %v5066 = vpack.c.bf16 %v5050, %v5049
  %v5067 = vld [vmem:[%s7] sm:$0xf]
  %v5068 = vld [vmem:[%s7 + $0x4] sm:$0xf]
  %v5069 = vld [vmem:[%s7 + $0x8] sm:$0xf]
  %v5070 = vld [vmem:[%s7 + $0xc] sm:$0xf]
  %v5071 = vld [vmem:[%s7 + $0x10] sm:$0xf]
  %v5072 = vld [vmem:[%s7 + $0x14] sm:$0xf]
  %v5073 = vld [vmem:[%s7 + $0x18] sm:$0xf]
  %v5074 = vld [vmem:[%s7 + $0x1c] sm:$0xf]
  %v5075 = vld [vmem:[%s7 + $0x20] sm:$0xf]
  %v5076 = vld [vmem:[%s7 + $0x24] sm:$0xf]
  %v5077 = vld [vmem:[%s7 + $0x28] sm:$0xf]
  %v5078 = vld [vmem:[%s7 + $0x2c] sm:$0xf]
  %v5079 = vld [vmem:[%s7 + $0x30] sm:$0xf]
  %v5080 = vld [vmem:[%s7 + $0x34] sm:$0xf]
  %v5081 = vld [vmem:[%s7 + $0x38] sm:$0xf]
  %v5082 = vld [vmem:[%s7 + $0x3c] sm:$0xf]
  %v5083 = vld [vmem:[%s8] sm:$0x1]
  %v5085 = vlaneseq
  %v5086 = vshrl.u32 %v5085, 7
  %v5087 = vsub.s32 0, %v5086
  %v5088 = vrot.slane %v5083, %v5087
  %v5106 = vunpack.c.l.b16 %v5067
  %v5107 = vunpack.c.l.b16 %v5068
  %v5108 = vunpack.c.l.b16 %v5069
  %v5109 = vunpack.c.l.b16 %v5070
  %v5110 = vunpack.c.l.b16 %v5071
  %v5111 = vunpack.c.l.b16 %v5072
  %v5112 = vunpack.c.l.b16 %v5073
  %v5113 = vunpack.c.l.b16 %v5074
  %v5114 = vunpack.c.l.b16 %v5075
  %v5115 = vunpack.c.l.b16 %v5076
  %v5116 = vunpack.c.l.b16 %v5077
  %v5117 = vunpack.c.l.b16 %v5078
  %v5118 = vunpack.c.l.b16 %v5079
  %v5119 = vunpack.c.l.b16 %v5080
  %v5120 = vunpack.c.l.b16 %v5081
  %v5121 = vunpack.c.l.b16 %v5082
  %v5122 = vpack.c.b16 %v5107, %v5106
  %v5123 = vpack.c.b16 %v5109, %v5108
  %v5124 = vpack.c.b16 %v5111, %v5110
  %v5125 = vpack.c.b16 %v5113, %v5112
  %v5126 = vpack.c.b16 %v5115, %v5114
  %v5127 = vpack.c.b16 %v5117, %v5116
  %v5128 = vpack.c.b16 %v5119, %v5118
  %v5129 = vpack.c.b16 %v5121, %v5120
  %5138 = vmatprep.subr.bf16.mxu0 0
  %5139 = vmatpush1.bf16.msra.mxu0 %v5122
  %5140 = vmatprep.subr.bf16.mxu0 0
  %5141 = vmatpush1.bf16.msra.mxu0 %v5123
  %5142 = vmatprep.subr.bf16.mxu0 0
  %5143 = vmatpush1.bf16.msra.mxu0 %v5124
  %5144 = vmatprep.subr.bf16.mxu0 0
  %5145 = vmatpush1.bf16.msra.mxu0 %v5125
  %5146 = vmatprep.subr.bf16.mxu0 0
  %5147 = vmatpush1.bf16.msra.mxu0 %v5126
  %5148 = vmatprep.subr.bf16.mxu0 0
  %5149 = vmatpush1.bf16.msra.mxu0 %v5127
  %5150 = vmatprep.subr.bf16.mxu0 0
  %5151 = vmatpush1.bf16.msra.mxu0 %v5128
  %5152 = vmatprep.subr.bf16.mxu0 0
  %5153 = vmatpush1.bf16.msra.mxu0 %v5129
  %5154 = vmatprep.subr.bf16.mxu0 0
  %5155 = vmatpush1.bf16.msra.mxu0 0
  %5156 = vmatprep.subr.bf16.mxu0 0
  %5157 = vmatpush1.bf16.msra.mxu0 0
  %5158 = vmatprep.subr.bf16.mxu0 0
  %5159 = vmatpush1.bf16.msra.mxu0 0
  %5160 = vmatprep.subr.bf16.mxu0 0
  %5161 = vmatpush1.bf16.msra.mxu0 0
  %5162 = vmatprep.subr.bf16.mxu0 0
  %5163 = vmatpush1.bf16.msra.mxu0 0
  %5164 = vmatprep.subr.bf16.mxu0 0
  %5165 = vmatpush1.bf16.msra.mxu0 0
  %5166 = vmatprep.subr.bf16.mxu0 0
  %5167 = vmatpush1.bf16.msra.mxu0 0
  %5168 = vmatprep.subr.bf16.mxu0 0
  %5169 = vmatpush1.bf16.msra.mxu0 0
  %5170 = vmatprep.mubr.bf16.mxu0 0
  %5171 = vmatmul.mubr.bf16.gmra.mrb[0].mxu0 %v5051
  %v5172 = vpop.f32.mrb[0].mxu0
  %v5173 = vadd.f32 %v5088, %v5172
  %v5174 = vpop.f32.mrb[0].mxu0
  %v5175 = vpop.f32.mrb[0].mxu0
  %v5176 = vadd.f32 %v5088, %v5175
  %v5177 = vpop.f32.mrb[0].mxu0
  %5178 = vmatprep.mubr.bf16.mxu0 0
  %5179 = vmatmul.mubr.bf16.gmra.mrb[0].mxu0 %v5052
  %v5180 = vpop.f32.mrb[0].mxu0
  %v5181 = vadd.f32 %v5088, %v5180
  %v5182 = vpop.f32.mrb[0].mxu0
  %v5183 = vpop.f32.mrb[0].mxu0
  %v5184 = vadd.f32 %v5088, %v5183
  %v5185 = vpop.f32.mrb[0].mxu0
  %5186 = vmatprep.mubr.bf16.mxu0 0
  %5187 = vmatmul.mubr.bf16.gmra.mrb[0].mxu0 %v5053
  %v5188 = vpop.f32.mrb[0].mxu0
  %v5189 = vadd.f32 %v5088, %v5188
  %v5190 = vpop.f32.mrb[0].mxu0
  %v5191 = vpop.f32.mrb[0].mxu0
  %v5192 = vadd.f32 %v5088, %v5191
  %v5193 = vpop.f32.mrb[0].mxu0
  %5194 = vmatprep.mubr.bf16.mxu0 0
  %5195 = vmatmul.mubr.bf16.gmra.mrb[0].mxu0 %v5054
  %v5196 = vpop.f32.mrb[0].mxu0
  %v5197 = vadd.f32 %v5088, %v5196
  %v5198 = vpop.f32.mrb[0].mxu0
  %v5199 = vpop.f32.mrb[0].mxu0
  %v5200 = vadd.f32 %v5088, %v5199
  %v5201 = vpop.f32.mrb[0].mxu0
  %5202 = vmatprep.mubr.bf16.mxu0 0
  %5203 = vmatmul.mubr.bf16.gmra.mrb[0].mxu0 %v5055
  %v5204 = vpop.f32.mrb[0].mxu0
  %v5205 = vadd.f32 %v5088, %v5204
  %v5206 = vpop.f32.mrb[0].mxu0
  %v5207 = vpop.f32.mrb[0].mxu0
  %v5208 = vadd.f32 %v5088, %v5207
  %v5209 = vpop.f32.mrb[0].mxu0
  %5210 = vmatprep.mubr.bf16.mxu0 0
  %5211 = vmatmul.mubr.bf16.gmra.mrb[0].mxu0 %v5056
  %v5212 = vpop.f32.mrb[0].mxu0
  %v5213 = vadd.f32 %v5088, %v5212
  %v5214 = vpop.f32.mrb[0].mxu0
  %v5215 = vpop.f32.mrb[0].mxu0
  %v5216 = vadd.f32 %v5088, %v5215
  %v5217 = vpop.f32.mrb[0].mxu0
  %5218 = vmatprep.mubr.bf16.mxu0 0
  %5219 = vmatmul.mubr.bf16.gmra.mrb[0].mxu0 %v5057
  %v5220 = vpop.f32.mrb[0].mxu0
  %v5221 = vadd.f32 %v5088, %v5220
  %v5222 = vpop.f32.mrb[0].mxu0
  %v5223 = vpop.f32.mrb[0].mxu0
  %v5224 = vadd.f32 %v5088, %v5223
  %v5225 = vpop.f32.mrb[0].mxu0
  %5226 = vmatprep.mubr.bf16.mxu0 0
  %5227 = vmatmul.mubr.bf16.gmra.mrb[0].mxu0 %v5058
  %v5228 = vpop.f32.mrb[0].mxu0
  %v5229 = vadd.f32 %v5088, %v5228
  %v5230 = vpop.f32.mrb[0].mxu0
  %v5231 = vpop.f32.mrb[0].mxu0
  %v5232 = vadd.f32 %v5088, %v5231
  %v5233 = vpop.f32.mrb[0].mxu0
  %5234 = vmatprep.mubr.bf16.mxu0 0
  %5235 = vmatmul.mubr.bf16.gmra.mrb[0].mxu0 %v5059
  %v5236 = vpop.f32.mrb[0].mxu0
  %v5237 = vadd.f32 %v5088, %v5236
  %v5238 = vpop.f32.mrb[0].mxu0
  %v5239 = vpop.f32.mrb[0].mxu0
  %v5240 = vadd.f32 %v5088, %v5239
  %v5241 = vpop.f32.mrb[0].mxu0
  %5242 = vmatprep.mubr.bf16.mxu0 0
  %5243 = vmatmul.mubr.bf16.gmra.mrb[0].mxu0 %v5060
  %v5244 = vpop.f32.mrb[0].mxu0
  %v5245 = vadd.f32 %v5088, %v5244
  %v5246 = vpop.f32.mrb[0].mxu0
  %v5247 = vpop.f32.mrb[0].mxu0
  %v5248 = vadd.f32 %v5088, %v5247
  %v5249 = vpop.f32.mrb[0].mxu0
  %5250 = vmatprep.mubr.bf16.mxu0 0
  %5251 = vmatmul.mubr.bf16.gmra.mrb[0].mxu0 %v5061
  %v5252 = vpop.f32.mrb[0].mxu0
  %v5253 = vadd.f32 %v5088, %v5252
  %v5254 = vpop.f32.mrb[0].mxu0
  %v5255 = vpop.f32.mrb[0].mxu0
  %v5256 = vadd.f32 %v5088, %v5255
  %v5257 = vpop.f32.mrb[0].mxu0
  %5258 = vmatprep.mubr.bf16.mxu0 0
  %5259 = vmatmul.mubr.bf16.gmra.mrb[0].mxu0 %v5062
  %v5260 = vpop.f32.mrb[0].mxu0
  %v5261 = vadd.f32 %v5088, %v5260
  %v5262 = vpop.f32.mrb[0].mxu0
  %v5263 = vpop.f32.mrb[0].mxu0
  %v5264 = vadd.f32 %v5088, %v5263
  %v5265 = vpop.f32.mrb[0].mxu0
  %5266 = vmatprep.mubr.bf16.mxu0 0
  %5267 = vmatmul.mubr.bf16.gmra.mrb[0].mxu0 %v5063
  %v5268 = vpop.f32.mrb[0].mxu0
  %v5269 = vadd.f32 %v5088, %v5268
  %v5270 = vpop.f32.mrb[0].mxu0
  %v5271 = vpop.f32.mrb[0].mxu0
  %v5272 = vadd.f32 %v5088, %v5271
  %v5273 = vpop.f32.mrb[0].mxu0
  %5274 = vmatprep.mubr.bf16.mxu0 0
  %5275 = vmatmul.mubr.bf16.gmra.mrb[0].mxu0 %v5064
  %v5276 = vpop.f32.mrb[0].mxu0
  %v5277 = vadd.f32 %v5088, %v5276
  %v5278 = vpop.f32.mrb[0].mxu0
  %v5279 = vpop.f32.mrb[0].mxu0
  %v5280 = vadd.f32 %v5088, %v5279
  %v5281 = vpop.f32.mrb[0].mxu0
  %5282 = vmatprep.mubr.bf16.mxu0 0
  %5283 = vmatmul.mubr.bf16.gmra.mrb[0].mxu0 %v5065
  %v5284 = vpop.f32.mrb[0].mxu0
  %v5285 = vadd.f32 %v5088, %v5284
  %v5286 = vpop.f32.mrb[0].mxu0
  %v5287 = vpop.f32.mrb[0].mxu0
  %v5288 = vadd.f32 %v5088, %v5287
  %v5289 = vpop.f32.mrb[0].mxu0
  %5290 = vmatprep.mubr.bf16.mxu0 0
  %5291 = vmatmul.mubr.bf16.gmra.mrb[0].mxu0 %v5066
  %v5292 = vpop.f32.mrb[0].mxu0
  %v5293 = vadd.f32 %v5088, %v5292
  %v5294 = vpop.f32.mrb[0].mxu0
  %v5295 = vpop.f32.mrb[0].mxu0
  %v5296 = vadd.f32 %v5088, %v5295
  %v5297 = vpop.f32.mrb[0].mxu0
  %5298 = vdwg.mxu0
  %v5299 = vmax.f32 %v5173, 0.0
  %v5300 = vmax.f32 %v5176, 0.0
  %v5301 = vmax.f32 %v5181, 0.0
  %v5302 = vmax.f32 %v5184, 0.0
  %v5303 = vmax.f32 %v5189, 0.0
  %v5304 = vmax.f32 %v5192, 0.0
  %v5305 = vmax.f32 %v5197, 0.0
  %v5306 = vmax.f32 %v5200, 0.0
  %v5307 = vmax.f32 %v5205, 0.0
  %v5308 = vmax.f32 %v5208, 0.0
  %v5309 = vmax.f32 %v5213, 0.0
  %v5310 = vmax.f32 %v5216, 0.0
  %v5311 = vmax.f32 %v5221, 0.0
  %v5312 = vmax.f32 %v5224, 0.0
  %v5313 = vmax.f32 %v5229, 0.0
  %v5314 = vmax.f32 %v5232, 0.0
  %v5315 = vmax.f32 %v5237, 0.0
  %v5316 = vmax.f32 %v5240, 0.0
  %v5317 = vmax.f32 %v5245, 0.0
  %v5318 = vmax.f32 %v5248, 0.0
  %v5319 = vmax.f32 %v5253, 0.0
  %v5320 = vmax.f32 %v5256, 0.0
  %v5321 = vmax.f32 %v5261, 0.0
  %v5322 = vmax.f32 %v5264, 0.0
  %v5323 = vmax.f32 %v5269, 0.0
  %v5324 = vmax.f32 %v5272, 0.0
  %v5325 = vmax.f32 %v5277, 0.0
  %v5326 = vmax.f32 %v5280, 0.0
  %v5327 = vmax.f32 %v5285, 0.0
  %v5328 = vmax.f32 %v5288, 0.0
  %v5329 = vmax.f32 %v5293, 0.0
  %v5330 = vmax.f32 %v5296, 0.0
  %v5331 = vpack.c.bf16 %v5300, %v5299
  %v5332 = vpack.c.bf16 %v5302, %v5301
  %v5333 = vpack.c.bf16 %v5304, %v5303
  %v5334 = vpack.c.bf16 %v5306, %v5305
  %v5335 = vpack.c.bf16 %v5308, %v5307
  %v5336 = vpack.c.bf16 %v5310, %v5309
  %v5337 = vpack.c.bf16 %v5312, %v5311
  %v5338 = vpack.c.bf16 %v5314, %v5313
  %v5339 = vpack.c.bf16 %v5316, %v5315
  %v5340 = vpack.c.bf16 %v5318, %v5317
  %v5341 = vpack.c.bf16 %v5320, %v5319
  %v5342 = vpack.c.bf16 %v5322, %v5321
  %v5343 = vpack.c.bf16 %v5324, %v5323
  %v5344 = vpack.c.bf16 %v5326, %v5325
  %v5345 = vpack.c.bf16 %v5328, %v5327
  %v5346 = vpack.c.bf16 %v5330, %v5329
  %v5347 = vld [vmem:[%s9] sm:$0xf]
  %v5348 = vld [vmem:[%s9 + $0x4] sm:$0xf]
  %v5349 = vld [vmem:[%s9 + $0x8] sm:$0xf]
  %v5350 = vld [vmem:[%s9 + $0xc] sm:$0xf]
  %v5351 = vld [vmem:[%s9 + $0x10] sm:$0xf]
  %v5352 = vld [vmem:[%s9 + $0x14] sm:$0xf]
  %v5353 = vld [vmem:[%s9 + $0x18] sm:$0xf]
  %v5354 = vld [vmem:[%s9 + $0x1c] sm:$0xf]
  %v5355 = vld [vmem:[%s9 + $0x20] sm:$0xf]
  %v5356 = vld [vmem:[%s9 + $0x24] sm:$0xf]
  %v5357 = vld [vmem:[%s9 + $0x28] sm:$0xf]
  %v5358 = vld [vmem:[%s9 + $0x2c] sm:$0xf]
  %v5359 = vld [vmem:[%s9 + $0x30] sm:$0xf]
  %v5360 = vld [vmem:[%s9 + $0x34] sm:$0xf]
  %v5361 = vld [vmem:[%s9 + $0x38] sm:$0xf]
  %v5362 = vld [vmem:[%s9 + $0x3c] sm:$0xf]
  %v5363 = vld [vmem:[%s10] sm:$0x1]
  %v5365 = vlaneseq
  %v5366 = vshrl.u32 %v5365, 7
  %v5367 = vsub.s32 0, %v5366
  %v5368 = vrot.slane %v5363, %v5367
  %v5386 = vunpack.c.l.b16 %v5347
  %v5387 = vunpack.c.l.b16 %v5348
  %v5388 = vunpack.c.l.b16 %v5349
  %v5389 = vunpack.c.l.b16 %v5350
  %v5390 = vunpack.c.l.b16 %v5351
  %v5391 = vunpack.c.l.b16 %v5352
  %v5392 = vunpack.c.l.b16 %v5353
  %v5393 = vunpack.c.l.b16 %v5354
  %v5394 = vunpack.c.l.b16 %v5355
  %v5395 = vunpack.c.l.b16 %v5356
  %v5396 = vunpack.c.l.b16 %v5357
  %v5397 = vunpack.c.l.b16 %v5358
  %v5398 = vunpack.c.l.b16 %v5359
  %v5399 = vunpack.c.l.b16 %v5360
  %v5400 = vunpack.c.l.b16 %v5361
  %v5401 = vunpack.c.l.b16 %v5362
  %v5402 = vpack.c.b16 %v5387, %v5386
  %v5403 = vpack.c.b16 %v5389, %v5388
  %v5404 = vpack.c.b16 %v5391, %v5390
  %v5405 = vpack.c.b16 %v5393, %v5392
  %v5406 = vpack.c.b16 %v5395, %v5394
  %v5407 = vpack.c.b16 %v5397, %v5396
  %v5408 = vpack.c.b16 %v5399, %v5398
  %v5409 = vpack.c.b16 %v5401, %v5400
  %5418 = vmatprep.subr.bf16.mxu0 0
  %5419 = vmatpush1.bf16.msra.mxu0 %v5402
  %5420 = vmatprep.subr.bf16.mxu0 0
  %5421 = vmatpush1.bf16.msra.mxu0 %v5403
  %5422 = vmatprep.subr.bf16.mxu0 0
  %5423 = vmatpush1.bf16.msra.mxu0 %v5404
  %5424 = vmatprep.subr.bf16.mxu0 0
  %5425 = vmatpush1.bf16.msra.mxu0 %v5405
  %5426 = vmatprep.subr.bf16.mxu0 0
  %5427 = vmatpush1.bf16.msra.mxu0 %v5406
  %5428 = vmatprep.subr.bf16.mxu0 0
  %5429 = vmatpush1.bf16.msra.mxu0 %v5407
  %5430 = vmatprep.subr.bf16.mxu0 0
  %5431 = vmatpush1.bf16.msra.mxu0 %v5408
  %5432 = vmatprep.subr.bf16.mxu0 0
  %5433 = vmatpush1.bf16.msra.mxu0 %v5409
  %5434 = vmatprep.subr.bf16.mxu0 0
  %5435 = vmatpush1.bf16.msra.mxu0 0
  %5436 = vmatprep.subr.bf16.mxu0 0
  %5437 = vmatpush1.bf16.msra.mxu0 0
  %5438 = vmatprep.subr.bf16.mxu0 0
  %5439 = vmatpush1.bf16.msra.mxu0 0
  %5440 = vmatprep.subr.bf16.mxu0 0
  %5441 = vmatpush1.bf16.msra.mxu0 0
  %5442 = vmatprep.subr.bf16.mxu0 0
  %5443 = vmatpush1.bf16.msra.mxu0 0
  %5444 = vmatprep.subr.bf16.mxu0 0
  %5445 = vmatpush1.bf16.msra.mxu0 0
  %5446 = vmatprep.subr.bf16.mxu0 0
  %5447 = vmatpush1.bf16.msra.mxu0 0
  %5448 = vmatprep.subr.bf16.mxu0 0
  %5449 = vmatpush1.bf16.msra.mxu0 0
  %5450 = vmatprep.mubr.bf16.mxu0 0
  %5451 = vmatmul.mubr.bf16.gmra.mrb[0].mxu0 %v5331
  %v5452 = vpop.f32.mrb[0].mxu0
  %v5453 = vadd.f32 %v5368, %v5452
  %v5454 = vpop.f32.mrb[0].mxu0
  %v5455 = vpop.f32.mrb[0].mxu0
  %v5456 = vadd.f32 %v5368, %v5455
  %v5457 = vpop.f32.mrb[0].mxu0
  %5458 = vmatprep.mubr.bf16.mxu0 0
  %5459 = vmatmul.mubr.bf16.gmra.mrb[0].mxu0 %v5332
  %v5460 = vpop.f32.mrb[0].mxu0
  %v5461 = vadd.f32 %v5368, %v5460
  %v5462 = vpop.f32.mrb[0].mxu0
  %v5463 = vpop.f32.mrb[0].mxu0
  %v5464 = vadd.f32 %v5368, %v5463
  %v5465 = vpop.f32.mrb[0].mxu0
  %5466 = vmatprep.mubr.bf16.mxu0 0
  %5467 = vmatmul.mubr.bf16.gmra.mrb[0].mxu0 %v5333
  %v5468 = vpop.f32.mrb[0].mxu0
  %v5469 = vadd.f32 %v5368, %v5468
  %v5470 = vpop.f32.mrb[0].mxu0
  %v5471 = vpop.f32.mrb[0].mxu0
  %v5472 = vadd.f32 %v5368, %v5471
  %v5473 = vpop.f32.mrb[0].mxu0
  %5474 = vmatprep.mubr.bf16.mxu0 0
  %5475 = vmatmul.mubr.bf16.gmra.mrb[0].mxu0 %v5334
  %v5476 = vpop.f32.mrb[0].mxu0
  %v5477 = vadd.f32 %v5368, %v5476
  %v5478 = vpop.f32.mrb[0].mxu0
  %v5479 = vpop.f32.mrb[0].mxu0
  %v5480 = vadd.f32 %v5368, %v5479
  %v5481 = vpop.f32.mrb[0].mxu0
  %5482 = vmatprep.mubr.bf16.mxu0 0
  %5483 = vmatmul.mubr.bf16.gmra.mrb[0].mxu0 %v5335
  %v5484 = vpop.f32.mrb[0].mxu0
  %v5485 = vadd.f32 %v5368, %v5484
  %v5486 = vpop.f32.mrb[0].mxu0
  %v5487 = vpop.f32.mrb[0].mxu0
  %v5488 = vadd.f32 %v5368, %v5487
  %v5489 = vpop.f32.mrb[0].mxu0
  %5490 = vmatprep.mubr.bf16.mxu0 0
  %5491 = vmatmul.mubr.bf16.gmra.mrb[0].mxu0 %v5336
  %v5492 = vpop.f32.mrb[0].mxu0
  %v5493 = vadd.f32 %v5368, %v5492
  %v5494 = vpop.f32.mrb[0].mxu0
  %v5495 = vpop.f32.mrb[0].mxu0
  %v5496 = vadd.f32 %v5368, %v5495
  %v5497 = vpop.f32.mrb[0].mxu0
  %5498 = vmatprep.mubr.bf16.mxu0 0
  %5499 = vmatmul.mubr.bf16.gmra.mrb[0].mxu0 %v5337
  %v5500 = vpop.f32.mrb[0].mxu0
  %v5501 = vadd.f32 %v5368, %v5500
  %v5502 = vpop.f32.mrb[0].mxu0
  %v5503 = vpop.f32.mrb[0].mxu0
  %v5504 = vadd.f32 %v5368, %v5503
  %v5505 = vpop.f32.mrb[0].mxu0
  %5506 = vmatprep.mubr.bf16.mxu0 0
  %5507 = vmatmul.mubr.bf16.gmra.mrb[0].mxu0 %v5338
  %v5508 = vpop.f32.mrb[0].mxu0
  %v5509 = vadd.f32 %v5368, %v5508
  %v5510 = vpop.f32.mrb[0].mxu0
  %v5511 = vpop.f32.mrb[0].mxu0
  %v5512 = vadd.f32 %v5368, %v5511
  %v5513 = vpop.f32.mrb[0].mxu0
  %5514 = vmatprep.mubr.bf16.mxu0 0
  %5515 = vmatmul.mubr.bf16.gmra.mrb[0].mxu0 %v5339
  %v5516 = vpop.f32.mrb[0].mxu0
  %v5517 = vadd.f32 %v5368, %v5516
  %v5518 = vpop.f32.mrb[0].mxu0
  %v5519 = vpop.f32.mrb[0].mxu0
  %v5520 = vadd.f32 %v5368, %v5519
  %v5521 = vpop.f32.mrb[0].mxu0
  %5522 = vmatprep.mubr.bf16.mxu0 0
  %5523 = vmatmul.mubr.bf16.gmra.mrb[0].mxu0 %v5340
  %v5524 = vpop.f32.mrb[0].mxu0
  %v5525 = vadd.f32 %v5368, %v5524
  %v5526 = vpop.f32.mrb[0].mxu0
  %v5527 = vpop.f32.mrb[0].mxu0
  %v5528 = vadd.f32 %v5368, %v5527
  %v5529 = vpop.f32.mrb[0].mxu0
  %5530 = vmatprep.mubr.bf16.mxu0 0
  %5531 = vmatmul.mubr.bf16.gmra.mrb[0].mxu0 %v5341
  %v5532 = vpop.f32.mrb[0].mxu0
  %v5533 = vadd.f32 %v5368, %v5532
  %v5534 = vpop.f32.mrb[0].mxu0
  %v5535 = vpop.f32.mrb[0].mxu0
  %v5536 = vadd.f32 %v5368, %v5535
  %v5537 = vpop.f32.mrb[0].mxu0
  %5538 = vmatprep.mubr.bf16.mxu0 0
  %5539 = vmatmul.mubr.bf16.gmra.mrb[0].mxu0 %v5342
  %v5540 = vpop.f32.mrb[0].mxu0
  %v5541 = vadd.f32 %v5368, %v5540
  %v5542 = vpop.f32.mrb[0].mxu0
  %v5543 = vpop.f32.mrb[0].mxu0
  %v5544 = vadd.f32 %v5368, %v5543
  %v5545 = vpop.f32.mrb[0].mxu0
  %5546 = vmatprep.mubr.bf16.mxu0 0
  %5547 = vmatmul.mubr.bf16.gmra.mrb[0].mxu0 %v5343
  %v5548 = vpop.f32.mrb[0].mxu0
  %v5549 = vadd.f32 %v5368, %v5548
  %v5550 = vpop.f32.mrb[0].mxu0
  %v5551 = vpop.f32.mrb[0].mxu0
  %v5552 = vadd.f32 %v5368, %v5551
  %v5553 = vpop.f32.mrb[0].mxu0
  %5554 = vmatprep.mubr.bf16.mxu0 0
  %5555 = vmatmul.mubr.bf16.gmra.mrb[0].mxu0 %v5344
  %v5556 = vpop.f32.mrb[0].mxu0
  %v5557 = vadd.f32 %v5368, %v5556
  %v5558 = vpop.f32.mrb[0].mxu0
  %v5559 = vpop.f32.mrb[0].mxu0
  %v5560 = vadd.f32 %v5368, %v5559
  %v5561 = vpop.f32.mrb[0].mxu0
  %5562 = vmatprep.mubr.bf16.mxu0 0
  %5563 = vmatmul.mubr.bf16.gmra.mrb[0].mxu0 %v5345
  %v5564 = vpop.f32.mrb[0].mxu0
  %v5565 = vadd.f32 %v5368, %v5564
  %v5566 = vpop.f32.mrb[0].mxu0
  %v5567 = vpop.f32.mrb[0].mxu0
  %v5568 = vadd.f32 %v5368, %v5567
  %v5569 = vpop.f32.mrb[0].mxu0
  %5570 = vmatprep.mubr.bf16.mxu0 0
  %5571 = vmatmul.mubr.bf16.gmra.mrb[0].mxu0 %v5346
  %v5572 = vpop.f32.mrb[0].mxu0
  %v5573 = vadd.f32 %v5368, %v5572
  %v5574 = vpop.f32.mrb[0].mxu0
  %v5575 = vpop.f32.mrb[0].mxu0
  %v5576 = vadd.f32 %v5368, %v5575
  %v5577 = vpop.f32.mrb[0].mxu0
  %5578 = vdwg.mxu0
  %5579 = vst [vmem:[%s11] sm:$0xff] %v5453
  %5580 = vst [vmem:[%s11 + $0x8] sm:$0xff] %v5456
  %5581 = vst [vmem:[%s11 + $0x10] sm:$0xff] %v5461
  %5582 = vst [vmem:[%s11 + $0x18] sm:$0xff] %v5464
  %5583 = vst [vmem:[%s11 + $0x20] sm:$0xff] %v5469
  %5584 = vst [vmem:[%s11 + $0x28] sm:$0xff] %v5472
  %5585 = vst [vmem:[%s11 + $0x30] sm:$0xff] %v5477
  %5586 = vst [vmem:[%s11 + $0x38] sm:$0xff] %v5480
  %5587 = vst [vmem:[%s11 + $0x40] sm:$0xff] %v5485
  %5588 = vst [vmem:[%s11 + $0x48] sm:$0xff] %v5488
  %5589 = vst [vmem:[%s11 + $0x50] sm:$0xff] %v5493
  %5590 = vst [vmem:[%s11 + $0x58] sm:$0xff] %v5496
  %5591 = vst [vmem:[%s11 + $0x60] sm:$0xff] %v5501
  %5592 = vst [vmem:[%s11 + $0x68] sm:$0xff] %v5504
  %5593 = vst [vmem:[%s11 + $0x70] sm:$0xff] %v5509
  %5594 = vst [vmem:[%s11 + $0x78] sm:$0xff] %v5512
  %5595 = vst [vmem:[%s11 + $0x80] sm:$0xff] %v5517
  %5596 = vst [vmem:[%s11 + $0x88] sm:$0xff] %v5520
  %5597 = vst [vmem:[%s11 + $0x90] sm:$0xff] %v5525
  %5598 = vst [vmem:[%s11 + $0x98] sm:$0xff] %v5528
  %5599 = vst [vmem:[%s11 + $0xa0] sm:$0xff] %v5533
  %5600 = vst [vmem:[%s11 + $0xa8] sm:$0xff] %v5536
  %5601 = vst [vmem:[%s11 + $0xb0] sm:$0xff] %v5541
  %5602 = vst [vmem:[%s11 + $0xb8] sm:$0xff] %v5544
  %5603 = vst [vmem:[%s11 + $0xc0] sm:$0xff] %v5549
  %5604 = vst [vmem:[%s11 + $0xc8] sm:$0xff] %v5552
  %5605 = vst [vmem:[%s11 + $0xd0] sm:$0xff] %v5557
  %5606 = vst [vmem:[%s11 + $0xd8] sm:$0xff] %v5560
  %5607 = vst [vmem:[%s11 + $0xe0] sm:$0xff] %v5565
  %5608 = vst [vmem:[%s11 + $0xe8] sm:$0xff] %v5568
  %5609 = vst [vmem:[%s11 + $0xf0] sm:$0xff] %v5573
  %5610 = vst [vmem:[%s11 + $0xf8] sm:$0xff] %v5576
  // Predicated region
  $region46: #{net_forward.1} parent=0 // pred_check
    _
  $region47: #{net_forward.1} parent=0 // pred_check_branch
    %5612 = sbr.rel (0) target = $region49
  $region48: #{net_forward.1} parent=0 // pred_region
    _
  $region49: #{net_forward.1} parent=0 // pred_fallthru
    _
  // Predicated region
  $region50: #{net_forward.1} parent=0 // pred_check
    _
  $region51: #{net_forward.1} parent=0 // pred_check_branch
    %5614 = sbr.rel (0) target = $region53
  $region52: #{net_forward.1} parent=0 // pred_region
    _
  $region53: #{net_forward.1} parent=0 // pred_fallthru
    _

</llo_original>
